<compile_context>
chip_gen: v7x
topology: tpu7x:2x2x1
jax: 0.10.0
libtpu: 0.0.40
codegen_flags: <defaults>
</compile_context>

<pallas_src>
import functools

import numpy as np
import jax
import jax.numpy as jnp
from jax.experimental import pallas as pl
from jax.experimental.pallas import tpu as pltpu

_INV_SQRT2 = 0.7071067811865476


def _erf_approx(v):
    """Abramowitz & Stegun 7.1.26 erf approximation (|err| <= 1.5e-7).

    Built only from abs/exp/div/select so it lowers cleanly inside Mosaic.
    """
    a1, a2, a3, a4, a5 = (0.254829592, -0.284496736, 1.421413741,
                          -1.453152027, 1.061405429)
    p = 0.3275911
    sgn = jnp.where(v >= 0.0, 1.0, -1.0)
    av = jnp.abs(v)
    t = 1.0 / (1.0 + p * av)
    poly = ((((a5 * t + a4) * t + a3) * t + a2) * t + a1) * t
    return sgn * (1.0 - poly * jnp.exp(-(av * av)))


def _gelu(v):
    """Exact-erf GELU (torch.nn.functional.gelu default) via _erf_approx."""
    return 0.5 * v * (1.0 + _erf_approx(v * _INV_SQRT2))


# ----------------------------------------------------------------------------
# Pallas kernel
# ----------------------------------------------------------------------------
def _encoder_kernel(x_hbm, w_ref, b_ref, g_ref, beta_ref, o_ref, xbuf, sem, *,
                    t_tile, ksize, align_pad, block_width, num_blocks):
    # x_hbm   : (B, T, H)        input, left in HBM (memory_space=ANY)
    # w_ref   : (NB, K*BW, BW)   compact grouped conv weight, bf16
    # b_ref   : (1, H) f32       conv bias
    # g_ref   : (1, H) f32       LayerNorm gamma
    # beta_ref: (1, H) f32       LayerNorm beta
    # o_ref   : (1, Tt, H)       output tile
    # xbuf    : (2, Tt+2*AP, H)  double-buffered VMEM window (tile + halo)
    # sem     : (2,)             DMA semaphores (one per slot)
    Tt, K, AP = t_tile, ksize, align_pad
    BW, NB = block_width, num_blocks
    pad = K // 2
    H = o_ref.shape[-1]
    N = Tt + 2 * AP                              # rows in one window buffer

    b = pl.program_id(0)
    t = pl.program_id(1)
    n_t = pl.num_programs(1)
    slot = t % 2

    # ---- halo'd window DMA (single HBM read of x per output row) ----------
    def _dispatch(tt, sl, action):
        """Build/start/wait the DMA for the window of time-tile `tt` -> slot `sl`.

        All offsets / lengths are multiples of 8 rows; out-of-range halo rows
        are zeroed separately, disjoint from the DMA'd region.
        """
        first = tt == 0
        last = tt == n_t - 1
        o0 = tt * Tt
        src0 = pl.multiple_of(jnp.maximum(o0 - AP, 0), 8)
        dst0 = pl.multiple_of(jnp.where(first, AP, 0), 8)

        def desc(nrows):
            return pltpu.make_async_copy(
                x_hbm.at[b, pl.ds(src0, nrows), :],
                xbuf.at[sl, pl.ds(dst0, nrows), :],
                sem.at[sl])

        def act(nrows):
            cp = desc(nrows)
            if action == "start":
                cp.start()
            else:
                cp.wait()

        @pl.when(jnp.logical_and(first, last))
        def _():
            act(Tt)                              # single tile: whole sequence

        @pl.when(jnp.logical_xor(first, last))
        def _():
            act(Tt + AP)                         # first-only or last-only tile

        @pl.when(jnp.logical_and(jnp.logical_not(first), jnp.logical_not(last)))
        def _():
            act(Tt + 2 * AP)                     # interior tile

    # Prime the first window of this batch row (only exposed DMA per row).
    @pl.when(t == 0)
    def _():
        _dispatch(t, slot, "start")

    # Prefetch the next window into the other slot before doing any compute,
    # so its HBM read overlaps with this step's MXU work.
    @pl.when(t + 1 < n_t)
    def _():
        _dispatch(t + 1, 1 - slot, "start")

    # Wait for the current window.
    _dispatch(t, slot, "wait")

    # ---- zero the aligned halo rows that fall outside [0, T) --------------
    first = t == 0
    last = t == n_t - 1

    @pl.when(first)
    def _():
        xbuf[slot, 0:AP, :] = jnp.zeros((AP, H), xbuf.dtype)

    @pl.when(last)
    def _():
        xbuf[slot, Tt + AP:N, :] = jnp.zeros((AP, H), xbuf.dtype)

    # ---- grouped conv: K per-tap MXU dots, f32 accumulation ---------------
    win = xbuf[slot]                             # (N, H), input dtype
    win_f32 = win.astype(jnp.float32)

    accs = [jnp.zeros((Tt, BW), jnp.float32) for _ in range(NB)]
    for k in range(K):                           # K is small & static
        sh = (AP - pad) + k                      # left-shift amount for tap k
        rolled = pltpu.roll(win, shift=(N - sh) % N, axis=0)     # XLU rotate
        tap = rolled[:Tt, :].astype(jnp.bfloat16)                # (Tt, H) bf16
        for nb in range(NB):
            accs[nb] = accs[nb] + jnp.dot(
                tap[:, nb * BW:(nb + 1) * BW],
                w_ref[nb, k * BW:(k + 1) * BW, :],
                preferred_element_type=jnp.float32)
    acc = accs[0] if NB == 1 else jnp.concatenate(accs, axis=-1)
    acc = acc + b_ref[...].astype(jnp.float32)   # conv bias

    # exact-erf GELU (f32)
    y = _gelu(acc)

    # residual: interior (aligned) rows of the same window, f32
    y = y + win_f32[AP:AP + Tt, :]

    # LayerNorm over hidden, centered two-pass variance, eps = 1e-5
    mean = jnp.mean(y, axis=-1, keepdims=True)
    yc = y - mean
    var = jnp.mean(yc * yc, axis=-1, keepdims=True)
    yn = yc * jax.lax.rsqrt(var + 1e-5)
    o_ref[0] = (yn * g_ref[...].astype(jnp.float32)
                + beta_ref[...].astype(jnp.float32)).astype(o_ref.dtype)


def encoder_forward(x, w_blocks, bias, gamma, beta, *, ksize, t_tile=512,
                    in_lens=None):
    """x: (B, T, H).  w_blocks: (NB, K*BW, BW) bf16 compact grouped conv weight.

    `in_lens` is accepted for signature parity with the PyTorch module but is
    unused (as in the reference forward).
    """
    del in_lens
    B, T, H = x.shape
    K = ksize
    pad = K // 2
    NB, KBW, BW = w_blocks.shape
    align_pad = ((pad + 7) // 8) * 8             # halo rounded up to 8 rows
    t_tile = min(t_tile, T)

    assert K % 2 == 0, "module semantics ([:, :, :-1]) assume an even kernel"
    assert H % 128 == 0, "hidden dim must be lane-aligned (multiple of 128)"
    assert NB * BW == H and KBW == K * BW, "bad compact weight shape"
    assert t_tile % 8 == 0 and T % t_tile == 0
    n_t = T // t_tile
    assert n_t == 1 or t_tile >= align_pad       # halo never wraps a tile
    N = t_tile + 2 * align_pad

    kernel = functools.partial(_encoder_kernel, t_tile=t_tile, ksize=K,
                               align_pad=align_pad, block_width=BW,
                               num_blocks=NB)

    def build(single_buffer_weight):
        if single_buffer_weight:
            w_spec = pl.BlockSpec((NB, K * BW, BW), lambda b, t: (0, 0, 0),
                                  pipeline_mode=pl.Buffered(buffer_count=1))
        else:
            w_spec = pl.BlockSpec((NB, K * BW, BW), lambda b, t: (0, 0, 0))
        w_bufs = 1 if single_buffer_weight else 2

        # VMEM budget derived from the actual buffers (not a fixed 32 MiB).
        itemsize = jnp.dtype(x.dtype).itemsize
        w_item = jnp.dtype(w_blocks.dtype).itemsize
        needed = (2 * N * H * itemsize                       # window buffers
                  + w_bufs * NB * K * BW * BW * w_item       # resident weight
                  + 2 * 3 * H * 4                            # bias/gamma/beta
                  + 2 * t_tile * H * itemsize                # output blocks
                  + 8 * t_tile * H * 4)                      # in-kernel temps
        vmem_limit = min(max(int(needed * 1.5) + (4 << 20), 32 << 20), 96 << 20)

        return pl.pallas_call(
            kernel,
            out_shape=jax.ShapeDtypeStruct((B, T, H), x.dtype),
            grid_spec=pltpu.PrefetchScalarGridSpec(
                num_scalar_prefetch=0,
                grid=(B, n_t),
                in_specs=[
                    pl.BlockSpec(memory_space=pl.ANY),       # x stays in HBM
                    w_spec,                                  # resident bf16 weight
                    pl.BlockSpec((1, H), lambda b, t: (0, 0)),
                    pl.BlockSpec((1, H), lambda b, t: (0, 0)),
                    pl.BlockSpec((1, H), lambda b, t: (0, 0)),
                ],
                out_specs=pl.BlockSpec((1, t_tile, H), lambda b, t: (b, t, 0)),
                scratch_shapes=[
                    pltpu.VMEM((2, N, H), x.dtype),          # double-buffered window
                    pltpu.SemaphoreType.DMA((2,)),
                ],
            ),
            # b-axis parallel (v7x megacore load balance); t-axis arbitrary so
            # the cross-step window prefetch stays sequential within a row.
            compiler_params=pltpu.CompilerParams(
                dimension_semantics=("parallel", "arbitrary"),
                vmem_limit_bytes=vmem_limit),
        )

    try:
        return build(single_buffer_weight=True)(x, w_blocks, bias, gamma, beta)
    except Exception:
        # pipeline_mode=pl.Buffered(1) not accepted by this JAX build: fall
        # back to the default (double-buffered) resident weight.
        return build(single_buffer_weight=False)(x, w_blocks, bias, gamma, beta)


# ----------------------------------------------------------------------------
# Parameters + compact grouped packing of the conv weight
# ----------------------------------------------------------------------------
def make_params(key, hidden, ksize, groups):
    gs = hidden // groups
    k1, k2, k3, k4 = jax.random.split(key, 4)
    # PyTorch Conv1d weight layout: (out_channels, in_channels/groups, K)
    w_conv = jax.random.normal(k1, (hidden, gs, ksize), jnp.float32) * 0.05
    bias = jax.random.normal(k2, (1, hidden), jnp.float32) * 0.05
    gamma = 1.0 + 0.1 * jax.random.normal(k3, (1, hidden), jnp.float32)
    beta = 0.1 * jax.random.normal(k4, (1, hidden), jnp.float32)
    return w_conv, bias, gamma, beta


def pack_conv_weight(w_conv, groups, block_lanes=128):
    """(O, I/G, K) torch layout -> compact grouped weight (NB, K*BW, BW).

    Groups are packed into 128-lane blocks (BW = max(group_size, 128)); within
    a block the weight is block-diagonal over its groups.  Row index of block
    nb is k*BW + ci_local, column is co_local.
    """
    H, gs, K = w_conv.shape
    assert H == groups * gs
    if gs >= block_lanes:
        assert gs % block_lanes == 0
        BW = gs
    else:
        assert block_lanes % gs == 0
        BW = block_lanes
    assert H % BW == 0
    NB = H // BW
    gpb = BW // gs                              # groups per lane block
    wc = np.asarray(w_conv, np.float32)
    W = np.zeros((NB, K, BW, BW), np.float32)   # [nb, k, ci_local, co_local]
    for nb in range(NB):
        for j in range(gpb):
            g = nb * gpb + j
            sl = slice(j * gs, (j + 1) * gs)
            # (gs_out, gs_in, K) -> (K, ci, co)
            W[nb, :, sl, sl] = np.transpose(wc[g * gs:(g + 1) * gs], (2, 1, 0))
    return jnp.asarray(W.reshape(NB, K * BW, BW))


# ----------------------------------------------------------------------------
# References
# ----------------------------------------------------------------------------
def mirrored_reference(x, w_blocks, bias, gamma, beta, ksize):
    """Plain-JAX mirror of the kernel math (same bf16 taps / compact weight)."""
    B, T, H = x.shape
    NB, KBW, BW = w_blocks.shape
    K = ksize
    pad = K // 2
    xp = jnp.pad(x, ((0, 0), (pad, pad), (0, 0)))
    acc = jnp.zeros((B, T, H), jnp.float32)
    for k in range(K):
        tap = xp[:, k:k + T, :].astype(jnp.bfloat16)
        parts = [jnp.einsum("btc,cd->btd", tap[:, :, nb * BW:(nb + 1) * BW],
                            w_blocks[nb, k * BW:(k + 1) * BW, :],
                            preferred_element_type=jnp.float32)
                 for nb in range(NB)]
        acc = acc + (parts[0] if NB == 1 else jnp.concatenate(parts, axis=-1))
    y = _gelu(acc + bias)
    y = x + y
    mean = jnp.mean(y, axis=-1, keepdims=True)
    yc = y - mean
    var = jnp.mean(yc * yc, axis=-1, keepdims=True)
    return yc * jax.lax.rsqrt(var + 1e-5) * gamma + beta


def grouped_conv_reference(x, w_conv, bias, gamma, beta, groups):
    """Cross-check against an actual grouped conv with exact-erf GELU."""
    pad = w_conv.shape[-1] // 2
    lhs = jnp.transpose(x, (0, 2, 1)).astype(jnp.bfloat16)       # (B, H, T)
    rhs = w_conv.astype(jnp.bfloat16)                            # (O, I/G, K)
    y = jax.lax.conv_general_dilated(
        lhs, rhs, window_strides=(1,), padding=[(pad, pad)],
        dimension_numbers=("NCH", "OIH", "NCH"),
        feature_group_count=groups,
        preferred_element_type=jnp.float32)                      # (B, H, T+1)
    y = jnp.transpose(y[:, :, :-1], (0, 2, 1)) + bias            # [:, :, :-1]
    y = 0.5 * y * (1.0 + jax.lax.erf(y * _INV_SQRT2))
    y = x + y
    mean = jnp.mean(y, axis=-1, keepdims=True)
    yc = y - mean
    var = jnp.mean(yc * yc, axis=-1, keepdims=True)
    return yc * jax.lax.rsqrt(var + 1e-5) * gamma + beta


if __name__ == "__main__":
    # Small shapes consistent with the module's forward (scaled-down
    # enc_hidden_dim / PCE_kernel_size / PCE_groups).  T is split into 3 time
    # tiles so the first / interior / last halo paths and the double-buffered
    # prefetch are all exercised.
    B, T, H = 2, 192, 128       # enc_hidden_dim -> 128
    K, G = 8, 4                 # PCE_kernel_size -> 8, PCE_groups -> 4
    TT = 64                     # time tile

    key = jax.random.PRNGKey(0)
    kx, kp = jax.random.split(key)
    x = jax.random.normal(kx, (B, T, H), jnp.float32)
    w_conv, bias, gamma, beta = make_params(kp, H, K, G)
    w_blocks = pack_conv_weight(w_conv, G).astype(jnp.bfloat16)

    out = encoder_forward(x, w_blocks, bias, gamma, beta, ksize=K, t_tile=TT)
    out = jax.block_until_ready(out)
    assert out.shape == (B, T, H)

    # Tight structural check (same bf16 tap / compact-weight math as kernel).
    ref_a = mirrored_reference(x, w_blocks, bias, gamma, beta, K)
    assert jnp.allclose(out, ref_a, atol=2e-3, rtol=2e-3), \
        "mismatch vs mirrored-math reference"

    # Semantic cross-check vs an actual grouped Conv1d (looser, bf16-tolerant).
    ref_b = grouped_conv_reference(x, w_conv, bias, gamma, beta, G)
    assert jnp.allclose(out, ref_b, atol=3e-2, rtol=3e-2), \
        "mismatch vs grouped-conv reference"

    print("KERNEL_OK")
</pallas_src>

<mosaic_0001>
module attributes {stable_mosaic.version = 11 : i64} {
  func.func @_encoder_kernel(%arg0: i32, %arg1: i32, %arg2: memref<2x192x128xf32, #tpu.memory_space<any>>, %arg3: memref<1x1024x128xbf16, #tpu.memory_space<vmem>>, %arg4: memref<1x128xf32, #tpu.memory_space<vmem>>, %arg5: memref<1x128xf32, #tpu.memory_space<vmem>>, %arg6: memref<1x128xf32, #tpu.memory_space<vmem>>, %arg7: memref<1x64x128xf32, #tpu.memory_space<vmem>>, %arg8: memref<2x80x128xf32, #tpu.memory_space<vmem>>, %arg9: memref<2x!tpu.dma_semaphore, #tpu.memory_space<semaphore_mem>>) attributes {dimension_semantics = [#tpu.dimension_semantics<parallel>, #tpu.dimension_semantics<arbitrary>], iteration_bounds = array<i64: 2, 3>, scalar_prefetch = 0 : i64, scratch_operands = 2 : i64, tpu.core_type = #tpu.core_type<tc>, window_params = [{}, {pipeline_mode = #tpu.pipeline_mode<synchronous>, transform_indices = @transform_1, window_bounds = array<i64: 1, 1024, 128>}, {pipeline_mode = #tpu.pipeline_mode<synchronous>, transform_indices = @transform_2, window_bounds = array<i64: 1, 128>}, {pipeline_mode = #tpu.pipeline_mode<synchronous>, transform_indices = @transform_3, window_bounds = array<i64: 1, 128>}, {pipeline_mode = #tpu.pipeline_mode<synchronous>, transform_indices = @transform_4, window_bounds = array<i64: 1, 128>}, {transform_indices = @transform_5, window_bounds = array<i64: 1, 64, 128>}]} {
    %c2_i32 = arith.constant 2 : i32
    %c0_i32 = arith.constant 0 : i32
    %0 = arith.cmpi eq, %c2_i32, %c0_i32 : i32
    %c1_i32 = arith.constant 1 : i32
    %1 = arith.select %0, %c1_i32, %c2_i32 : i32
    %2 = arith.remsi %arg1, %1 : i32
    %c0_i32_0 = arith.constant 0 : i32
    %3 = arith.cmpi ne, %2, %c0_i32_0 : i32
    %c0_i32_1 = arith.constant 0 : i32
    %4 = arith.cmpi slt, %2, %c0_i32_1 : i32
    %c0_i32_2 = arith.constant 0 : i32
    %5 = arith.cmpi slt, %1, %c0_i32_2 : i32
    %6 = arith.xori %4, %5 : i1
    %7 = arith.andi %6, %3 : i1
    %8 = arith.addi %2, %1 : i32
    %9 = arith.select %7, %8, %2 : i32
    %c0_i32_3 = arith.constant 0 : i32
    %10 = arith.cmpi eq, %arg1, %c0_i32_3 : i32
    %11 = arith.extui %10 : i1 to i32
    %c0_i32_4 = arith.constant 0 : i32
    %12 = arith.cmpi ne, %11, %c0_i32_4 : i32
    scf.if %12 {
      %c0_i32_76 = arith.constant 0 : i32
      %173 = arith.cmpi eq, %arg1, %c0_i32_76 : i32
      %c2_i32_77 = arith.constant 2 : i32
      %174 = arith.cmpi eq, %arg1, %c2_i32_77 : i32
      %c64_i32_78 = arith.constant 64 : i32
      %175 = arith.muli %arg1, %c64_i32_78 : i32
      %c8_i32_79 = arith.constant 8 : i32
      %176 = arith.subi %175, %c8_i32_79 : i32
      %c0_i32_80 = arith.constant 0 : i32
      %177 = arith.maxsi %176, %c0_i32_80 : i32
      %178 = tpu.assume_multiple %177, 8 : i32
      %c8_i32_81 = arith.constant 8 : i32
      %c0_i32_82 = arith.constant 0 : i32
      %179 = arith.select %173, %c8_i32_81, %c0_i32_82 : i32
      %180 = tpu.assume_multiple %179, 8 : i32
      %181 = arith.andi %173, %174 : i1
      %182 = arith.extui %181 : i1 to i32
      %c0_i32_83 = arith.constant 0 : i32
      %183 = arith.cmpi ne, %182, %c0_i32_83 : i32
      scf.if %183 {
        %c0_i32_88 = arith.constant 0 : i32
        %192 = tpu.memref_slice %arg2[%arg0, %178, %c0_i32_88] : memref<2x192x128xf32, #tpu.memory_space<any>> -> memref<1x64x128xf32, #tpu.memory_space<any>>
        %193 = tpu.memref_squeeze %192 : memref<1x64x128xf32, #tpu.memory_space<any>> -> memref<64x128xf32, #tpu.memory_space<any>>
        %c0_i32_89 = arith.constant 0 : i32
        %194 = tpu.memref_slice %arg8[%9, %180, %c0_i32_89] : memref<2x80x128xf32, #tpu.memory_space<vmem>> -> memref<1x64x128xf32, #tpu.memory_space<vmem>>
        %195 = tpu.memref_squeeze %194 : memref<1x64x128xf32, #tpu.memory_space<vmem>> -> memref<64x128xf32, #tpu.memory_space<vmem>>
        %196 = tpu.memref_slice %arg9[%9] : memref<2x!tpu.dma_semaphore, #tpu.memory_space<semaphore_mem>> -> memref<1x!tpu.dma_semaphore, #tpu.memory_space<semaphore_mem>>
        %197 = tpu.memref_squeeze %196 : memref<1x!tpu.dma_semaphore, #tpu.memory_space<semaphore_mem>> -> memref<!tpu.dma_semaphore, #tpu.memory_space<semaphore_mem>>
        tpu.enqueue_dma source(%193 : memref<64x128xf32, #tpu.memory_space<any>>) target(%195 : memref<64x128xf32, #tpu.memory_space<vmem>>) target_semaphore(%197 : memref<!tpu.dma_semaphore, #tpu.memory_space<semaphore_mem>>)
      } else {
      }
      %184 = arith.xori %173, %174 : i1
      %185 = arith.extui %184 : i1 to i32
      %c0_i32_84 = arith.constant 0 : i32
      %186 = arith.cmpi ne, %185, %c0_i32_84 : i32
      scf.if %186 {
        %c0_i32_88 = arith.constant 0 : i32
        %192 = tpu.memref_slice %arg2[%arg0, %178, %c0_i32_88] : memref<2x192x128xf32, #tpu.memory_space<any>> -> memref<1x72x128xf32, #tpu.memory_space<any>>
        %193 = tpu.memref_squeeze %192 : memref<1x72x128xf32, #tpu.memory_space<any>> -> memref<72x128xf32, #tpu.memory_space<any>>
        %c0_i32_89 = arith.constant 0 : i32
        %194 = tpu.memref_slice %arg8[%9, %180, %c0_i32_89] : memref<2x80x128xf32, #tpu.memory_space<vmem>> -> memref<1x72x128xf32, #tpu.memory_space<vmem>>
        %195 = tpu.memref_squeeze %194 : memref<1x72x128xf32, #tpu.memory_space<vmem>> -> memref<72x128xf32, #tpu.memory_space<vmem>>
        %196 = tpu.memref_slice %arg9[%9] : memref<2x!tpu.dma_semaphore, #tpu.memory_space<semaphore_mem>> -> memref<1x!tpu.dma_semaphore, #tpu.memory_space<semaphore_mem>>
        %197 = tpu.memref_squeeze %196 : memref<1x!tpu.dma_semaphore, #tpu.memory_space<semaphore_mem>> -> memref<!tpu.dma_semaphore, #tpu.memory_space<semaphore_mem>>
        tpu.enqueue_dma source(%193 : memref<72x128xf32, #tpu.memory_space<any>>) target(%195 : memref<72x128xf32, #tpu.memory_space<vmem>>) target_semaphore(%197 : memref<!tpu.dma_semaphore, #tpu.memory_space<semaphore_mem>>)
      } else {
      }
      %true_85 = arith.constant true
      %187 = arith.xori %173, %true_85 : i1
      %true_86 = arith.constant true
      %188 = arith.xori %174, %true_86 : i1
      %189 = arith.andi %187, %188 : i1
      %190 = arith.extui %189 : i1 to i32
      %c0_i32_87 = arith.constant 0 : i32
      %191 = arith.cmpi ne, %190, %c0_i32_87 : i32
      scf.if %191 {
        %c0_i32_88 = arith.constant 0 : i32
        %192 = tpu.memref_slice %arg2[%arg0, %178, %c0_i32_88] : memref<2x192x128xf32, #tpu.memory_space<any>> -> memref<1x80x128xf32, #tpu.memory_space<any>>
        %193 = tpu.memref_squeeze %192 : memref<1x80x128xf32, #tpu.memory_space<any>> -> memref<80x128xf32, #tpu.memory_space<any>>
        %c0_i32_89 = arith.constant 0 : i32
        %194 = tpu.memref_slice %arg8[%9, %180, %c0_i32_89] : memref<2x80x128xf32, #tpu.memory_space<vmem>> -> memref<1x80x128xf32, #tpu.memory_space<vmem>>
        %195 = tpu.memref_squeeze %194 : memref<1x80x128xf32, #tpu.memory_space<vmem>> -> memref<80x128xf32, #tpu.memory_space<vmem>>
        %196 = tpu.memref_slice %arg9[%9] : memref<2x!tpu.dma_semaphore, #tpu.memory_space<semaphore_mem>> -> memref<1x!tpu.dma_semaphore, #tpu.memory_space<semaphore_mem>>
        %197 = tpu.memref_squeeze %196 : memref<1x!tpu.dma_semaphore, #tpu.memory_space<semaphore_mem>> -> memref<!tpu.dma_semaphore, #tpu.memory_space<semaphore_mem>>
        tpu.enqueue_dma source(%193 : memref<80x128xf32, #tpu.memory_space<any>>) target(%195 : memref<80x128xf32, #tpu.memory_space<vmem>>) target_semaphore(%197 : memref<!tpu.dma_semaphore, #tpu.memory_space<semaphore_mem>>)
      } else {
      }
    } else {
    }
    %c1_i32_5 = arith.constant 1 : i32
    %13 = arith.addi %arg1, %c1_i32_5 : i32
    %c3_i32 = arith.constant 3 : i32
    %14 = arith.cmpi slt, %13, %c3_i32 : i32
    %15 = arith.extui %14 : i1 to i32
    %c0_i32_6 = arith.constant 0 : i32
    %16 = arith.cmpi ne, %15, %c0_i32_6 : i32
    scf.if %16 {
      %c1_i32_76 = arith.constant 1 : i32
      %173 = arith.addi %arg1, %c1_i32_76 : i32
      %c1_i32_77 = arith.constant 1 : i32
      %174 = arith.subi %c1_i32_77, %9 : i32
      %c0_i32_78 = arith.constant 0 : i32
      %175 = arith.cmpi eq, %173, %c0_i32_78 : i32
      %c2_i32_79 = arith.constant 2 : i32
      %176 = arith.cmpi eq, %173, %c2_i32_79 : i32
      %c64_i32_80 = arith.constant 64 : i32
      %177 = arith.muli %173, %c64_i32_80 : i32
      %c8_i32_81 = arith.constant 8 : i32
      %178 = arith.subi %177, %c8_i32_81 : i32
      %c0_i32_82 = arith.constant 0 : i32
      %179 = arith.maxsi %178, %c0_i32_82 : i32
      %180 = tpu.assume_multiple %179, 8 : i32
      %c8_i32_83 = arith.constant 8 : i32
      %c0_i32_84 = arith.constant 0 : i32
      %181 = arith.select %175, %c8_i32_83, %c0_i32_84 : i32
      %182 = tpu.assume_multiple %181, 8 : i32
      %183 = arith.andi %175, %176 : i1
      %184 = arith.extui %183 : i1 to i32
      %c0_i32_85 = arith.constant 0 : i32
      %185 = arith.cmpi ne, %184, %c0_i32_85 : i32
      scf.if %185 {
        %c0_i32_90 = arith.constant 0 : i32
        %194 = tpu.memref_slice %arg2[%arg0, %180, %c0_i32_90] : memref<2x192x128xf32, #tpu.memory_space<any>> -> memref<1x64x128xf32, #tpu.memory_space<any>>
        %195 = tpu.memref_squeeze %194 : memref<1x64x128xf32, #tpu.memory_space<any>> -> memref<64x128xf32, #tpu.memory_space<any>>
        %c0_i32_91 = arith.constant 0 : i32
        %196 = tpu.memref_slice %arg8[%174, %182, %c0_i32_91] : memref<2x80x128xf32, #tpu.memory_space<vmem>> -> memref<1x64x128xf32, #tpu.memory_space<vmem>>
        %197 = tpu.memref_squeeze %196 : memref<1x64x128xf32, #tpu.memory_space<vmem>> -> memref<64x128xf32, #tpu.memory_space<vmem>>
        %198 = tpu.memref_slice %arg9[%174] : memref<2x!tpu.dma_semaphore, #tpu.memory_space<semaphore_mem>> -> memref<1x!tpu.dma_semaphore, #tpu.memory_space<semaphore_mem>>
        %199 = tpu.memref_squeeze %198 : memref<1x!tpu.dma_semaphore, #tpu.memory_space<semaphore_mem>> -> memref<!tpu.dma_semaphore, #tpu.memory_space<semaphore_mem>>
        tpu.enqueue_dma source(%195 : memref<64x128xf32, #tpu.memory_space<any>>) target(%197 : memref<64x128xf32, #tpu.memory_space<vmem>>) target_semaphore(%199 : memref<!tpu.dma_semaphore, #tpu.memory_space<semaphore_mem>>)
      } else {
      }
      %186 = arith.xori %175, %176 : i1
      %187 = arith.extui %186 : i1 to i32
      %c0_i32_86 = arith.constant 0 : i32
      %188 = arith.cmpi ne, %187, %c0_i32_86 : i32
      scf.if %188 {
        %c0_i32_90 = arith.constant 0 : i32
        %194 = tpu.memref_slice %arg2[%arg0, %180, %c0_i32_90] : memref<2x192x128xf32, #tpu.memory_space<any>> -> memref<1x72x128xf32, #tpu.memory_space<any>>
        %195 = tpu.memref_squeeze %194 : memref<1x72x128xf32, #tpu.memory_space<any>> -> memref<72x128xf32, #tpu.memory_space<any>>
        %c0_i32_91 = arith.constant 0 : i32
        %196 = tpu.memref_slice %arg8[%174, %182, %c0_i32_91] : memref<2x80x128xf32, #tpu.memory_space<vmem>> -> memref<1x72x128xf32, #tpu.memory_space<vmem>>
        %197 = tpu.memref_squeeze %196 : memref<1x72x128xf32, #tpu.memory_space<vmem>> -> memref<72x128xf32, #tpu.memory_space<vmem>>
        %198 = tpu.memref_slice %arg9[%174] : memref<2x!tpu.dma_semaphore, #tpu.memory_space<semaphore_mem>> -> memref<1x!tpu.dma_semaphore, #tpu.memory_space<semaphore_mem>>
        %199 = tpu.memref_squeeze %198 : memref<1x!tpu.dma_semaphore, #tpu.memory_space<semaphore_mem>> -> memref<!tpu.dma_semaphore, #tpu.memory_space<semaphore_mem>>
        tpu.enqueue_dma source(%195 : memref<72x128xf32, #tpu.memory_space<any>>) target(%197 : memref<72x128xf32, #tpu.memory_space<vmem>>) target_semaphore(%199 : memref<!tpu.dma_semaphore, #tpu.memory_space<semaphore_mem>>)
      } else {
      }
      %true_87 = arith.constant true
      %189 = arith.xori %175, %true_87 : i1
      %true_88 = arith.constant true
      %190 = arith.xori %176, %true_88 : i1
      %191 = arith.andi %189, %190 : i1
      %192 = arith.extui %191 : i1 to i32
      %c0_i32_89 = arith.constant 0 : i32
      %193 = arith.cmpi ne, %192, %c0_i32_89 : i32
      scf.if %193 {
        %c0_i32_90 = arith.constant 0 : i32
        %194 = tpu.memref_slice %arg2[%arg0, %180, %c0_i32_90] : memref<2x192x128xf32, #tpu.memory_space<any>> -> memref<1x80x128xf32, #tpu.memory_space<any>>
        %195 = tpu.memref_squeeze %194 : memref<1x80x128xf32, #tpu.memory_space<any>> -> memref<80x128xf32, #tpu.memory_space<any>>
        %c0_i32_91 = arith.constant 0 : i32
        %196 = tpu.memref_slice %arg8[%174, %182, %c0_i32_91] : memref<2x80x128xf32, #tpu.memory_space<vmem>> -> memref<1x80x128xf32, #tpu.memory_space<vmem>>
        %197 = tpu.memref_squeeze %196 : memref<1x80x128xf32, #tpu.memory_space<vmem>> -> memref<80x128xf32, #tpu.memory_space<vmem>>
        %198 = tpu.memref_slice %arg9[%174] : memref<2x!tpu.dma_semaphore, #tpu.memory_space<semaphore_mem>> -> memref<1x!tpu.dma_semaphore, #tpu.memory_space<semaphore_mem>>
        %199 = tpu.memref_squeeze %198 : memref<1x!tpu.dma_semaphore, #tpu.memory_space<semaphore_mem>> -> memref<!tpu.dma_semaphore, #tpu.memory_space<semaphore_mem>>
        tpu.enqueue_dma source(%195 : memref<80x128xf32, #tpu.memory_space<any>>) target(%197 : memref<80x128xf32, #tpu.memory_space<vmem>>) target_semaphore(%199 : memref<!tpu.dma_semaphore, #tpu.memory_space<semaphore_mem>>)
      } else {
      }
    } else {
    }
    %c0_i32_7 = arith.constant 0 : i32
    %17 = arith.cmpi eq, %arg1, %c0_i32_7 : i32
    %c2_i32_8 = arith.constant 2 : i32
    %18 = arith.cmpi eq, %arg1, %c2_i32_8 : i32
    %c64_i32 = arith.constant 64 : i32
    %19 = arith.muli %arg1, %c64_i32 : i32
    %c8_i32 = arith.constant 8 : i32
    %20 = arith.subi %19, %c8_i32 : i32
    %c0_i32_9 = arith.constant 0 : i32
    %21 = arith.maxsi %20, %c0_i32_9 : i32
    %22 = tpu.assume_multiple %21, 8 : i32
    %c8_i32_10 = arith.constant 8 : i32
    %c0_i32_11 = arith.constant 0 : i32
    %23 = arith.select %17, %c8_i32_10, %c0_i32_11 : i32
    %24 = tpu.assume_multiple %23, 8 : i32
    %25 = arith.andi %17, %18 : i1
    %26 = arith.extui %25 : i1 to i32
    %c0_i32_12 = arith.constant 0 : i32
    %27 = arith.cmpi ne, %26, %c0_i32_12 : i32
    scf.if %27 {
      %c0_i32_76 = arith.constant 0 : i32
      %173 = tpu.memref_slice %arg2[%arg0, %22, %c0_i32_76] : memref<2x192x128xf32, #tpu.memory_space<any>> -> memref<1x64x128xf32, #tpu.memory_space<any>>
      %174 = tpu.memref_squeeze %173 : memref<1x64x128xf32, #tpu.memory_space<any>> -> memref<64x128xf32, #tpu.memory_space<any>>
      %c0_i32_77 = arith.constant 0 : i32
      %175 = tpu.memref_slice %arg8[%9, %24, %c0_i32_77] : memref<2x80x128xf32, #tpu.memory_space<vmem>> -> memref<1x64x128xf32, #tpu.memory_space<vmem>>
      %176 = tpu.memref_squeeze %175 : memref<1x64x128xf32, #tpu.memory_space<vmem>> -> memref<64x128xf32, #tpu.memory_space<vmem>>
      %177 = tpu.memref_slice %arg9[%9] : memref<2x!tpu.dma_semaphore, #tpu.memory_space<semaphore_mem>> -> memref<1x!tpu.dma_semaphore, #tpu.memory_space<semaphore_mem>>
      %178 = tpu.memref_squeeze %177 : memref<1x!tpu.dma_semaphore, #tpu.memory_space<semaphore_mem>> -> memref<!tpu.dma_semaphore, #tpu.memory_space<semaphore_mem>>
      tpu.wait_dma2 semaphore(%178 : memref<!tpu.dma_semaphore, #tpu.memory_space<semaphore_mem>>) src(%174 : memref<64x128xf32, #tpu.memory_space<any>>) dst(%176 : memref<64x128xf32, #tpu.memory_space<vmem>>)
    } else {
    }
    %28 = arith.xori %17, %18 : i1
    %29 = arith.extui %28 : i1 to i32
    %c0_i32_13 = arith.constant 0 : i32
    %30 = arith.cmpi ne, %29, %c0_i32_13 : i32
    scf.if %30 {
      %c0_i32_76 = arith.constant 0 : i32
      %173 = tpu.memref_slice %arg2[%arg0, %22, %c0_i32_76] : memref<2x192x128xf32, #tpu.memory_space<any>> -> memref<1x72x128xf32, #tpu.memory_space<any>>
      %174 = tpu.memref_squeeze %173 : memref<1x72x128xf32, #tpu.memory_space<any>> -> memref<72x128xf32, #tpu.memory_space<any>>
      %c0_i32_77 = arith.constant 0 : i32
      %175 = tpu.memref_slice %arg8[%9, %24, %c0_i32_77] : memref<2x80x128xf32, #tpu.memory_space<vmem>> -> memref<1x72x128xf32, #tpu.memory_space<vmem>>
      %176 = tpu.memref_squeeze %175 : memref<1x72x128xf32, #tpu.memory_space<vmem>> -> memref<72x128xf32, #tpu.memory_space<vmem>>
      %177 = tpu.memref_slice %arg9[%9] : memref<2x!tpu.dma_semaphore, #tpu.memory_space<semaphore_mem>> -> memref<1x!tpu.dma_semaphore, #tpu.memory_space<semaphore_mem>>
      %178 = tpu.memref_squeeze %177 : memref<1x!tpu.dma_semaphore, #tpu.memory_space<semaphore_mem>> -> memref<!tpu.dma_semaphore, #tpu.memory_space<semaphore_mem>>
      tpu.wait_dma2 semaphore(%178 : memref<!tpu.dma_semaphore, #tpu.memory_space<semaphore_mem>>) src(%174 : memref<72x128xf32, #tpu.memory_space<any>>) dst(%176 : memref<72x128xf32, #tpu.memory_space<vmem>>)
    } else {
    }
    %true = arith.constant true
    %31 = arith.xori %17, %true : i1
    %true_14 = arith.constant true
    %32 = arith.xori %18, %true_14 : i1
    %33 = arith.andi %31, %32 : i1
    %34 = arith.extui %33 : i1 to i32
    %c0_i32_15 = arith.constant 0 : i32
    %35 = arith.cmpi ne, %34, %c0_i32_15 : i32
    scf.if %35 {
      %c0_i32_76 = arith.constant 0 : i32
      %173 = tpu.memref_slice %arg2[%arg0, %22, %c0_i32_76] : memref<2x192x128xf32, #tpu.memory_space<any>> -> memref<1x80x128xf32, #tpu.memory_space<any>>
      %174 = tpu.memref_squeeze %173 : memref<1x80x128xf32, #tpu.memory_space<any>> -> memref<80x128xf32, #tpu.memory_space<any>>
      %c0_i32_77 = arith.constant 0 : i32
      %175 = tpu.memref_slice %arg8[%9, %24, %c0_i32_77] : memref<2x80x128xf32, #tpu.memory_space<vmem>> -> memref<1x80x128xf32, #tpu.memory_space<vmem>>
      %176 = tpu.memref_squeeze %175 : memref<1x80x128xf32, #tpu.memory_space<vmem>> -> memref<80x128xf32, #tpu.memory_space<vmem>>
      %177 = tpu.memref_slice %arg9[%9] : memref<2x!tpu.dma_semaphore, #tpu.memory_space<semaphore_mem>> -> memref<1x!tpu.dma_semaphore, #tpu.memory_space<semaphore_mem>>
      %178 = tpu.memref_squeeze %177 : memref<1x!tpu.dma_semaphore, #tpu.memory_space<semaphore_mem>> -> memref<!tpu.dma_semaphore, #tpu.memory_space<semaphore_mem>>
      tpu.wait_dma2 semaphore(%178 : memref<!tpu.dma_semaphore, #tpu.memory_space<semaphore_mem>>) src(%174 : memref<80x128xf32, #tpu.memory_space<any>>) dst(%176 : memref<80x128xf32, #tpu.memory_space<vmem>>)
    } else {
    }
    %c0_i32_16 = arith.constant 0 : i32
    %36 = arith.cmpi eq, %arg1, %c0_i32_16 : i32
    %c2_i32_17 = arith.constant 2 : i32
    %37 = arith.cmpi eq, %arg1, %c2_i32_17 : i32
    %38 = arith.extui %36 : i1 to i32
    %c0_i32_18 = arith.constant 0 : i32
    %39 = arith.cmpi ne, %38, %c0_i32_18 : i32
    scf.if %39 {
      %cst_76 = arith.constant 0.000000e+00 : f32
      %173 = vector.broadcast %cst_76 : f32 to vector<8x128xf32>
      %174 = arith.index_cast %9 : i32 to index
      %c0_77 = arith.constant 0 : index
      %c0_78 = arith.constant 0 : index
      %175 = vector.load %arg8[%174, %c0_77, %c0_78] : memref<2x80x128xf32, #tpu.memory_space<vmem>>, vector<1x8x128xf32>
      %176 = vector.shape_cast %175 : vector<1x8x128xf32> to vector<8x128xf32>
      %177 = vector.shape_cast %173 : vector<8x128xf32> to vector<1x8x128xf32>
      tpu.vector_store %arg8[%174, %c0_77, %c0_78], %177 {strides = array<i32>} : memref<2x80x128xf32, #tpu.memory_space<vmem>>, vector<1x8x128xf32>,
    } else {
    }
    %40 = arith.extui %37 : i1 to i32
    %c0_i32_19 = arith.constant 0 : i32
    %41 = arith.cmpi ne, %40, %c0_i32_19 : i32
    scf.if %41 {
      %cst_76 = arith.constant 0.000000e+00 : f32
      %173 = vector.broadcast %cst_76 : f32 to vector<8x128xf32>
      %174 = arith.index_cast %9 : i32 to index
      %c72 = arith.constant 72 : index
      %c0_77 = arith.constant 0 : index
      %175 = vector.load %arg8[%174, %c72, %c0_77] : memref<2x80x128xf32, #tpu.memory_space<vmem>>, vector<1x8x128xf32>
      %176 = vector.shape_cast %175 : vector<1x8x128xf32> to vector<8x128xf32>
      %177 = vector.shape_cast %173 : vector<8x128xf32> to vector<1x8x128xf32>
      tpu.vector_store %arg8[%174, %c72, %c0_77], %177 {strides = array<i32>} : memref<2x80x128xf32, #tpu.memory_space<vmem>>, vector<1x8x128xf32>,
    } else {
    }
    %42 = arith.index_cast %9 : i32 to index
    %c0 = arith.constant 0 : index
    %c0_20 = arith.constant 0 : index
    %43 = vector.load %arg8[%42, %c0, %c0_20] : memref<2x80x128xf32, #tpu.memory_space<vmem>>, vector<1x80x128xf32>
    %44 = vector.shape_cast %43 : vector<1x80x128xf32> to vector<80x128xf32>
    %cst = arith.constant 0.000000e+00 : f32
    %45 = vector.broadcast %cst : f32 to vector<64x128xf32>
    %c76_i32 = arith.constant 76 : i32
    %46 = tpu.dynamic_rotate %44 by %c76_i32 dim 0 : vector<80x128xf32>, i32 -> vector<80x128xf32>
    %47 = vector.extract_strided_slice %46 {offsets = [0, 0], sizes = [64, 128], strides = [1, 1]} : vector<80x128xf32> to vector<64x128xf32>
    %48 = arith.truncf %47 : vector<64x128xf32> to vector<64x128xbf16>
    %c0_21 = arith.constant 0 : index
    %c0_22 = arith.constant 0 : index
    %c0_23 = arith.constant 0 : index
    %49 = vector.load %arg3[%c0_21, %c0_22, %c0_23] : memref<1x1024x128xbf16, #tpu.memory_space<vmem>>, vector<1x128x128xbf16>
    %50 = vector.shape_cast %49 : vector<1x128x128xbf16> to vector<128x128xbf16>
    %cst_24 = arith.constant dense<0.000000e+00> : vector<64x128xf32>
    %51 = tpu.matmul %48, %50, %cst_24 {dimension_numbers = #tpu.dot_dimension_numbers<[1], [0], [0], [1], [0, 0, 1, 1], [], []>} : vector<64x128xbf16>, vector<128x128xbf16>, vector<64x128xf32> -> vector<64x128xf32>
    %52 = arith.addf %45, %51 : vector<64x128xf32>
    %c75_i32 = arith.constant 75 : i32
    %53 = tpu.dynamic_rotate %44 by %c75_i32 dim 0 : vector<80x128xf32>, i32 -> vector<80x128xf32>
    %54 = vector.extract_strided_slice %53 {offsets = [0, 0], sizes = [64, 128], strides = [1, 1]} : vector<80x128xf32> to vector<64x128xf32>
    %55 = arith.truncf %54 : vector<64x128xf32> to vector<64x128xbf16>
    %c0_25 = arith.constant 0 : index
    %c128 = arith.constant 128 : index
    %c0_26 = arith.constant 0 : index
    %56 = vector.load %arg3[%c0_25, %c128, %c0_26] : memref<1x1024x128xbf16, #tpu.memory_space<vmem>>, vector<1x128x128xbf16>
    %57 = vector.shape_cast %56 : vector<1x128x128xbf16> to vector<128x128xbf16>
    %cst_27 = arith.constant dense<0.000000e+00> : vector<64x128xf32>
    %58 = tpu.matmul %55, %57, %cst_27 {dimension_numbers = #tpu.dot_dimension_numbers<[1], [0], [0], [1], [0, 0, 1, 1], [], []>} : vector<64x128xbf16>, vector<128x128xbf16>, vector<64x128xf32> -> vector<64x128xf32>
    %59 = arith.addf %52, %58 : vector<64x128xf32>
    %c74_i32 = arith.constant 74 : i32
    %60 = tpu.dynamic_rotate %44 by %c74_i32 dim 0 : vector<80x128xf32>, i32 -> vector<80x128xf32>
    %61 = vector.extract_strided_slice %60 {offsets = [0, 0], sizes = [64, 128], strides = [1, 1]} : vector<80x128xf32> to vector<64x128xf32>
    %62 = arith.truncf %61 : vector<64x128xf32> to vector<64x128xbf16>
    %c0_28 = arith.constant 0 : index
    %c256 = arith.constant 256 : index
    %c0_29 = arith.constant 0 : index
    %63 = vector.load %arg3[%c0_28, %c256, %c0_29] : memref<1x1024x128xbf16, #tpu.memory_space<vmem>>, vector<1x128x128xbf16>
    %64 = vector.shape_cast %63 : vector<1x128x128xbf16> to vector<128x128xbf16>
    %cst_30 = arith.constant dense<0.000000e+00> : vector<64x128xf32>
    %65 = tpu.matmul %62, %64, %cst_30 {dimension_numbers = #tpu.dot_dimension_numbers<[1], [0], [0], [1], [0, 0, 1, 1], [], []>} : vector<64x128xbf16>, vector<128x128xbf16>, vector<64x128xf32> -> vector<64x128xf32>
    %66 = arith.addf %59, %65 : vector<64x128xf32>
    %c73_i32 = arith.constant 73 : i32
    %67 = tpu.dynamic_rotate %44 by %c73_i32 dim 0 : vector<80x128xf32>, i32 -> vector<80x128xf32>
    %68 = vector.extract_strided_slice %67 {offsets = [0, 0], sizes = [64, 128], strides = [1, 1]} : vector<80x128xf32> to vector<64x128xf32>
    %69 = arith.truncf %68 : vector<64x128xf32> to vector<64x128xbf16>
    %c0_31 = arith.constant 0 : index
    %c384 = arith.constant 384 : index
    %c0_32 = arith.constant 0 : index
    %70 = vector.load %arg3[%c0_31, %c384, %c0_32] : memref<1x1024x128xbf16, #tpu.memory_space<vmem>>, vector<1x128x128xbf16>
    %71 = vector.shape_cast %70 : vector<1x128x128xbf16> to vector<128x128xbf16>
    %cst_33 = arith.constant dense<0.000000e+00> : vector<64x128xf32>
    %72 = tpu.matmul %69, %71, %cst_33 {dimension_numbers = #tpu.dot_dimension_numbers<[1], [0], [0], [1], [0, 0, 1, 1], [], []>} : vector<64x128xbf16>, vector<128x128xbf16>, vector<64x128xf32> -> vector<64x128xf32>
    %73 = arith.addf %66, %72 : vector<64x128xf32>
    %c72_i32 = arith.constant 72 : i32
    %74 = tpu.dynamic_rotate %44 by %c72_i32 dim 0 : vector<80x128xf32>, i32 -> vector<80x128xf32>
    %75 = vector.extract_strided_slice %74 {offsets = [0, 0], sizes = [64, 128], strides = [1, 1]} : vector<80x128xf32> to vector<64x128xf32>
    %76 = arith.truncf %75 : vector<64x128xf32> to vector<64x128xbf16>
    %c0_34 = arith.constant 0 : index
    %c512 = arith.constant 512 : index
    %c0_35 = arith.constant 0 : index
    %77 = vector.load %arg3[%c0_34, %c512, %c0_35] : memref<1x1024x128xbf16, #tpu.memory_space<vmem>>, vector<1x128x128xbf16>
    %78 = vector.shape_cast %77 : vector<1x128x128xbf16> to vector<128x128xbf16>
    %cst_36 = arith.constant dense<0.000000e+00> : vector<64x128xf32>
    %79 = tpu.matmul %76, %78, %cst_36 {dimension_numbers = #tpu.dot_dimension_numbers<[1], [0], [0], [1], [0, 0, 1, 1], [], []>} : vector<64x128xbf16>, vector<128x128xbf16>, vector<64x128xf32> -> vector<64x128xf32>
    %80 = arith.addf %73, %79 : vector<64x128xf32>
    %c71_i32 = arith.constant 71 : i32
    %81 = tpu.dynamic_rotate %44 by %c71_i32 dim 0 : vector<80x128xf32>, i32 -> vector<80x128xf32>
    %82 = vector.extract_strided_slice %81 {offsets = [0, 0], sizes = [64, 128], strides = [1, 1]} : vector<80x128xf32> to vector<64x128xf32>
    %83 = arith.truncf %82 : vector<64x128xf32> to vector<64x128xbf16>
    %c0_37 = arith.constant 0 : index
    %c640 = arith.constant 640 : index
    %c0_38 = arith.constant 0 : index
    %84 = vector.load %arg3[%c0_37, %c640, %c0_38] : memref<1x1024x128xbf16, #tpu.memory_space<vmem>>, vector<1x128x128xbf16>
    %85 = vector.shape_cast %84 : vector<1x128x128xbf16> to vector<128x128xbf16>
    %cst_39 = arith.constant dense<0.000000e+00> : vector<64x128xf32>
    %86 = tpu.matmul %83, %85, %cst_39 {dimension_numbers = #tpu.dot_dimension_numbers<[1], [0], [0], [1], [0, 0, 1, 1], [], []>} : vector<64x128xbf16>, vector<128x128xbf16>, vector<64x128xf32> -> vector<64x128xf32>
    %87 = arith.addf %80, %86 : vector<64x128xf32>
    %c70_i32 = arith.constant 70 : i32
    %88 = tpu.dynamic_rotate %44 by %c70_i32 dim 0 : vector<80x128xf32>, i32 -> vector<80x128xf32>
    %89 = vector.extract_strided_slice %88 {offsets = [0, 0], sizes = [64, 128], strides = [1, 1]} : vector<80x128xf32> to vector<64x128xf32>
    %90 = arith.truncf %89 : vector<64x128xf32> to vector<64x128xbf16>
    %c0_40 = arith.constant 0 : index
    %c768 = arith.constant 768 : index
    %c0_41 = arith.constant 0 : index
    %91 = vector.load %arg3[%c0_40, %c768, %c0_41] : memref<1x1024x128xbf16, #tpu.memory_space<vmem>>, vector<1x128x128xbf16>
    %92 = vector.shape_cast %91 : vector<1x128x128xbf16> to vector<128x128xbf16>
    %cst_42 = arith.constant dense<0.000000e+00> : vector<64x128xf32>
    %93 = tpu.matmul %90, %92, %cst_42 {dimension_numbers = #tpu.dot_dimension_numbers<[1], [0], [0], [1], [0, 0, 1, 1], [], []>} : vector<64x128xbf16>, vector<128x128xbf16>, vector<64x128xf32> -> vector<64x128xf32>
    %94 = arith.addf %87, %93 : vector<64x128xf32>
    %c69_i32 = arith.constant 69 : i32
    %95 = tpu.dynamic_rotate %44 by %c69_i32 dim 0 : vector<80x128xf32>, i32 -> vector<80x128xf32>
    %96 = vector.extract_strided_slice %95 {offsets = [0, 0], sizes = [64, 128], strides = [1, 1]} : vector<80x128xf32> to vector<64x128xf32>
    %97 = arith.truncf %96 : vector<64x128xf32> to vector<64x128xbf16>
    %c0_43 = arith.constant 0 : index
    %c896 = arith.constant 896 : index
    %c0_44 = arith.constant 0 : index
    %98 = vector.load %arg3[%c0_43, %c896, %c0_44] : memref<1x1024x128xbf16, #tpu.memory_space<vmem>>, vector<1x128x128xbf16>
    %99 = vector.shape_cast %98 : vector<1x128x128xbf16> to vector<128x128xbf16>
    %cst_45 = arith.constant dense<0.000000e+00> : vector<64x128xf32>
    %100 = tpu.matmul %97, %99, %cst_45 {dimension_numbers = #tpu.dot_dimension_numbers<[1], [0], [0], [1], [0, 0, 1, 1], [], []>} : vector<64x128xbf16>, vector<128x128xbf16>, vector<64x128xf32> -> vector<64x128xf32>
    %101 = arith.addf %94, %100 : vector<64x128xf32>
    %c0_46 = arith.constant 0 : index
    %c0_47 = arith.constant 0 : index
    %102 = vector.load %arg4[%c0_46, %c0_47] : memref<1x128xf32, #tpu.memory_space<vmem>>, vector<1x128xf32>
    %103 = vector.broadcast %102 : vector<1x128xf32> to vector<64x128xf32>
    %104 = arith.addf %101, %103 : vector<64x128xf32>
    %cst_48 = arith.constant 5.000000e-01 : f32
    %105 = vector.broadcast %cst_48 : f32 to vector<64x128xf32>
    %106 = arith.mulf %105, %104 : vector<64x128xf32>
    %cst_49 = arith.constant 0.707106769 : f32
    %107 = vector.broadcast %cst_49 : f32 to vector<64x128xf32>
    %108 = arith.mulf %104, %107 : vector<64x128xf32>
    %cst_50 = arith.constant 0.000000e+00 : f32
    %109 = vector.broadcast %cst_50 : f32 to vector<64x128xf32>
    %110 = arith.cmpf oge, %108, %109 : vector<64x128xf32>
    %cst_51 = arith.constant 1.000000e+00 : f32
    %cst_52 = arith.constant -1.000000e+00 : f32
    %111 = vector.broadcast %cst_51 : f32 to vector<64x128xf32>
    %112 = vector.broadcast %cst_52 : f32 to vector<64x128xf32>
    %113 = arith.select %110, %111, %112 : vector<64x128xi1>, vector<64x128xf32>
    %114 = math.absf %108 : vector<64x128xf32>
    %cst_53 = arith.constant 0.327591091 : f32
    %115 = vector.broadcast %cst_53 : f32 to vector<64x128xf32>
    %116 = arith.mulf %115, %114 : vector<64x128xf32>
    %cst_54 = arith.constant 1.000000e+00 : f32
    %117 = vector.broadcast %cst_54 : f32 to vector<64x128xf32>
    %118 = arith.addf %117, %116 : vector<64x128xf32>
    %cst_55 = arith.constant 1.000000e+00 : f32
    %119 = vector.broadcast %cst_55 : f32 to vector<64x128xf32>
    %120 = arith.divf %119, %118 : vector<64x128xf32>
    %cst_56 = arith.constant 1.06140542 : f32
    %121 = vector.broadcast %cst_56 : f32 to vector<64x128xf32>
    %122 = arith.mulf %121, %120 : vector<64x128xf32>
    %cst_57 = arith.constant -1.45315206 : f32
    %123 = vector.broadcast %cst_57 : f32 to vector<64x128xf32>
    %124 = arith.addf %122, %123 : vector<64x128xf32>
    %125 = arith.mulf %124, %120 : vector<64x128xf32>
    %cst_58 = arith.constant 1.42141378 : f32
    %126 = vector.broadcast %cst_58 : f32 to vector<64x128xf32>
    %127 = arith.addf %125, %126 : vector<64x128xf32>
    %128 = arith.mulf %127, %120 : vector<64x128xf32>
    %cst_59 = arith.constant -0.284496725 : f32
    %129 = vector.broadcast %cst_59 : f32 to vector<64x128xf32>
    %130 = arith.addf %128, %129 : vector<64x128xf32>
    %131 = arith.mulf %130, %120 : vector<64x128xf32>
    %cst_60 = arith.constant 0.254829586 : f32
    %132 = vector.broadcast %cst_60 : f32 to vector<64x128xf32>
    %133 = arith.addf %131, %132 : vector<64x128xf32>
    %134 = arith.mulf %133, %120 : vector<64x128xf32>
    %135 = arith.mulf %114, %114 : vector<64x128xf32>
    %cst_61 = arith.constant 0.000000e+00 : f32
    %136 = vector.broadcast %cst_61 : f32 to vector<64x128xf32>
    %137 = arith.subf %136, %135 : vector<64x128xf32>
    %138 = math.exp %137 : vector<64x128xf32>
    %139 = arith.mulf %134, %138 : vector<64x128xf32>
    %cst_62 = arith.constant 1.000000e+00 : f32
    %140 = vector.broadcast %cst_62 : f32 to vector<64x128xf32>
    %141 = arith.subf %140, %139 : vector<64x128xf32>
    %142 = arith.mulf %113, %141 : vector<64x128xf32>
    %cst_63 = arith.constant 1.000000e+00 : f32
    %143 = vector.broadcast %cst_63 : f32 to vector<64x128xf32>
    %144 = arith.addf %143, %142 : vector<64x128xf32>
    %145 = arith.mulf %106, %144 : vector<64x128xf32>
    %146 = vector.extract_strided_slice %44 {offsets = [8, 0], sizes = [64, 128], strides = [1, 1]} : vector<80x128xf32> to vector<64x128xf32>
    %147 = arith.addf %145, %146 : vector<64x128xf32>
    %cst_64 = arith.constant dense<0.000000e+00> : vector<64xf32>
    %148 = vector.multi_reduction <add>, %147, %cst_64 [1] : vector<64x128xf32> to vector<64xf32>
    %149 = vector.shape_cast %148 : vector<64xf32> to vector<64x1xf32>
    %cst_65 = arith.constant 1.280000e+02 : f32
    %150 = vector.broadcast %cst_65 : f32 to vector<64x1xf32>
    %151 = arith.divf %149, %150 : vector<64x1xf32>
    %152 = vector.broadcast %151 : vector<64x1xf32> to vector<64x128xf32>
    %153 = arith.subf %147, %152 : vector<64x128xf32>
    %154 = arith.mulf %153, %153 : vector<64x128xf32>
    %cst_66 = arith.constant dense<0.000000e+00> : vector<64xf32>
    %155 = vector.multi_reduction <add>, %154, %cst_66 [1] : vector<64x128xf32> to vector<64xf32>
    %156 = vector.shape_cast %155 : vector<64xf32> to vector<64x1xf32>
    %cst_67 = arith.constant 1.280000e+02 : f32
    %157 = vector.broadcast %cst_67 : f32 to vector<64x1xf32>
    %158 = arith.divf %156, %157 : vector<64x1xf32>
    %cst_68 = arith.constant 9.99999974E-6 : f32
    %159 = vector.broadcast %cst_68 : f32 to vector<64x1xf32>
    %160 = arith.addf %158, %159 : vector<64x1xf32>
    %161 = math.rsqrt %160 : vector<64x1xf32>
    %162 = vector.broadcast %161 : vector<64x1xf32> to vector<64x128xf32>
    %163 = arith.mulf %153, %162 : vector<64x128xf32>
    %c0_69 = arith.constant 0 : index
    %c0_70 = arith.constant 0 : index
    %164 = vector.load %arg5[%c0_69, %c0_70] : memref<1x128xf32, #tpu.memory_space<vmem>>, vector<1x128xf32>
    %165 = vector.broadcast %164 : vector<1x128xf32> to vector<64x128xf32>
    %166 = arith.mulf %163, %165 : vector<64x128xf32>
    %c0_71 = arith.constant 0 : index
    %c0_72 = arith.constant 0 : index
    %167 = vector.load %arg6[%c0_71, %c0_72] : memref<1x128xf32, #tpu.memory_space<vmem>>, vector<1x128xf32>
    %168 = vector.broadcast %167 : vector<1x128xf32> to vector<64x128xf32>
    %169 = arith.addf %166, %168 : vector<64x128xf32>
    %c0_73 = arith.constant 0 : index
    %c0_74 = arith.constant 0 : index
    %c0_75 = arith.constant 0 : index
    %170 = vector.load %arg7[%c0_73, %c0_74, %c0_75] : memref<1x64x128xf32, #tpu.memory_space<vmem>>, vector<1x64x128xf32>
    %171 = vector.shape_cast %170 : vector<1x64x128xf32> to vector<64x128xf32>
    %172 = vector.shape_cast %169 : vector<64x128xf32> to vector<1x64x128xf32>
    tpu.vector_store %arg7[%c0_73, %c0_74, %c0_75], %172 {strides = array<i32>} : memref<1x64x128xf32, #tpu.memory_space<vmem>>, vector<1x64x128xf32>,
    return
  }
  func.func @transform_1(%arg0: i32, %arg1: i32) -> (i32, i32, i32) {
    %c0_i32 = arith.constant 0 : i32
    %c0_i32_0 = arith.constant 0 : i32
    %c0_i32_1 = arith.constant 0 : i32
    %c0_i32_2 = arith.constant 0 : i32
    return %c0_i32, %c0_i32_0, %c0_i32_1 : i32, i32, i32
  }
  func.func @transform_2(%arg0: i32, %arg1: i32) -> (i32, i32) {
    %c0_i32 = arith.constant 0 : i32
    %c0_i32_0 = arith.constant 0 : i32
    %c0_i32_1 = arith.constant 0 : i32
    return %c0_i32, %c0_i32_0 : i32, i32
  }
  func.func @transform_3(%arg0: i32, %arg1: i32) -> (i32, i32) {
    %c0_i32 = arith.constant 0 : i32
    %c0_i32_0 = arith.constant 0 : i32
    %c0_i32_1 = arith.constant 0 : i32
    return %c0_i32, %c0_i32_0 : i32, i32
  }
  func.func @transform_4(%arg0: i32, %arg1: i32) -> (i32, i32) {
    %c0_i32 = arith.constant 0 : i32
    %c0_i32_0 = arith.constant 0 : i32
    %c0_i32_1 = arith.constant 0 : i32
    return %c0_i32, %c0_i32_0 : i32, i32
  }
  func.func @transform_5(%arg0: i32, %arg1: i32) -> (i32, i32, i32) {
    %c0_i32 = arith.constant 0 : i32
    %c0_i32_0 = arith.constant 0 : i32
    return %arg0, %arg1, %c0_i32 : i32, i32, i32
  }
}

module attributes {stable_mosaic.version = 11 : i64} {
  func.func @_encoder_kernel(%arg0: i32, %arg1: i32, %arg2: memref<2x192x128xf32, #tpu.memory_space<any>>, %arg3: memref<1x1024x128xbf16, #tpu.memory_space<vmem>>, %arg4: memref<1x128xf32, #tpu.memory_space<vmem>>, %arg5: memref<1x128xf32, #tpu.memory_space<vmem>>, %arg6: memref<1x128xf32, #tpu.memory_space<vmem>>, %arg7: memref<1x64x128xf32, #tpu.memory_space<vmem>>, %arg8: memref<2x80x128xf32, #tpu.memory_space<vmem>>, %arg9: memref<2x!tpu.dma_semaphore, #tpu.memory_space<semaphore_mem>>) attributes {dimension_semantics = [#tpu.dimension_semantics<parallel>, #tpu.dimension_semantics<arbitrary>], iteration_bounds = array<i64: 2, 3>, scalar_prefetch = 0 : i64, scratch_operands = 2 : i64, tpu.core_type = #tpu.core_type<tc>, window_params = [{}, {pipeline_mode = #tpu.pipeline_mode<synchronous>, transform_indices = @transform_1, window_bounds = array<i64: 1, 1024, 128>}, {pipeline_mode = #tpu.pipeline_mode<synchronous>, transform_indices = @transform_2, window_bounds = array<i64: 1, 128>}, {pipeline_mode = #tpu.pipeline_mode<synchronous>, transform_indices = @transform_3, window_bounds = array<i64: 1, 128>}, {pipeline_mode = #tpu.pipeline_mode<synchronous>, transform_indices = @transform_4, window_bounds = array<i64: 1, 128>}, {transform_indices = @transform_5, window_bounds = array<i64: 1, 64, 128>}]} {
    %c2_i32 = arith.constant 2 : i32
    %c0_i32 = arith.constant 0 : i32
    %0 = arith.cmpi eq, %c2_i32, %c0_i32 : i32
    %c1_i32 = arith.constant 1 : i32
    %1 = arith.select %0, %c1_i32, %c2_i32 : i32
    %2 = arith.remsi %arg1, %1 : i32
    %c0_i32_0 = arith.constant 0 : i32
    %3 = arith.cmpi ne, %2, %c0_i32_0 : i32
    %c0_i32_1 = arith.constant 0 : i32
    %4 = arith.cmpi slt, %2, %c0_i32_1 : i32
    %c0_i32_2 = arith.constant 0 : i32
    %5 = arith.cmpi slt, %1, %c0_i32_2 : i32
    %6 = arith.xori %4, %5 : i1
    %7 = arith.andi %6, %3 : i1
    %8 = arith.addi %2, %1 : i32
    %9 = arith.select %7, %8, %2 : i32
    %c0_i32_3 = arith.constant 0 : i32
    %10 = arith.cmpi eq, %arg1, %c0_i32_3 : i32
    %11 = arith.extui %10 : i1 to i32
    %c0_i32_4 = arith.constant 0 : i32
    %12 = arith.cmpi ne, %11, %c0_i32_4 : i32
    scf.if %12 {
      %c0_i32_76 = arith.constant 0 : i32
      %173 = arith.cmpi eq, %arg1, %c0_i32_76 : i32
      %c2_i32_77 = arith.constant 2 : i32
      %174 = arith.cmpi eq, %arg1, %c2_i32_77 : i32
      %c64_i32_78 = arith.constant 64 : i32
      %175 = arith.muli %arg1, %c64_i32_78 : i32
      %c8_i32_79 = arith.constant 8 : i32
      %176 = arith.subi %175, %c8_i32_79 : i32
      %c0_i32_80 = arith.constant 0 : i32
      %177 = arith.maxsi %176, %c0_i32_80 : i32
      %178 = tpu.assume_multiple %177, 8 : i32
      %c8_i32_81 = arith.constant 8 : i32
      %c0_i32_82 = arith.constant 0 : i32
      %179 = arith.select %173, %c8_i32_81, %c0_i32_82 : i32
      %180 = tpu.assume_multiple %179, 8 : i32
      %181 = arith.andi %173, %174 : i1
      %182 = arith.extui %181 : i1 to i32
      %c0_i32_83 = arith.constant 0 : i32
      %183 = arith.cmpi ne, %182, %c0_i32_83 : i32
      scf.if %183 {
        %c0_i32_88 = arith.constant 0 : i32
        %192 = tpu.memref_slice %arg2[%arg0, %178, %c0_i32_88] : memref<2x192x128xf32, #tpu.memory_space<any>> -> memref<1x64x128xf32, #tpu.memory_space<any>>
        %193 = tpu.memref_squeeze %192 : memref<1x64x128xf32, #tpu.memory_space<any>> -> memref<64x128xf32, #tpu.memory_space<any>>
        %c0_i32_89 = arith.constant 0 : i32
        %194 = tpu.memref_slice %arg8[%9, %180, %c0_i32_89] : memref<2x80x128xf32, #tpu.memory_space<vmem>> -> memref<1x64x128xf32, #tpu.memory_space<vmem>>
        %195 = tpu.memref_squeeze %194 : memref<1x64x128xf32, #tpu.memory_space<vmem>> -> memref<64x128xf32, #tpu.memory_space<vmem>>
        %196 = tpu.memref_slice %arg9[%9] : memref<2x!tpu.dma_semaphore, #tpu.memory_space<semaphore_mem>> -> memref<1x!tpu.dma_semaphore, #tpu.memory_space<semaphore_mem>>
        %197 = tpu.memref_squeeze %196 : memref<1x!tpu.dma_semaphore, #tpu.memory_space<semaphore_mem>> -> memref<!tpu.dma_semaphore, #tpu.memory_space<semaphore_mem>>
        tpu.enqueue_dma source(%193 : memref<64x128xf32, #tpu.memory_space<any>>) target(%195 : memref<64x128xf32, #tpu.memory_space<vmem>>) target_semaphore(%197 : memref<!tpu.dma_semaphore, #tpu.memory_space<semaphore_mem>>)
      } else {
      }
      %184 = arith.xori %173, %174 : i1
      %185 = arith.extui %184 : i1 to i32
      %c0_i32_84 = arith.constant 0 : i32
      %186 = arith.cmpi ne, %185, %c0_i32_84 : i32
      scf.if %186 {
        %c0_i32_88 = arith.constant 0 : i32
        %192 = tpu.memref_slice %arg2[%arg0, %178, %c0_i32_88] : memref<2x192x128xf32, #tpu.memory_space<any>> -> memref<1x72x128xf32, #tpu.memory_space<any>>
        %193 = tpu.memref_squeeze %192 : memref<1x72x128xf32, #tpu.memory_space<any>> -> memref<72x128xf32, #tpu.memory_space<any>>
        %c0_i32_89 = arith.constant 0 : i32
        %194 = tpu.memref_slice %arg8[%9, %180, %c0_i32_89] : memref<2x80x128xf32, #tpu.memory_space<vmem>> -> memref<1x72x128xf32, #tpu.memory_space<vmem>>
        %195 = tpu.memref_squeeze %194 : memref<1x72x128xf32, #tpu.memory_space<vmem>> -> memref<72x128xf32, #tpu.memory_space<vmem>>
        %196 = tpu.memref_slice %arg9[%9] : memref<2x!tpu.dma_semaphore, #tpu.memory_space<semaphore_mem>> -> memref<1x!tpu.dma_semaphore, #tpu.memory_space<semaphore_mem>>
        %197 = tpu.memref_squeeze %196 : memref<1x!tpu.dma_semaphore, #tpu.memory_space<semaphore_mem>> -> memref<!tpu.dma_semaphore, #tpu.memory_space<semaphore_mem>>
        tpu.enqueue_dma source(%193 : memref<72x128xf32, #tpu.memory_space<any>>) target(%195 : memref<72x128xf32, #tpu.memory_space<vmem>>) target_semaphore(%197 : memref<!tpu.dma_semaphore, #tpu.memory_space<semaphore_mem>>)
      } else {
      }
      %true_85 = arith.constant true
      %187 = arith.xori %173, %true_85 : i1
      %true_86 = arith.constant true
      %188 = arith.xori %174, %true_86 : i1
      %189 = arith.andi %187, %188 : i1
      %190 = arith.extui %189 : i1 to i32
      %c0_i32_87 = arith.constant 0 : i32
      %191 = arith.cmpi ne, %190, %c0_i32_87 : i32
      scf.if %191 {
        %c0_i32_88 = arith.constant 0 : i32
        %192 = tpu.memref_slice %arg2[%arg0, %178, %c0_i32_88] : memref<2x192x128xf32, #tpu.memory_space<any>> -> memref<1x80x128xf32, #tpu.memory_space<any>>
        %193 = tpu.memref_squeeze %192 : memref<1x80x128xf32, #tpu.memory_space<any>> -> memref<80x128xf32, #tpu.memory_space<any>>
        %c0_i32_89 = arith.constant 0 : i32
        %194 = tpu.memref_slice %arg8[%9, %180, %c0_i32_89] : memref<2x80x128xf32, #tpu.memory_space<vmem>> -> memref<1x80x128xf32, #tpu.memory_space<vmem>>
        %195 = tpu.memref_squeeze %194 : memref<1x80x128xf32, #tpu.memory_space<vmem>> -> memref<80x128xf32, #tpu.memory_space<vmem>>
        %196 = tpu.memref_slice %arg9[%9] : memref<2x!tpu.dma_semaphore, #tpu.memory_space<semaphore_mem>> -> memref<1x!tpu.dma_semaphore, #tpu.memory_space<semaphore_mem>>
        %197 = tpu.memref_squeeze %196 : memref<1x!tpu.dma_semaphore, #tpu.memory_space<semaphore_mem>> -> memref<!tpu.dma_semaphore, #tpu.memory_space<semaphore_mem>>
        tpu.enqueue_dma source(%193 : memref<80x128xf32, #tpu.memory_space<any>>) target(%195 : memref<80x128xf32, #tpu.memory_space<vmem>>) target_semaphore(%197 : memref<!tpu.dma_semaphore, #tpu.memory_space<semaphore_mem>>)
      } else {
      }
    } else {
    }
    %c1_i32_5 = arith.constant 1 : i32
    %13 = arith.addi %arg1, %c1_i32_5 : i32
    %c3_i32 = arith.constant 3 : i32
    %14 = arith.cmpi slt, %13, %c3_i32 : i32
    %15 = arith.extui %14 : i1 to i32
    %c0_i32_6 = arith.constant 0 : i32
    %16 = arith.cmpi ne, %15, %c0_i32_6 : i32
    scf.if %16 {
      %c1_i32_76 = arith.constant 1 : i32
      %173 = arith.addi %arg1, %c1_i32_76 : i32
      %c1_i32_77 = arith.constant 1 : i32
      %174 = arith.subi %c1_i32_77, %9 : i32
      %c0_i32_78 = arith.constant 0 : i32
      %175 = arith.cmpi eq, %173, %c0_i32_78 : i32
      %c2_i32_79 = arith.constant 2 : i32
      %176 = arith.cmpi eq, %173, %c2_i32_79 : i32
      %c64_i32_80 = arith.constant 64 : i32
      %177 = arith.muli %173, %c64_i32_80 : i32
      %c8_i32_81 = arith.constant 8 : i32
      %178 = arith.subi %177, %c8_i32_81 : i32
      %c0_i32_82 = arith.constant 0 : i32
      %179 = arith.maxsi %178, %c0_i32_82 : i32
      %180 = tpu.assume_multiple %179, 8 : i32
      %c8_i32_83 = arith.constant 8 : i32
      %c0_i32_84 = arith.constant 0 : i32
      %181 = arith.select %175, %c8_i32_83, %c0_i32_84 : i32
      %182 = tpu.assume_multiple %181, 8 : i32
      %183 = arith.andi %175, %176 : i1
      %184 = arith.extui %183 : i1 to i32
      %c0_i32_85 = arith.constant 0 : i32
      %185 = arith.cmpi ne, %184, %c0_i32_85 : i32
      scf.if %185 {
        %c0_i32_90 = arith.constant 0 : i32
        %194 = tpu.memref_slice %arg2[%arg0, %180, %c0_i32_90] : memref<2x192x128xf32, #tpu.memory_space<any>> -> memref<1x64x128xf32, #tpu.memory_space<any>>
        %195 = tpu.memref_squeeze %194 : memref<1x64x128xf32, #tpu.memory_space<any>> -> memref<64x128xf32, #tpu.memory_space<any>>
        %c0_i32_91 = arith.constant 0 : i32
        %196 = tpu.memref_slice %arg8[%174, %182, %c0_i32_91] : memref<2x80x128xf32, #tpu.memory_space<vmem>> -> memref<1x64x128xf32, #tpu.memory_space<vmem>>
        %197 = tpu.memref_squeeze %196 : memref<1x64x128xf32, #tpu.memory_space<vmem>> -> memref<64x128xf32, #tpu.memory_space<vmem>>
        %198 = tpu.memref_slice %arg9[%174] : memref<2x!tpu.dma_semaphore, #tpu.memory_space<semaphore_mem>> -> memref<1x!tpu.dma_semaphore, #tpu.memory_space<semaphore_mem>>
        %199 = tpu.memref_squeeze %198 : memref<1x!tpu.dma_semaphore, #tpu.memory_space<semaphore_mem>> -> memref<!tpu.dma_semaphore, #tpu.memory_space<semaphore_mem>>
        tpu.enqueue_dma source(%195 : memref<64x128xf32, #tpu.memory_space<any>>) target(%197 : memref<64x128xf32, #tpu.memory_space<vmem>>) target_semaphore(%199 : memref<!tpu.dma_semaphore, #tpu.memory_space<semaphore_mem>>)
      } else {
      }
      %186 = arith.xori %175, %176 : i1
      %187 = arith.extui %186 : i1 to i32
      %c0_i32_86 = arith.constant 0 : i32
      %188 = arith.cmpi ne, %187, %c0_i32_86 : i32
      scf.if %188 {
        %c0_i32_90 = arith.constant 0 : i32
        %194 = tpu.memref_slice %arg2[%arg0, %180, %c0_i32_90] : memref<2x192x128xf32, #tpu.memory_space<any>> -> memref<1x72x128xf32, #tpu.memory_space<any>>
        %195 = tpu.memref_squeeze %194 : memref<1x72x128xf32, #tpu.memory_space<any>> -> memref<72x128xf32, #tpu.memory_space<any>>
        %c0_i32_91 = arith.constant 0 : i32
        %196 = tpu.memref_slice %arg8[%174, %182, %c0_i32_91] : memref<2x80x128xf32, #tpu.memory_space<vmem>> -> memref<1x72x128xf32, #tpu.memory_space<vmem>>
        %197 = tpu.memref_squeeze %196 : memref<1x72x128xf32, #tpu.memory_space<vmem>> -> memref<72x128xf32, #tpu.memory_space<vmem>>
        %198 = tpu.memref_slice %arg9[%174] : memref<2x!tpu.dma_semaphore, #tpu.memory_space<semaphore_mem>> -> memref<1x!tpu.dma_semaphore, #tpu.memory_space<semaphore_mem>>
        %199 = tpu.memref_squeeze %198 : memref<1x!tpu.dma_semaphore, #tpu.memory_space<semaphore_mem>> -> memref<!tpu.dma_semaphore, #tpu.memory_space<semaphore_mem>>
        tpu.enqueue_dma source(%195 : memref<72x128xf32, #tpu.memory_space<any>>) target(%197 : memref<72x128xf32, #tpu.memory_space<vmem>>) target_semaphore(%199 : memref<!tpu.dma_semaphore, #tpu.memory_space<semaphore_mem>>)
      } else {
      }
      %true_87 = arith.constant true
      %189 = arith.xori %175, %true_87 : i1
      %true_88 = arith.constant true
      %190 = arith.xori %176, %true_88 : i1
      %191 = arith.andi %189, %190 : i1
      %192 = arith.extui %191 : i1 to i32
      %c0_i32_89 = arith.constant 0 : i32
      %193 = arith.cmpi ne, %192, %c0_i32_89 : i32
      scf.if %193 {
        %c0_i32_90 = arith.constant 0 : i32
        %194 = tpu.memref_slice %arg2[%arg0, %180, %c0_i32_90] : memref<2x192x128xf32, #tpu.memory_space<any>> -> memref<1x80x128xf32, #tpu.memory_space<any>>
        %195 = tpu.memref_squeeze %194 : memref<1x80x128xf32, #tpu.memory_space<any>> -> memref<80x128xf32, #tpu.memory_space<any>>
        %c0_i32_91 = arith.constant 0 : i32
        %196 = tpu.memref_slice %arg8[%174, %182, %c0_i32_91] : memref<2x80x128xf32, #tpu.memory_space<vmem>> -> memref<1x80x128xf32, #tpu.memory_space<vmem>>
        %197 = tpu.memref_squeeze %196 : memref<1x80x128xf32, #tpu.memory_space<vmem>> -> memref<80x128xf32, #tpu.memory_space<vmem>>
        %198 = tpu.memref_slice %arg9[%174] : memref<2x!tpu.dma_semaphore, #tpu.memory_space<semaphore_mem>> -> memref<1x!tpu.dma_semaphore, #tpu.memory_space<semaphore_mem>>
        %199 = tpu.memref_squeeze %198 : memref<1x!tpu.dma_semaphore, #tpu.memory_space<semaphore_mem>> -> memref<!tpu.dma_semaphore, #tpu.memory_space<semaphore_mem>>
        tpu.enqueue_dma source(%195 : memref<80x128xf32, #tpu.memory_space<any>>) target(%197 : memref<80x128xf32, #tpu.memory_space<vmem>>) target_semaphore(%199 : memref<!tpu.dma_semaphore, #tpu.memory_space<semaphore_mem>>)
      } else {
      }
    } else {
    }
    %c0_i32_7 = arith.constant 0 : i32
    %17 = arith.cmpi eq, %arg1, %c0_i32_7 : i32
    %c2_i32_8 = arith.constant 2 : i32
    %18 = arith.cmpi eq, %arg1, %c2_i32_8 : i32
    %c64_i32 = arith.constant 64 : i32
    %19 = arith.muli %arg1, %c64_i32 : i32
    %c8_i32 = arith.constant 8 : i32
    %20 = arith.subi %19, %c8_i32 : i32
    %c0_i32_9 = arith.constant 0 : i32
    %21 = arith.maxsi %20, %c0_i32_9 : i32
    %22 = tpu.assume_multiple %21, 8 : i32
    %c8_i32_10 = arith.constant 8 : i32
    %c0_i32_11 = arith.constant 0 : i32
    %23 = arith.select %17, %c8_i32_10, %c0_i32_11 : i32
    %24 = tpu.assume_multiple %23, 8 : i32
    %25 = arith.andi %17, %18 : i1
    %26 = arith.extui %25 : i1 to i32
    %c0_i32_12 = arith.constant 0 : i32
    %27 = arith.cmpi ne, %26, %c0_i32_12 : i32
    scf.if %27 {
      %c0_i32_76 = arith.constant 0 : i32
      %173 = tpu.memref_slice %arg2[%arg0, %22, %c0_i32_76] : memref<2x192x128xf32, #tpu.memory_space<any>> -> memref<1x64x128xf32, #tpu.memory_space<any>>
      %174 = tpu.memref_squeeze %173 : memref<1x64x128xf32, #tpu.memory_space<any>> -> memref<64x128xf32, #tpu.memory_space<any>>
      %c0_i32_77 = arith.constant 0 : i32
      %175 = tpu.memref_slice %arg8[%9, %24, %c0_i32_77] : memref<2x80x128xf32, #tpu.memory_space<vmem>> -> memref<1x64x128xf32, #tpu.memory_space<vmem>>
      %176 = tpu.memref_squeeze %175 : memref<1x64x128xf32, #tpu.memory_space<vmem>> -> memref<64x128xf32, #tpu.memory_space<vmem>>
      %177 = tpu.memref_slice %arg9[%9] : memref<2x!tpu.dma_semaphore, #tpu.memory_space<semaphore_mem>> -> memref<1x!tpu.dma_semaphore, #tpu.memory_space<semaphore_mem>>
      %178 = tpu.memref_squeeze %177 : memref<1x!tpu.dma_semaphore, #tpu.memory_space<semaphore_mem>> -> memref<!tpu.dma_semaphore, #tpu.memory_space<semaphore_mem>>
      tpu.wait_dma2 semaphore(%178 : memref<!tpu.dma_semaphore, #tpu.memory_space<semaphore_mem>>) src(%174 : memref<64x128xf32, #tpu.memory_space<any>>) dst(%176 : memref<64x128xf32, #tpu.memory_space<vmem>>)
    } else {
    }
    %28 = arith.xori %17, %18 : i1
    %29 = arith.extui %28 : i1 to i32
    %c0_i32_13 = arith.constant 0 : i32
    %30 = arith.cmpi ne, %29, %c0_i32_13 : i32
    scf.if %30 {
      %c0_i32_76 = arith.constant 0 : i32
      %173 = tpu.memref_slice %arg2[%arg0, %22, %c0_i32_76] : memref<2x192x128xf32, #tpu.memory_space<any>> -> memref<1x72x128xf32, #tpu.memory_space<any>>
      %174 = tpu.memref_squeeze %173 : memref<1x72x128xf32, #tpu.memory_space<any>> -> memref<72x128xf32, #tpu.memory_space<any>>
      %c0_i32_77 = arith.constant 0 : i32
      %175 = tpu.memref_slice %arg8[%9, %24, %c0_i32_77] : memref<2x80x128xf32, #tpu.memory_space<vmem>> -> memref<1x72x128xf32, #tpu.memory_space<vmem>>
      %176 = tpu.memref_squeeze %175 : memref<1x72x128xf32, #tpu.memory_space<vmem>> -> memref<72x128xf32, #tpu.memory_space<vmem>>
      %177 = tpu.memref_slice %arg9[%9] : memref<2x!tpu.dma_semaphore, #tpu.memory_space<semaphore_mem>> -> memref<1x!tpu.dma_semaphore, #tpu.memory_space<semaphore_mem>>
      %178 = tpu.memref_squeeze %177 : memref<1x!tpu.dma_semaphore, #tpu.memory_space<semaphore_mem>> -> memref<!tpu.dma_semaphore, #tpu.memory_space<semaphore_mem>>
      tpu.wait_dma2 semaphore(%178 : memref<!tpu.dma_semaphore, #tpu.memory_space<semaphore_mem>>) src(%174 : memref<72x128xf32, #tpu.memory_space<any>>) dst(%176 : memref<72x128xf32, #tpu.memory_space<vmem>>)
    } else {
    }
    %true = arith.constant true
    %31 = arith.xori %17, %true : i1
    %true_14 = arith.constant true
    %32 = arith.xori %18, %true_14 : i1
    %33 = arith.andi %31, %32 : i1
    %34 = arith.extui %33 : i1 to i32
    %c0_i32_15 = arith.constant 0 : i32
    %35 = arith.cmpi ne, %34, %c0_i32_15 : i32
    scf.if %35 {
      %c0_i32_76 = arith.constant 0 : i32
      %173 = tpu.memref_slice %arg2[%arg0, %22, %c0_i32_76] : memref<2x192x128xf32, #tpu.memory_space<any>> -> memref<1x80x128xf32, #tpu.memory_space<any>>
      %174 = tpu.memref_squeeze %173 : memref<1x80x128xf32, #tpu.memory_space<any>> -> memref<80x128xf32, #tpu.memory_space<any>>
      %c0_i32_77 = arith.constant 0 : i32
      %175 = tpu.memref_slice %arg8[%9, %24, %c0_i32_77] : memref<2x80x128xf32, #tpu.memory_space<vmem>> -> memref<1x80x128xf32, #tpu.memory_space<vmem>>
      %176 = tpu.memref_squeeze %175 : memref<1x80x128xf32, #tpu.memory_space<vmem>> -> memref<80x128xf32, #tpu.memory_space<vmem>>
      %177 = tpu.memref_slice %arg9[%9] : memref<2x!tpu.dma_semaphore, #tpu.memory_space<semaphore_mem>> -> memref<1x!tpu.dma_semaphore, #tpu.memory_space<semaphore_mem>>
      %178 = tpu.memref_squeeze %177 : memref<1x!tpu.dma_semaphore, #tpu.memory_space<semaphore_mem>> -> memref<!tpu.dma_semaphore, #tpu.memory_space<semaphore_mem>>
      tpu.wait_dma2 semaphore(%178 : memref<!tpu.dma_semaphore, #tpu.memory_space<semaphore_mem>>) src(%174 : memref<80x128xf32, #tpu.memory_space<any>>) dst(%176 : memref<80x128xf32, #tpu.memory_space<vmem>>)
    } else {
    }
    %c0_i32_16 = arith.constant 0 : i32
    %36 = arith.cmpi eq, %arg1, %c0_i32_16 : i32
    %c2_i32_17 = arith.constant 2 : i32
    %37 = arith.cmpi eq, %arg1, %c2_i32_17 : i32
    %38 = arith.extui %36 : i1 to i32
    %c0_i32_18 = arith.constant 0 : i32
    %39 = arith.cmpi ne, %38, %c0_i32_18 : i32
    scf.if %39 {
      %cst_76 = arith.constant 0.000000e+00 : f32
      %173 = vector.broadcast %cst_76 : f32 to vector<8x128xf32>
      %174 = arith.index_cast %9 : i32 to index
      %c0_77 = arith.constant 0 : index
      %c0_78 = arith.constant 0 : index
      %175 = vector.load %arg8[%174, %c0_77, %c0_78] : memref<2x80x128xf32, #tpu.memory_space<vmem>>, vector<1x8x128xf32>
      %176 = vector.shape_cast %175 : vector<1x8x128xf32> to vector<8x128xf32>
      %177 = vector.shape_cast %173 : vector<8x128xf32> to vector<1x8x128xf32>
      tpu.vector_store %arg8[%174, %c0_77, %c0_78], %177 {strides = array<i32>} : memref<2x80x128xf32, #tpu.memory_space<vmem>>, vector<1x8x128xf32>,
    } else {
    }
    %40 = arith.extui %37 : i1 to i32
    %c0_i32_19 = arith.constant 0 : i32
    %41 = arith.cmpi ne, %40, %c0_i32_19 : i32
    scf.if %41 {
      %cst_76 = arith.constant 0.000000e+00 : f32
      %173 = vector.broadcast %cst_76 : f32 to vector<8x128xf32>
      %174 = arith.index_cast %9 : i32 to index
      %c72 = arith.constant 72 : index
      %c0_77 = arith.constant 0 : index
      %175 = vector.load %arg8[%174, %c72, %c0_77] : memref<2x80x128xf32, #tpu.memory_space<vmem>>, vector<1x8x128xf32>
      %176 = vector.shape_cast %175 : vector<1x8x128xf32> to vector<8x128xf32>
      %177 = vector.shape_cast %173 : vector<8x128xf32> to vector<1x8x128xf32>
      tpu.vector_store %arg8[%174, %c72, %c0_77], %177 {strides = array<i32>} : memref<2x80x128xf32, #tpu.memory_space<vmem>>, vector<1x8x128xf32>,
    } else {
    }
    %42 = arith.index_cast %9 : i32 to index
    %c0 = arith.constant 0 : index
    %c0_20 = arith.constant 0 : index
    %43 = vector.load %arg8[%42, %c0, %c0_20] : memref<2x80x128xf32, #tpu.memory_space<vmem>>, vector<1x80x128xf32>
    %44 = vector.shape_cast %43 : vector<1x80x128xf32> to vector<80x128xf32>
    %cst = arith.constant 0.000000e+00 : f32
    %45 = vector.broadcast %cst : f32 to vector<64x128xf32>
    %c76_i32 = arith.constant 76 : i32
    %46 = tpu.dynamic_rotate %44 by %c76_i32 dim 0 : vector<80x128xf32>, i32 -> vector<80x128xf32>
    %47 = vector.extract_strided_slice %46 {offsets = [0, 0], sizes = [64, 128], strides = [1, 1]} : vector<80x128xf32> to vector<64x128xf32>
    %48 = arith.truncf %47 : vector<64x128xf32> to vector<64x128xbf16>
    %c0_21 = arith.constant 0 : index
    %c0_22 = arith.constant 0 : index
    %c0_23 = arith.constant 0 : index
    %49 = vector.load %arg3[%c0_21, %c0_22, %c0_23] : memref<1x1024x128xbf16, #tpu.memory_space<vmem>>, vector<1x128x128xbf16>
    %50 = vector.shape_cast %49 : vector<1x128x128xbf16> to vector<128x128xbf16>
    %cst_24 = arith.constant dense<0.000000e+00> : vector<64x128xf32>
    %51 = tpu.matmul %48, %50, %cst_24 {dimension_numbers = #tpu.dot_dimension_numbers<[1], [0], [0], [1], [0, 0, 1, 1], [], []>} : vector<64x128xbf16>, vector<128x128xbf16>, vector<64x128xf32> -> vector<64x128xf32>
    %52 = arith.addf %45, %51 : vector<64x128xf32>
    %c75_i32 = arith.constant 75 : i32
    %53 = tpu.dynamic_rotate %44 by %c75_i32 dim 0 : vector<80x128xf32>, i32 -> vector<80x128xf32>
    %54 = vector.extract_strided_slice %53 {offsets = [0, 0], sizes = [64, 128], strides = [1, 1]} : vector<80x128xf32> to vector<64x128xf32>
    %55 = arith.truncf %54 : vector<64x128xf32> to vector<64x128xbf16>
    %c0_25 = arith.constant 0 : index
    %c128 = arith.constant 128 : index
    %c0_26 = arith.constant 0 : index
    %56 = vector.load %arg3[%c0_25, %c128, %c0_26] : memref<1x1024x128xbf16, #tpu.memory_space<vmem>>, vector<1x128x128xbf16>
    %57 = vector.shape_cast %56 : vector<1x128x128xbf16> to vector<128x128xbf16>
    %cst_27 = arith.constant dense<0.000000e+00> : vector<64x128xf32>
    %58 = tpu.matmul %55, %57, %cst_27 {dimension_numbers = #tpu.dot_dimension_numbers<[1], [0], [0], [1], [0, 0, 1, 1], [], []>} : vector<64x128xbf16>, vector<128x128xbf16>, vector<64x128xf32> -> vector<64x128xf32>
    %59 = arith.addf %52, %58 : vector<64x128xf32>
    %c74_i32 = arith.constant 74 : i32
    %60 = tpu.dynamic_rotate %44 by %c74_i32 dim 0 : vector<80x128xf32>, i32 -> vector<80x128xf32>
    %61 = vector.extract_strided_slice %60 {offsets = [0, 0], sizes = [64, 128], strides = [1, 1]} : vector<80x128xf32> to vector<64x128xf32>
    %62 = arith.truncf %61 : vector<64x128xf32> to vector<64x128xbf16>
    %c0_28 = arith.constant 0 : index
    %c256 = arith.constant 256 : index
    %c0_29 = arith.constant 0 : index
    %63 = vector.load %arg3[%c0_28, %c256, %c0_29] : memref<1x1024x128xbf16, #tpu.memory_space<vmem>>, vector<1x128x128xbf16>
    %64 = vector.shape_cast %63 : vector<1x128x128xbf16> to vector<128x128xbf16>
    %cst_30 = arith.constant dense<0.000000e+00> : vector<64x128xf32>
    %65 = tpu.matmul %62, %64, %cst_30 {dimension_numbers = #tpu.dot_dimension_numbers<[1], [0], [0], [1], [0, 0, 1, 1], [], []>} : vector<64x128xbf16>, vector<128x128xbf16>, vector<64x128xf32> -> vector<64x128xf32>
    %66 = arith.addf %59, %65 : vector<64x128xf32>
    %c73_i32 = arith.constant 73 : i32
    %67 = tpu.dynamic_rotate %44 by %c73_i32 dim 0 : vector<80x128xf32>, i32 -> vector<80x128xf32>
    %68 = vector.extract_strided_slice %67 {offsets = [0, 0], sizes = [64, 128], strides = [1, 1]} : vector<80x128xf32> to vector<64x128xf32>
    %69 = arith.truncf %68 : vector<64x128xf32> to vector<64x128xbf16>
    %c0_31 = arith.constant 0 : index
    %c384 = arith.constant 384 : index
    %c0_32 = arith.constant 0 : index
    %70 = vector.load %arg3[%c0_31, %c384, %c0_32] : memref<1x1024x128xbf16, #tpu.memory_space<vmem>>, vector<1x128x128xbf16>
    %71 = vector.shape_cast %70 : vector<1x128x128xbf16> to vector<128x128xbf16>
    %cst_33 = arith.constant dense<0.000000e+00> : vector<64x128xf32>
    %72 = tpu.matmul %69, %71, %cst_33 {dimension_numbers = #tpu.dot_dimension_numbers<[1], [0], [0], [1], [0, 0, 1, 1], [], []>} : vector<64x128xbf16>, vector<128x128xbf16>, vector<64x128xf32> -> vector<64x128xf32>
    %73 = arith.addf %66, %72 : vector<64x128xf32>
    %c72_i32 = arith.constant 72 : i32
    %74 = tpu.dynamic_rotate %44 by %c72_i32 dim 0 : vector<80x128xf32>, i32 -> vector<80x128xf32>
    %75 = vector.extract_strided_slice %74 {offsets = [0, 0], sizes = [64, 128], strides = [1, 1]} : vector<80x128xf32> to vector<64x128xf32>
    %76 = arith.truncf %75 : vector<64x128xf32> to vector<64x128xbf16>
    %c0_34 = arith.constant 0 : index
    %c512 = arith.constant 512 : index
    %c0_35 = arith.constant 0 : index
    %77 = vector.load %arg3[%c0_34, %c512, %c0_35] : memref<1x1024x128xbf16, #tpu.memory_space<vmem>>, vector<1x128x128xbf16>
    %78 = vector.shape_cast %77 : vector<1x128x128xbf16> to vector<128x128xbf16>
    %cst_36 = arith.constant dense<0.000000e+00> : vector<64x128xf32>
    %79 = tpu.matmul %76, %78, %cst_36 {dimension_numbers = #tpu.dot_dimension_numbers<[1], [0], [0], [1], [0, 0, 1, 1], [], []>} : vector<64x128xbf16>, vector<128x128xbf16>, vector<64x128xf32> -> vector<64x128xf32>
    %80 = arith.addf %73, %79 : vector<64x128xf32>
    %c71_i32 = arith.constant 71 : i32
    %81 = tpu.dynamic_rotate %44 by %c71_i32 dim 0 : vector<80x128xf32>, i32 -> vector<80x128xf32>
    %82 = vector.extract_strided_slice %81 {offsets = [0, 0], sizes = [64, 128], strides = [1, 1]} : vector<80x128xf32> to vector<64x128xf32>
    %83 = arith.truncf %82 : vector<64x128xf32> to vector<64x128xbf16>
    %c0_37 = arith.constant 0 : index
    %c640 = arith.constant 640 : index
    %c0_38 = arith.constant 0 : index
    %84 = vector.load %arg3[%c0_37, %c640, %c0_38] : memref<1x1024x128xbf16, #tpu.memory_space<vmem>>, vector<1x128x128xbf16>
    %85 = vector.shape_cast %84 : vector<1x128x128xbf16> to vector<128x128xbf16>
    %cst_39 = arith.constant dense<0.000000e+00> : vector<64x128xf32>
    %86 = tpu.matmul %83, %85, %cst_39 {dimension_numbers = #tpu.dot_dimension_numbers<[1], [0], [0], [1], [0, 0, 1, 1], [], []>} : vector<64x128xbf16>, vector<128x128xbf16>, vector<64x128xf32> -> vector<64x128xf32>
    %87 = arith.addf %80, %86 : vector<64x128xf32>
    %c70_i32 = arith.constant 70 : i32
    %88 = tpu.dynamic_rotate %44 by %c70_i32 dim 0 : vector<80x128xf32>, i32 -> vector<80x128xf32>
    %89 = vector.extract_strided_slice %88 {offsets = [0, 0], sizes = [64, 128], strides = [1, 1]} : vector<80x128xf32> to vector<64x128xf32>
    %90 = arith.truncf %89 : vector<64x128xf32> to vector<64x128xbf16>
    %c0_40 = arith.constant 0 : index
    %c768 = arith.constant 768 : index
    %c0_41 = arith.constant 0 : index
    %91 = vector.load %arg3[%c0_40, %c768, %c0_41] : memref<1x1024x128xbf16, #tpu.memory_space<vmem>>, vector<1x128x128xbf16>
    %92 = vector.shape_cast %91 : vector<1x128x128xbf16> to vector<128x128xbf16>
    %cst_42 = arith.constant dense<0.000000e+00> : vector<64x128xf32>
    %93 = tpu.matmul %90, %92, %cst_42 {dimension_numbers = #tpu.dot_dimension_numbers<[1], [0], [0], [1], [0, 0, 1, 1], [], []>} : vector<64x128xbf16>, vector<128x128xbf16>, vector<64x128xf32> -> vector<64x128xf32>
    %94 = arith.addf %87, %93 : vector<64x128xf32>
    %c69_i32 = arith.constant 69 : i32
    %95 = tpu.dynamic_rotate %44 by %c69_i32 dim 0 : vector<80x128xf32>, i32 -> vector<80x128xf32>
    %96 = vector.extract_strided_slice %95 {offsets = [0, 0], sizes = [64, 128], strides = [1, 1]} : vector<80x128xf32> to vector<64x128xf32>
    %97 = arith.truncf %96 : vector<64x128xf32> to vector<64x128xbf16>
    %c0_43 = arith.constant 0 : index
    %c896 = arith.constant 896 : index
    %c0_44 = arith.constant 0 : index
    %98 = vector.load %arg3[%c0_43, %c896, %c0_44] : memref<1x1024x128xbf16, #tpu.memory_space<vmem>>, vector<1x128x128xbf16>
    %99 = vector.shape_cast %98 : vector<1x128x128xbf16> to vector<128x128xbf16>
    %cst_45 = arith.constant dense<0.000000e+00> : vector<64x128xf32>
    %100 = tpu.matmul %97, %99, %cst_45 {dimension_numbers = #tpu.dot_dimension_numbers<[1], [0], [0], [1], [0, 0, 1, 1], [], []>} : vector<64x128xbf16>, vector<128x128xbf16>, vector<64x128xf32> -> vector<64x128xf32>
    %101 = arith.addf %94, %100 : vector<64x128xf32>
    %c0_46 = arith.constant 0 : index
    %c0_47 = arith.constant 0 : index
    %102 = vector.load %arg4[%c0_46, %c0_47] : memref<1x128xf32, #tpu.memory_space<vmem>>, vector<1x128xf32>
    %103 = vector.broadcast %102 : vector<1x128xf32> to vector<64x128xf32>
    %104 = arith.addf %101, %103 : vector<64x128xf32>
    %cst_48 = arith.constant 5.000000e-01 : f32
    %105 = vector.broadcast %cst_48 : f32 to vector<64x128xf32>
    %106 = arith.mulf %105, %104 : vector<64x128xf32>
    %cst_49 = arith.constant 0.707106769 : f32
    %107 = vector.broadcast %cst_49 : f32 to vector<64x128xf32>
    %108 = arith.mulf %104, %107 : vector<64x128xf32>
    %cst_50 = arith.constant 0.000000e+00 : f32
    %109 = vector.broadcast %cst_50 : f32 to vector<64x128xf32>
    %110 = arith.cmpf oge, %108, %109 : vector<64x128xf32>
    %cst_51 = arith.constant 1.000000e+00 : f32
    %cst_52 = arith.constant -1.000000e+00 : f32
    %111 = vector.broadcast %cst_51 : f32 to vector<64x128xf32>
    %112 = vector.broadcast %cst_52 : f32 to vector<64x128xf32>
    %113 = arith.select %110, %111, %112 : vector<64x128xi1>, vector<64x128xf32>
    %114 = math.absf %108 : vector<64x128xf32>
    %cst_53 = arith.constant 0.327591091 : f32
    %115 = vector.broadcast %cst_53 : f32 to vector<64x128xf32>
    %116 = arith.mulf %115, %114 : vector<64x128xf32>
    %cst_54 = arith.constant 1.000000e+00 : f32
    %117 = vector.broadcast %cst_54 : f32 to vector<64x128xf32>
    %118 = arith.addf %117, %116 : vector<64x128xf32>
    %cst_55 = arith.constant 1.000000e+00 : f32
    %119 = vector.broadcast %cst_55 : f32 to vector<64x128xf32>
    %120 = arith.divf %119, %118 : vector<64x128xf32>
    %cst_56 = arith.constant 1.06140542 : f32
    %121 = vector.broadcast %cst_56 : f32 to vector<64x128xf32>
    %122 = arith.mulf %121, %120 : vector<64x128xf32>
    %cst_57 = arith.constant -1.45315206 : f32
    %123 = vector.broadcast %cst_57 : f32 to vector<64x128xf32>
    %124 = arith.addf %122, %123 : vector<64x128xf32>
    %125 = arith.mulf %124, %120 : vector<64x128xf32>
    %cst_58 = arith.constant 1.42141378 : f32
    %126 = vector.broadcast %cst_58 : f32 to vector<64x128xf32>
    %127 = arith.addf %125, %126 : vector<64x128xf32>
    %128 = arith.mulf %127, %120 : vector<64x128xf32>
    %cst_59 = arith.constant -0.284496725 : f32
    %129 = vector.broadcast %cst_59 : f32 to vector<64x128xf32>
    %130 = arith.addf %128, %129 : vector<64x128xf32>
    %131 = arith.mulf %130, %120 : vector<64x128xf32>
    %cst_60 = arith.constant 0.254829586 : f32
    %132 = vector.broadcast %cst_60 : f32 to vector<64x128xf32>
    %133 = arith.addf %131, %132 : vector<64x128xf32>
    %134 = arith.mulf %133, %120 : vector<64x128xf32>
    %135 = arith.mulf %114, %114 : vector<64x128xf32>
    %cst_61 = arith.constant 0.000000e+00 : f32
    %136 = vector.broadcast %cst_61 : f32 to vector<64x128xf32>
    %137 = arith.subf %136, %135 : vector<64x128xf32>
    %138 = math.exp %137 : vector<64x128xf32>
    %139 = arith.mulf %134, %138 : vector<64x128xf32>
    %cst_62 = arith.constant 1.000000e+00 : f32
    %140 = vector.broadcast %cst_62 : f32 to vector<64x128xf32>
    %141 = arith.subf %140, %139 : vector<64x128xf32>
    %142 = arith.mulf %113, %141 : vector<64x128xf32>
    %cst_63 = arith.constant 1.000000e+00 : f32
    %143 = vector.broadcast %cst_63 : f32 to vector<64x128xf32>
    %144 = arith.addf %143, %142 : vector<64x128xf32>
    %145 = arith.mulf %106, %144 : vector<64x128xf32>
    %146 = vector.extract_strided_slice %44 {offsets = [8, 0], sizes = [64, 128], strides = [1, 1]} : vector<80x128xf32> to vector<64x128xf32>
    %147 = arith.addf %145, %146 : vector<64x128xf32>
    %cst_64 = arith.constant dense<0.000000e+00> : vector<64xf32>
    %148 = vector.multi_reduction <add>, %147, %cst_64 [1] : vector<64x128xf32> to vector<64xf32>
    %149 = vector.shape_cast %148 : vector<64xf32> to vector<64x1xf32>
    %cst_65 = arith.constant 1.280000e+02 : f32
    %150 = vector.broadcast %cst_65 : f32 to vector<64x1xf32>
    %151 = arith.divf %149, %150 : vector<64x1xf32>
    %152 = vector.broadcast %151 : vector<64x1xf32> to vector<64x128xf32>
    %153 = arith.subf %147, %152 : vector<64x128xf32>
    %154 = arith.mulf %153, %153 : vector<64x128xf32>
    %cst_66 = arith.constant dense<0.000000e+00> : vector<64xf32>
    %155 = vector.multi_reduction <add>, %154, %cst_66 [1] : vector<64x128xf32> to vector<64xf32>
    %156 = vector.shape_cast %155 : vector<64xf32> to vector<64x1xf32>
    %cst_67 = arith.constant 1.280000e+02 : f32
    %157 = vector.broadcast %cst_67 : f32 to vector<64x1xf32>
    %158 = arith.divf %156, %157 : vector<64x1xf32>
    %cst_68 = arith.constant 9.99999974E-6 : f32
    %159 = vector.broadcast %cst_68 : f32 to vector<64x1xf32>
    %160 = arith.addf %158, %159 : vector<64x1xf32>
    %161 = math.rsqrt %160 : vector<64x1xf32>
    %162 = vector.broadcast %161 : vector<64x1xf32> to vector<64x128xf32>
    %163 = arith.mulf %153, %162 : vector<64x128xf32>
    %c0_69 = arith.constant 0 : index
    %c0_70 = arith.constant 0 : index
    %164 = vector.load %arg5[%c0_69, %c0_70] : memref<1x128xf32, #tpu.memory_space<vmem>>, vector<1x128xf32>
    %165 = vector.broadcast %164 : vector<1x128xf32> to vector<64x128xf32>
    %166 = arith.mulf %163, %165 : vector<64x128xf32>
    %c0_71 = arith.constant 0 : index
    %c0_72 = arith.constant 0 : index
    %167 = vector.load %arg6[%c0_71, %c0_72] : memref<1x128xf32, #tpu.memory_space<vmem>>, vector<1x128xf32>
    %168 = vector.broadcast %167 : vector<1x128xf32> to vector<64x128xf32>
    %169 = arith.addf %166, %168 : vector<64x128xf32>
    %c0_73 = arith.constant 0 : index
    %c0_74 = arith.constant 0 : index
    %c0_75 = arith.constant 0 : index
    %170 = vector.load %arg7[%c0_73, %c0_74, %c0_75] : memref<1x64x128xf32, #tpu.memory_space<vmem>>, vector<1x64x128xf32>
    %171 = vector.shape_cast %170 : vector<1x64x128xf32> to vector<64x128xf32>
    %172 = vector.shape_cast %169 : vector<64x128xf32> to vector<1x64x128xf32>
    tpu.vector_store %arg7[%c0_73, %c0_74, %c0_75], %172 {strides = array<i32>} : memref<1x64x128xf32, #tpu.memory_space<vmem>>, vector<1x64x128xf32>,
    return
  }
  func.func @transform_1(%arg0: i32, %arg1: i32) -> (i32, i32, i32) {
    %c0_i32 = arith.constant 0 : i32
    %c0_i32_0 = arith.constant 0 : i32
    %c0_i32_1 = arith.constant 0 : i32
    %c0_i32_2 = arith.constant 0 : i32
    return %c0_i32, %c0_i32_0, %c0_i32_1 : i32, i32, i32
  }
  func.func @transform_2(%arg0: i32, %arg1: i32) -> (i32, i32) {
    %c0_i32 = arith.constant 0 : i32
    %c0_i32_0 = arith.constant 0 : i32
    %c0_i32_1 = arith.constant 0 : i32
    return %c0_i32, %c0_i32_0 : i32, i32
  }
  func.func @transform_3(%arg0: i32, %arg1: i32) -> (i32, i32) {
    %c0_i32 = arith.constant 0 : i32
    %c0_i32_0 = arith.constant 0 : i32
    %c0_i32_1 = arith.constant 0 : i32
    return %c0_i32, %c0_i32_0 : i32, i32
  }
  func.func @transform_4(%arg0: i32, %arg1: i32) -> (i32, i32) {
    %c0_i32 = arith.constant 0 : i32
    %c0_i32_0 = arith.constant 0 : i32
    %c0_i32_1 = arith.constant 0 : i32
    return %c0_i32, %c0_i32_0 : i32, i32
  }
  func.func @transform_5(%arg0: i32, %arg1: i32) -> (i32, i32, i32) {
    %c0_i32 = arith.constant 0 : i32
    %c0_i32_0 = arith.constant 0 : i32
    return %arg0, %arg1, %c0_i32 : i32, i32, i32
  }
}

</mosaic_0001>

<llo_original>
// kernel: tpu_custom_call.1
$region0: #{tpu_custom_call.1}
  #allocation0 [shape = 'u32[]', space=smem, size = 0x4, offset = 0x4, fixed_abs, tag = 'smem constant byte address 0x4 - core index']
  #allocation1 [shape = 'u32[144,128]{1,0:T(1,128)}', space=vmem, size = 0x12000, scoped, tag = 'internal scratch']
  #allocation2 [shape = 'f32[2,80,128]{2,1,0:T(8,128)}', space=vmem, size = 0x14000, scoped, tag = 'scratch operand']
  #allocation3 [shape = 's32[2]{0}', space=sflag, size = 0x8, scoped, tag = 'scratch operand']
  #allocation8 [shape = 's32[]', space=sflag, size = 0x4, offset = 0, fixed_abs, tag = 'sflag constant byte address 0x0 - dummy sync flag']
  #allocation9 [shape = 's32[]', space=sflag, size = 0x4, offset = 0, fixed_abs, tag = 'sflag constant byte address 0x0 - dummy sync flag']
  #allocation10 [shape = 'u32[]', space=smem, size = 0x4, offset = 0x44, fixed_abs, tag = 'smem constant byte address 0x44 - assertion arg 0']
  #allocation11 [shape = 'u32[]', space=smem, size = 0x4, offset = 0x48, fixed_abs, tag = 'smem constant byte address 0x48 - assertion arg 1']
  #allocation12 [shape = 's32[]', space=sflag, size = 0x4, offset = 0, fixed_abs, tag = 'sflag constant byte address 0x0 - dummy sync flag']
  #allocation13 [shape = 's32[]', space=sflag, size = 0x4, offset = 0, fixed_abs, tag = 'sflag constant byte address 0x0 - dummy sync flag']
  #allocation14 [shape = 's32[]', space=sflag, size = 0x4, offset = 0, fixed_abs, tag = 'sflag constant byte address 0x0 - dummy sync flag']
  #allocation15 [shape = 's32[]', space=sflag, size = 0x4, offset = 0, fixed_abs, tag = 'sflag constant byte address 0x0 - dummy sync flag']
  #allocation16 [shape = 's32[]', space=sflag, size = 0x4, offset = 0, fixed_abs, tag = 'sflag constant byte address 0x0 - dummy sync flag']
  #allocation17 [shape = 's32[]', space=sflag, size = 0x4, offset = 0, fixed_abs, tag = 'sflag constant byte address 0x0 - dummy sync flag']
  #allocation18 [shape = 's32[]', space=sflag, size = 0x4, offset = 0, fixed_abs, tag = 'sflag constant byte address 0x0 - dummy sync flag']
  #allocation19 [shape = 's32[]', space=sflag, size = 0x4, offset = 0, fixed_abs, tag = 'sflag constant byte address 0x0 - dummy sync flag']
  #allocation20 [shape = 's32[]', space=sflag, size = 0x4, offset = 0, fixed_abs, tag = 'sflag constant byte address 0x0 - dummy sync flag']
  #allocation21 [shape = 's32[]', space=sflag, size = 0x4, offset = 0, fixed_abs, tag = 'sflag constant byte address 0x0 - dummy sync flag']
  %s0 = inlined_call_operand.hbm [shape: f32[2,192,128], index: 0, kind: input, shape index: {}]
  %s1 = inlined_call_operand.hbm [shape: bf16[1,1024,128], index: 1, kind: input, shape index: {}]
  %s2 = inlined_call_operand.vmem [shape: f32[1,128], index: 2, kind: input, shape index: {}]
  %s3 = inlined_call_operand.vmem [shape: f32[1,128], index: 3, kind: input, shape index: {}]
  %s4 = inlined_call_operand.vmem [shape: f32[1,128], index: 4, kind: input, shape index: {}]
  %s5 = inlined_call_operand.hbm [shape: f32[2,192,128], index: 5, kind: output, shape index: {}]
  %s6 = sld [smem:[#allocation0]]
  $region129: #{tpu_custom_call.1} parent=0
    _
  %s8 = ssub.s32 1, %s6
  %s9 = scalar_select 0, %s8, %s6
  $region1: #{tpu_custom_call.1} parent=0
    #allocation4 [shape = 'u8[262144]{0}', space=vmem, size = 0x40000, scoped, tag = 'input window, operand 1, single buffered']
    #allocation5 [shape = 's32[2]{0}', space=sflag, size = 0x8, scoped, tag = 'scoped memory for tpu_custom_call.1']
    #allocation6 [shape = 's32[2]{0}', space=sflag, size = 0x8, scoped, tag = 'scoped memory for tpu_custom_call.1']
    #allocation7 [shape = 'u8[65536]{0}', space=vmem, size = 0x10000, scoped, tag = 'output window, operand 0']
    %10 = vsyncpa [#allocation5], 0
    %11 = vsyncpa [#allocation6], 0
    %s12 = scalar_lea.sflag [#allocation6], 1
    %13 = vsyncpa %s12, 0
    loop: start=0, step=1, limit=8
    $region2: #{tpu_custom_call.1} parent=1 // loop_pre_header
      _
    $region3: #{tpu_custom_call.1} parent=1 // loop_header
      %s15 = sphi 0, %s19
      %p16 = scmp.ge.s32.totalorder %s15, 8
      %s22 = sphi 0, %s34
      %s23 = sphi 0, %s30
      %s24 = sphi 0, %s22
      %s25 = sphi 0, %s23
      %s26 = sphi 0, %s24
      %s27 = sphi 0, %s25
      %s35 = sphi 0, %s35
      %s37 = sphi 0, %s35
      %s38 = sphi 0, %s37
      %s52 = sphi 0, %s38
      %s56 = sphi 0, %s56
      %s58 = sphi 0, %s56
      %s59 = sphi 0, %s58
      %s73 = sphi 0, %s59
      %s77 = sphi 0, %s77
      %s79 = sphi 0, %s77
      %s80 = sphi 0, %s79
      %s94 = sphi 0, %s80
      %s98 = sphi 0, %s98
      %s100 = sphi 0, %s98
      %s101 = sphi 0, %s100
      %s115 = sphi 0, %s101
      %s123 = sphi 0, %s125
      %s126 = sphi 0, %s123
      %s127 = sphi 0, %s126
      %s143 = sphi 0, %s127
    $region4: #{tpu_custom_call.1} parent=1 // loop_header_branch
      %18 = sbr.rel (%p16) target = $region8
    $region5: #{tpu_custom_call.1} parent=1 // loop_body
      %s20 = ssub.s32 %s15, 1
      %s21 = ssub.s32 %s15, 2
      %s28 = sadd.s32 1, %s23
      %p29 = scmp.ge.s32.totalorder %s28, 3
      %s30 = scalar_select %p29, 0, %s28
      %s31 = sadd.s32 1, %s22
      %s32 = scalar_select %p29, %s31, %s22
      %p33 = scmp.ge.s32.totalorder %s32, 2
      %s34 = scalar_select %p33, 0, %s32
      %s36 = sadd.s32 %s35, 1
      %p39 = scmp.eq.s32.totalorder %s15, 5
      %p40 = scmp.ne.s32.totalorder %s35, %s37
      %p41 = scmp.eq.s32.totalorder %s15, 0
      %p42 = por %p40, %p41
      %p43 = scmp.ne.s32.totalorder %s35, %s37
      %p44 = scmp.eq.s32.totalorder %s20, 5
      %p45 = por %p43, %p44
      %p46 = scmp.ne.s32.totalorder %s37, %s38
      %p47 = scmp.eq.s32.totalorder %s20, 0
      %p48 = por %p46, %p47
      %p49 = scmp.ne.s32.totalorder %s37, %s38
      %p50 = scmp.eq.s32.totalorder %s21, 5
      %p51 = por %p49, %p50
      %p53 = scmp.ne.s32.totalorder %s38, %s52
      %p54 = scmp.eq.s32.totalorder %s21, 0
      %p55 = por %p53, %p54
      %s57 = sadd.s32 %s56, 1
      %p60 = scmp.eq.s32.totalorder %s15, 5
      %p61 = scmp.ne.s32.totalorder %s56, %s58
      %p62 = scmp.eq.s32.totalorder %s15, 0
      %p63 = por %p61, %p62
      %p64 = scmp.ne.s32.totalorder %s56, %s58
      %p65 = scmp.eq.s32.totalorder %s20, 5
      %p66 = por %p64, %p65
      %p67 = scmp.ne.s32.totalorder %s58, %s59
      %p68 = scmp.eq.s32.totalorder %s20, 0
      %p69 = por %p67, %p68
      %p70 = scmp.ne.s32.totalorder %s58, %s59
      %p71 = scmp.eq.s32.totalorder %s21, 5
      %p72 = por %p70, %p71
      %p74 = scmp.ne.s32.totalorder %s59, %s73
      %p75 = scmp.eq.s32.totalorder %s21, 0
      %p76 = por %p74, %p75
      %s78 = sadd.s32 %s77, 1
      %p81 = scmp.eq.s32.totalorder %s15, 5
      %p82 = scmp.ne.s32.totalorder %s77, %s79
      %p83 = scmp.eq.s32.totalorder %s15, 0
      %p84 = por %p82, %p83
      %p85 = scmp.ne.s32.totalorder %s77, %s79
      %p86 = scmp.eq.s32.totalorder %s20, 5
      %p87 = por %p85, %p86
      %p88 = scmp.ne.s32.totalorder %s79, %s80
      %p89 = scmp.eq.s32.totalorder %s20, 0
      %p90 = por %p88, %p89
      %p91 = scmp.ne.s32.totalorder %s79, %s80
      %p92 = scmp.eq.s32.totalorder %s21, 5
      %p93 = por %p91, %p92
      %p95 = scmp.ne.s32.totalorder %s80, %s94
      %p96 = scmp.eq.s32.totalorder %s21, 0
      %p97 = por %p95, %p96
      %s99 = sadd.s32 %s98, 1
      %p102 = scmp.eq.s32.totalorder %s15, 5
      %p103 = scmp.ne.s32.totalorder %s98, %s100
      %p104 = scmp.eq.s32.totalorder %s15, 0
      %p105 = por %p103, %p104
      %p106 = scmp.ne.s32.totalorder %s98, %s100
      %p107 = scmp.eq.s32.totalorder %s20, 5
      %p108 = por %p106, %p107
      %p109 = scmp.ne.s32.totalorder %s100, %s101
      %p110 = scmp.eq.s32.totalorder %s20, 0
      %p111 = por %p109, %p110
      %p112 = scmp.ne.s32.totalorder %s100, %s101
      %p113 = scmp.eq.s32.totalorder %s21, 5
      %p114 = por %p112, %p113
      %p116 = scmp.ne.s32.totalorder %s101, %s115
      %p117 = scmp.eq.s32.totalorder %s21, 0
      %p118 = por %p116, %p117
      %s119 = ssub.s32 %s22, %s34
      %s120 = ssub.s32 %s23, %s30
      %s121 = sor.u32 %s119, %s120
      %p122 = scmp.eq.s32.totalorder %s121, 0
      %s124 = sadd.s32 %s123, 1
      %s125 = scalar_select %p122, %s123, %s124
      %p128 = pneg %p122
      %p129 = scmp.eq.s32.totalorder %s15, 5
      %p130 = por %p128, %p129
      %p131 = scmp.ne.s32.totalorder %s123, %s126
      %p132 = scmp.eq.s32.totalorder %s15, 0
      %p133 = por %p131, %p132
      %p134 = scmp.ne.s32.totalorder %s123, %s126
      %p135 = scmp.eq.s32.totalorder %s20, 5
      %p136 = por %p134, %p135
      %p137 = scmp.ne.s32.totalorder %s126, %s127
      %p138 = scmp.eq.s32.totalorder %s20, 0
      %p139 = por %p137, %p138
      %p140 = scmp.ne.s32.totalorder %s126, %s127
      %p141 = scmp.eq.s32.totalorder %s21, 5
      %p142 = por %p140, %p141
      %p144 = scmp.ne.s32.totalorder %s127, %s143
      %p145 = scmp.eq.s32.totalorder %s21, 0
      %p146 = por %p144, %p145
      %p147 = scmp.le.s32.totalorder 1, %s15
      %p148 = scmp.lt.s32.totalorder %s15, 7
      %p149 = pnand %p147, %p148
      %p150 = pneg %p149
      // Predicated region
      $region9: #{tpu_custom_call.1} parent=5 // pred_check
        _
      $region10: #{tpu_custom_call.1} parent=5 // pred_check_branch
        %152 = sbr.rel (%p149) target = $region12
      $region11: #{tpu_custom_call.1} parent=5 // pred_region
        %s153 = ssub.s32 %s15, 1
        // Predicated region
        $region13: #{tpu_custom_call.1} parent=11 // pred_check
          %p154 = pneg %p48
        $region14: #{tpu_custom_call.1} parent=11 // pred_check_branch
          %156 = sbr.rel (%p154) target = $region16
        $region15: #{tpu_custom_call.1} parent=11 // pred_region
          %s158 = ssub.s32 8192, 8192
          %159 = vsyncadd [#allocation5], %s158
          %s160 = sshll.u32 [#allocation4], 4
          %s161 = int_to_ptr.vmem [resolvable:$true] %s160
          %166 = dma.hbm_to_vmem [thread:$0]  %s1, 8192, %s161, [#allocation5], 64, 64, 4
        $region16: #{tpu_custom_call.1} parent=11 // pred_fallthru
          _
        // Predicated region
        $region17: #{tpu_custom_call.1} parent=11 // pred_check
          %p167 = pneg %p69
        $region18: #{tpu_custom_call.1} parent=11 // pred_check_branch
          %169 = sbr.rel (%p167) target = $region20
        $region19: #{tpu_custom_call.1} parent=11 // pred_region
          _
        $region20: #{tpu_custom_call.1} parent=11 // pred_fallthru
          _
        // Predicated region
        $region21: #{tpu_custom_call.1} parent=11 // pred_check
          %p170 = pneg %p90
        $region22: #{tpu_custom_call.1} parent=11 // pred_check_branch
          %172 = sbr.rel (%p170) target = $region24
        $region23: #{tpu_custom_call.1} parent=11 // pred_region
          _
        $region24: #{tpu_custom_call.1} parent=11 // pred_fallthru
          _
        // Predicated region
        $region25: #{tpu_custom_call.1} parent=11 // pred_check
          %p173 = pneg %p111
        $region26: #{tpu_custom_call.1} parent=11 // pred_check_branch
          %175 = sbr.rel (%p173) target = $region28
        $region27: #{tpu_custom_call.1} parent=11 // pred_region
          _
        $region28: #{tpu_custom_call.1} parent=11 // pred_fallthru
          _
      $region12: #{tpu_custom_call.1} parent=5 // pred_fallthru
        _
      %p176 = scmp.lt.s32.totalorder %s15, 6
      // Predicated region
      $region29: #{tpu_custom_call.1} parent=5 // pred_check
        %p177 = pneg %p176
      $region30: #{tpu_custom_call.1} parent=5 // pred_check_branch
        %179 = sbr.rel (%p177) target = $region32
      $region31: #{tpu_custom_call.1} parent=5 // pred_region
        _
      $region32: #{tpu_custom_call.1} parent=5 // pred_fallthru
        _
      %p180 = scmp.le.s32.totalorder 1, %s15
      %p181 = scmp.lt.s32.totalorder %s15, 7
      %p182 = pnand %p180, %p181
      %p183 = pneg %p182
      // Predicated region
      $region33: #{tpu_custom_call.1} parent=5 // pred_check
        _
      $region34: #{tpu_custom_call.1} parent=5 // pred_check_branch
        %185 = sbr.rel (%p182) target = $region36
      $region35: #{tpu_custom_call.1} parent=5 // pred_region
        %s186 = ssub.s32 %s15, 1
        // Predicated region
        $region37: #{tpu_custom_call.1} parent=35 // pred_check
          %p187 = pneg %p48
        $region38: #{tpu_custom_call.1} parent=35 // pred_check_branch
          %189 = sbr.rel (%p187) target = $region40
        $region39: #{tpu_custom_call.1} parent=35 // pred_region
          %190 = dma.done [#allocation5], 8192
        $region40: #{tpu_custom_call.1} parent=35 // pred_fallthru
          _
        %p191 = pneg %p48
        %p192 = pneg %p45
        %p193 = pneg %p69
        %p194 = pneg %p66
        %p195 = pneg %p90
        %p196 = pneg %p87
        %p197 = pneg %p111
        %p198 = pneg %p108
        %p199 = pneg %p139
        %p200 = pneg %p136
        %s201 = sand.u32 %s126, 1
        %s202 = scalar_lea.sflag [#allocation6], %s201
        %s203 = sand.u32 %s126, 1
        %s204 = smul.addr %s203, 64
        %s205 = scalar_lea.vmem [#allocation7], %s204
        %s206 = smul.u32 8, %s25
        %p208 = scmp.lt.s32.totalorder %s25, 0
        %s209 = ssub.s32 0, %s25
        %s210 = scalar_select %p208, %s209, %s25
        %s211 = sand.u32 %s210, 1
        %s212 = ssub.s32 0, %s211
        %s213 = scalar_select %p208, %s212, %s211
        %p214 = scmp.ne.s32.totalorder %s213, 0
        %p215 = scmp.lt.s32.totalorder %s213, 0
        %p216 = pnand %p215, %p214
        %p217 = pneg %p216
        %s218 = sadd.s32 %s213, 2
        %s219 = scalar_select %p217, %s218, %s213
        %p220 = scmp.eq.s32.totalorder %s25, 0
        // Predicated region
        $region41: #{tpu_custom_call.1} parent=35 // pred_check
          %p221 = pneg %p220
        $region42: #{tpu_custom_call.1} parent=35 // pred_check_branch
          %223 = sbr.rel (%p221) target = $region44
        $region43: #{tpu_custom_call.1} parent=35 // pred_region
          %p224 = scmp.eq.s32.totalorder %s25, 2
          %s225 = smul.u32 %s25, 64
          %s226 = ssub.s32 %s225, 8
          %p227 = scmp.gt.s32.totalorder %s226, 0
          %s228 = scalar_select %p227, %s226, 0
          // Predicated region
          $region45: #{tpu_custom_call.1} parent=43 // pred_check
            %p229 = pneg %p224
          $region46: #{tpu_custom_call.1} parent=43 // pred_check_branch
            %231 = sbr.rel (%p229) target = $region48
          $region47: #{tpu_custom_call.1} parent=43 // pred_region
            %s232 = smul.u32 %s24, 192
            %s233 = sadd.s32 %s228, %s232
            %s234 = smul.addr %s233, 16
            %s235 = scalar_lea.hbm %s0, %s234
            %s236 = smul.u32 %s219, 80
            %s237 = sadd.s32 8, %s236
            %s238 = scalar_lea.vmem [#allocation2], %s237
            %s239 = scalar_lea.sflag [#allocation3], %s219
            // Predicated region
            $region49: #{tpu_custom_call.1} parent=47 // pred_check
              _
            $region50: #{tpu_custom_call.1} parent=47 // pred_check_branch
              %241 = sbr.rel target = $region52
            $region51: #{tpu_custom_call.1} parent=47 // pred_region
              %242 = sst [smem:[#allocation10]] [#allocation9]
              %243 = sst [smem:[#allocation11]] [#allocation8]
            $region52: #{tpu_custom_call.1} parent=47 // pred_fallthru
              _
            %245 = shalt.err (0)
            %s247 = sshll.u32 %s238, 4
            %s248 = int_to_ptr.vmem [resolvable:$true] %s247
            %250 = dma.hbm_to_vmem [thread:$0]  %s235, 1024, %s248, %s239
          $region48: #{tpu_custom_call.1} parent=43 // pred_fallthru
            _
          %p251 = scmp.ne.s32.totalorder %s25, 2
          // Predicated region
          $region53: #{tpu_custom_call.1} parent=43 // pred_check
            %p252 = pneg %p251
          $region54: #{tpu_custom_call.1} parent=43 // pred_check_branch
            %254 = sbr.rel (%p252) target = $region56
          $region55: #{tpu_custom_call.1} parent=43 // pred_region
            %s255 = smul.u32 %s24, 192
            %s256 = sadd.s32 %s228, %s255
            %s257 = smul.addr %s256, 16
            %s258 = scalar_lea.hbm %s0, %s257
            %s259 = smul.u32 %s219, 80
            %s260 = sadd.s32 8, %s259
            %s261 = scalar_lea.vmem [#allocation2], %s260
            %s262 = scalar_lea.sflag [#allocation3], %s219
            // Predicated region
            $region57: #{tpu_custom_call.1} parent=55 // pred_check
              _
            $region58: #{tpu_custom_call.1} parent=55 // pred_check_branch
              %264 = sbr.rel target = $region60
            $region59: #{tpu_custom_call.1} parent=55 // pred_region
              %265 = sst [smem:[#allocation10]] [#allocation13]
              %266 = sst [smem:[#allocation11]] [#allocation12]
            $region60: #{tpu_custom_call.1} parent=55 // pred_fallthru
              _
            %268 = shalt.err (0)
            %s270 = sshll.u32 %s261, 4
            %s271 = int_to_ptr.vmem [resolvable:$true] %s270
            %273 = dma.hbm_to_vmem [thread:$0]  %s258, 1152, %s271, %s262
          $region56: #{tpu_custom_call.1} parent=43 // pred_fallthru
            _
          %p274 = scmp.ne.s32.totalorder %s25, 0
          %p275 = pnand %p274, %p251
          %p276 = pneg %p275
          // Predicated region
          $region61: #{tpu_custom_call.1} parent=43 // pred_check
            _
          $region62: #{tpu_custom_call.1} parent=43 // pred_check_branch
            %278 = sbr.rel (%p275) target = $region64
          $region63: #{tpu_custom_call.1} parent=43 // pred_region
            %s279 = smul.u32 %s24, 192
            %s280 = sadd.s32 %s228, %s279
            %s281 = smul.addr %s280, 16
            %s282 = scalar_lea.hbm %s0, %s281
            %s283 = smul.u32 %s219, 80
            %s284 = sadd.s32 8, %s283
            %s285 = scalar_lea.vmem [#allocation2], %s284
            %s286 = scalar_lea.sflag [#allocation3], %s219
            // Predicated region
            $region65: #{tpu_custom_call.1} parent=63 // pred_check
              _
            $region66: #{tpu_custom_call.1} parent=63 // pred_check_branch
              %288 = sbr.rel target = $region68
            $region67: #{tpu_custom_call.1} parent=63 // pred_region
              %289 = sst [smem:[#allocation10]] [#allocation15]
              %290 = sst [smem:[#allocation11]] [#allocation14]
            $region68: #{tpu_custom_call.1} parent=63 // pred_fallthru
              _
            %292 = shalt.err (0)
            %s294 = sshll.u32 %s285, 4
            %s295 = int_to_ptr.vmem [resolvable:$true] %s294
            %297 = dma.hbm_to_vmem [thread:$0]  %s282, 1280, %s295, %s286
          $region64: #{tpu_custom_call.1} parent=43 // pred_fallthru
            _
        $region44: #{tpu_custom_call.1} parent=35 // pred_fallthru
          _
        %s298 = sadd.s32 %s25, 1
        %p299 = scmp.lt.s32.totalorder %s298, 3
        // Predicated region
        $region69: #{tpu_custom_call.1} parent=35 // pred_check
          %p300 = pneg %p299
        $region70: #{tpu_custom_call.1} parent=35 // pred_check_branch
          %302 = sbr.rel (%p300) target = $region72
        $region71: #{tpu_custom_call.1} parent=35 // pred_region
          %s303 = ssub.s32 1, %s219
          %p304 = scmp.eq.s32.totalorder %s298, 0
          %p305 = scmp.eq.s32.totalorder %s298, 2
          %s306 = smul.u32 %s298, 64
          %s307 = ssub.s32 %s306, 8
          %p308 = scmp.gt.s32.totalorder %s307, 0
          %s309 = scalar_select %p308, %s307, 0
          %s310 = scalar_select %p304, 8, 0
          %p311 = pnand %p304, %p305
          %p312 = pneg %p311
          // Predicated region
          $region73: #{tpu_custom_call.1} parent=71 // pred_check
            _
          $region74: #{tpu_custom_call.1} parent=71 // pred_check_branch
            %314 = sbr.rel (%p311) target = $region76
          $region75: #{tpu_custom_call.1} parent=71 // pred_region
            %s315 = smul.u32 %s24, 192
            %s316 = sadd.s32 %s309, %s315
            %s317 = smul.addr %s316, 16
            %s318 = scalar_lea.hbm %s0, %s317
            %s319 = smul.u32 %s303, 80
            %s320 = sadd.s32 %s310, %s319
            %s321 = scalar_lea.vmem [#allocation2], %s320
            %s322 = scalar_lea.sflag [#allocation3], %s303
            // Predicated region
            $region77: #{tpu_custom_call.1} parent=75 // pred_check
              _
            $region78: #{tpu_custom_call.1} parent=75 // pred_check_branch
              %324 = sbr.rel target = $region80
            $region79: #{tpu_custom_call.1} parent=75 // pred_region
              %325 = sst [smem:[#allocation10]] [#allocation17]
              %326 = sst [smem:[#allocation11]] [#allocation16]
            $region80: #{tpu_custom_call.1} parent=75 // pred_fallthru
              _
            %328 = shalt.err (0)
            %s330 = sshll.u32 %s321, 4
            %s331 = int_to_ptr.vmem [resolvable:$true] %s330
            %333 = dma.hbm_to_vmem [thread:$0]  %s318, 1024, %s331, %s322
          $region76: #{tpu_custom_call.1} parent=71 // pred_fallthru
            _
          %p334 = pneg %p304
          %p335 = pneg %p305
          %p336 = pnand %p304, %p335
          %p337 = pneg %p336
          %p338 = pnand %p334, %p305
          %p339 = pneg %p338
          %p340 = por %p337, %p339
          // Predicated region
          $region81: #{tpu_custom_call.1} parent=71 // pred_check
            %p341 = pneg %p340
          $region82: #{tpu_custom_call.1} parent=71 // pred_check_branch
            %343 = sbr.rel (%p341) target = $region84
          $region83: #{tpu_custom_call.1} parent=71 // pred_region
            %s344 = smul.u32 %s24, 192
            %s345 = sadd.s32 %s309, %s344
            %s346 = smul.addr %s345, 16
            %s347 = scalar_lea.hbm %s0, %s346
            %s348 = smul.u32 %s303, 80
            %s349 = sadd.s32 %s310, %s348
            %s350 = scalar_lea.vmem [#allocation2], %s349
            %s351 = scalar_lea.sflag [#allocation3], %s303
            // Predicated region
            $region85: #{tpu_custom_call.1} parent=83 // pred_check
              _
            $region86: #{tpu_custom_call.1} parent=83 // pred_check_branch
              %353 = sbr.rel target = $region88
            $region87: #{tpu_custom_call.1} parent=83 // pred_region
              %354 = sst [smem:[#allocation10]] [#allocation19]
              %355 = sst [smem:[#allocation11]] [#allocation18]
            $region88: #{tpu_custom_call.1} parent=83 // pred_fallthru
              _
            %357 = shalt.err (0)
            %s359 = sshll.u32 %s350, 4
            %s360 = int_to_ptr.vmem [resolvable:$true] %s359
            %362 = dma.hbm_to_vmem [thread:$0]  %s347, 1152, %s360, %s351
          $region84: #{tpu_custom_call.1} parent=71 // pred_fallthru
            _
          %p363 = scmp.ne.s32.totalorder %s298, 0
          %p364 = scmp.ne.s32.totalorder %s298, 2
          %p365 = pnand %p363, %p364
          %p366 = pneg %p365
          // Predicated region
          $region89: #{tpu_custom_call.1} parent=71 // pred_check
            _
          $region90: #{tpu_custom_call.1} parent=71 // pred_check_branch
            %368 = sbr.rel (%p365) target = $region92
          $region91: #{tpu_custom_call.1} parent=71 // pred_region
            %s369 = smul.u32 %s24, 192
            %s370 = sadd.s32 %s309, %s369
            %s371 = smul.addr %s370, 16
            %s372 = scalar_lea.hbm %s0, %s371
            %s373 = smul.u32 %s303, 80
            %s374 = sadd.s32 %s310, %s373
            %s375 = scalar_lea.vmem [#allocation2], %s374
            %s376 = scalar_lea.sflag [#allocation3], %s303
            // Predicated region
            $region93: #{tpu_custom_call.1} parent=91 // pred_check
              _
            $region94: #{tpu_custom_call.1} parent=91 // pred_check_branch
              %378 = sbr.rel target = $region96
            $region95: #{tpu_custom_call.1} parent=91 // pred_region
              %379 = sst [smem:[#allocation10]] [#allocation21]
              %380 = sst [smem:[#allocation11]] [#allocation20]
            $region96: #{tpu_custom_call.1} parent=91 // pred_fallthru
              _
            %382 = shalt.err (0)
            %s384 = sshll.u32 %s375, 4
            %s385 = int_to_ptr.vmem [resolvable:$true] %s384
            %387 = dma.hbm_to_vmem [thread:$0]  %s372, 1280, %s385, %s376
          $region92: #{tpu_custom_call.1} parent=71 // pred_fallthru
            _
        $region72: #{tpu_custom_call.1} parent=35 // pred_fallthru
          _
        %p388 = scmp.eq.s32.totalorder %s25, 2
        %s389 = smul.u32 %s25, 64
        %s390 = ssub.s32 %s389, 8
        %p391 = scmp.gt.s32.totalorder %s390, 0
        %s392 = scalar_select %p391, %s390, 0
        %s393 = scalar_select %p220, 8, 0
        %p394 = pnand %p220, %p388
        %p395 = pneg %p394
        // Predicated region
        $region97: #{tpu_custom_call.1} parent=35 // pred_check
          _
        $region98: #{tpu_custom_call.1} parent=35 // pred_check_branch
          %397 = sbr.rel (%p394) target = $region100
        $region99: #{tpu_custom_call.1} parent=35 // pred_region
          %s398 = scalar_lea.sflag [#allocation3], %s219
          %s399 = smul.u32 64, 1
          %s400 = sshll.u32 %s399, 4
          %401 = dma.done %s398, %s400
        $region100: #{tpu_custom_call.1} parent=35 // pred_fallthru
          _
        %p402 = pneg %p220
        %p403 = pneg %p388
        %p404 = pnand %p220, %p403
        %p405 = pneg %p404
        %p406 = pnand %p402, %p388
        %p407 = pneg %p406
        %p408 = por %p405, %p407
        // Predicated region
        $region101: #{tpu_custom_call.1} parent=35 // pred_check
          %p409 = pneg %p408
        $region102: #{tpu_custom_call.1} parent=35 // pred_check_branch
          %411 = sbr.rel (%p409) target = $region104
        $region103: #{tpu_custom_call.1} parent=35 // pred_region
          %s412 = scalar_lea.sflag [#allocation3], %s219
          %s413 = smul.u32 72, 1
          %s414 = sshll.u32 %s413, 4
          %415 = dma.done %s412, %s414
        $region104: #{tpu_custom_call.1} parent=35 // pred_fallthru
          _
        %p416 = scmp.ne.s32.totalorder %s25, 0
        %p417 = scmp.ne.s32.totalorder %s25, 2
        %p418 = pnand %p416, %p417
        %p419 = pneg %p418
        // Predicated region
        $region105: #{tpu_custom_call.1} parent=35 // pred_check
          _
        $region106: #{tpu_custom_call.1} parent=35 // pred_check_branch
          %421 = sbr.rel (%p418) target = $region108
        $region107: #{tpu_custom_call.1} parent=35 // pred_region
          %s422 = scalar_lea.sflag [#allocation3], %s219
          %s423 = smul.u32 80, 1
          %s424 = sshll.u32 %s423, 4
          %425 = dma.done %s422, %s424
        $region108: #{tpu_custom_call.1} parent=35 // pred_fallthru
          _
        // Predicated region
        $region109: #{tpu_custom_call.1} parent=35 // pred_check
          %p426 = pneg %p220
        $region110: #{tpu_custom_call.1} parent=35 // pred_check_branch
          %428 = sbr.rel (%p426) target = $region112
        $region111: #{tpu_custom_call.1} parent=35 // pred_region
          %s429 = smul.u32 %s219, 80
          %s430 = scalar_lea.vmem [#allocation2], %s429
          %431 = vst [vmem:[%s430] sm:$0xff] 0.0
        $region112: #{tpu_custom_call.1} parent=35 // pred_fallthru
          _
        // Predicated region
        $region113: #{tpu_custom_call.1} parent=35 // pred_check
          %p432 = pneg %p388
        $region114: #{tpu_custom_call.1} parent=35 // pred_check_branch
          %434 = sbr.rel (%p432) target = $region116
        $region115: #{tpu_custom_call.1} parent=35 // pred_region
          %s435 = smul.u32 %s219, 80
          %s436 = scalar_lea.vmem [#allocation2], %s435
          %437 = vst [vmem:[%s436 + $0x48] sm:$0xff] 0.0
        $region116: #{tpu_custom_call.1} parent=35 // pred_fallthru
          _
        %s438 = smul.u32 %s219, 80
        %s439 = scalar_lea.vmem [#allocation2], %s438
        %v440 = vld [vmem:[%s439] sm:$0xff]
        %v441 = vld [vmem:[%s439 + $0x8] sm:$0xff]
        %v442 = vld [vmem:[%s439 + $0x10] sm:$0xff]
        %v443 = vld [vmem:[%s439 + $0x18] sm:$0xff]
        %v444 = vld [vmem:[%s439 + $0x20] sm:$0xff]
        %v445 = vld [vmem:[%s439 + $0x28] sm:$0xff]
        %v446 = vld [vmem:[%s439 + $0x30] sm:$0xff]
        %v447 = vld [vmem:[%s439 + $0x38] sm:$0xff]
        %v448 = vld [vmem:[%s439 + $0x40] sm:$0xff]
        %v449 = vld [vmem:[%s439 + $0x48] sm:$0xff]
        %v450 = vrot.slane %v440, 4
        %v451 = vrot.slane %v441, 4
        %v452 = vrot.slane %v442, 4
        %v453 = vrot.slane %v443, 4
        %v454 = vrot.slane %v444, 4
        %v455 = vrot.slane %v445, 4
        %v456 = vrot.slane %v446, 4
        %v457 = vrot.slane %v447, 4
        %v458 = vrot.slane %v448, 4
        %v459 = vlaneseq
        %v460 = vshrl.u32 %v459, 7
        %vm461 = vcmp.lt.s32.totalorder %v460, 4
        %v462 = vsel %vm461, %v457, %v458
        %v463 = vsel %vm461, %v456, %v457
        %v464 = vsel %vm461, %v455, %v456
        %v465 = vsel %vm461, %v454, %v455
        %v466 = vsel %vm461, %v453, %v454
        %v467 = vsel %vm461, %v452, %v453
        %v468 = vsel %vm461, %v451, %v452
        %v469 = vsel %vm461, %v450, %v451
        %v470 = vpack.c.bf16 %v468, %v469
        %v471 = vpack.c.bf16 %v466, %v467
        %v472 = vpack.c.bf16 %v464, %v465
        %v473 = vpack.c.bf16 %v462, %v463
        %v474 = vld [vmem:[#allocation4] sm:$0xf]
        %v475 = vld [vmem:[#allocation4 + $0x4] sm:$0xf]
        %v476 = vld [vmem:[#allocation4 + $0x8] sm:$0xf]
        %v477 = vld [vmem:[#allocation4 + $0xc] sm:$0xf]
        %v478 = vld [vmem:[#allocation4 + $0x10] sm:$0xf]
        %v479 = vld [vmem:[#allocation4 + $0x14] sm:$0xf]
        %v480 = vld [vmem:[#allocation4 + $0x18] sm:$0xf]
        %v481 = vld [vmem:[#allocation4 + $0x1c] sm:$0xf]
        %v482 = vld [vmem:[#allocation4 + $0x20] sm:$0xf]
        %v483 = vld [vmem:[#allocation4 + $0x24] sm:$0xf]
        %v484 = vld [vmem:[#allocation4 + $0x28] sm:$0xf]
        %v485 = vld [vmem:[#allocation4 + $0x2c] sm:$0xf]
        %v486 = vld [vmem:[#allocation4 + $0x30] sm:$0xf]
        %v487 = vld [vmem:[#allocation4 + $0x34] sm:$0xf]
        %v488 = vld [vmem:[#allocation4 + $0x38] sm:$0xf]
        %v489 = vld [vmem:[#allocation4 + $0x3c] sm:$0xf]
        %v490 = vrot.slane %v440, 5
        %v491 = vrot.slane %v441, 5
        %v492 = vrot.slane %v442, 5
        %v493 = vrot.slane %v443, 5
        %v494 = vrot.slane %v444, 5
        %v495 = vrot.slane %v445, 5
        %v496 = vrot.slane %v446, 5
        %v497 = vrot.slane %v447, 5
        %v498 = vrot.slane %v448, 5
        %vm499 = vcmp.lt.s32.totalorder %v460, 3
        %v500 = vsel %vm499, %v497, %v498
        %v501 = vsel %vm499, %v496, %v497
        %v502 = vsel %vm499, %v495, %v496
        %v503 = vsel %vm499, %v494, %v495
        %v504 = vsel %vm499, %v493, %v494
        %v505 = vsel %vm499, %v492, %v493
        %v506 = vsel %vm499, %v491, %v492
        %v507 = vsel %vm499, %v490, %v491
        %v508 = vpack.c.bf16 %v506, %v507
        %v509 = vpack.c.bf16 %v504, %v505
        %v510 = vpack.c.bf16 %v502, %v503
        %v511 = vpack.c.bf16 %v500, %v501
        %v512 = vld [vmem:[#allocation4 + $0x40] sm:$0xf]
        %v513 = vld [vmem:[#allocation4 + $0x44] sm:$0xf]
        %v514 = vld [vmem:[#allocation4 + $0x48] sm:$0xf]
        %v515 = vld [vmem:[#allocation4 + $0x4c] sm:$0xf]
        %v516 = vld [vmem:[#allocation4 + $0x50] sm:$0xf]
        %v517 = vld [vmem:[#allocation4 + $0x54] sm:$0xf]
        %v518 = vld [vmem:[#allocation4 + $0x58] sm:$0xf]
        %v519 = vld [vmem:[#allocation4 + $0x5c] sm:$0xf]
        %v520 = vld [vmem:[#allocation4 + $0x60] sm:$0xf]
        %v521 = vld [vmem:[#allocation4 + $0x64] sm:$0xf]
        %v522 = vld [vmem:[#allocation4 + $0x68] sm:$0xf]
        %v523 = vld [vmem:[#allocation4 + $0x6c] sm:$0xf]
        %v524 = vld [vmem:[#allocation4 + $0x70] sm:$0xf]
        %v525 = vld [vmem:[#allocation4 + $0x74] sm:$0xf]
        %v526 = vld [vmem:[#allocation4 + $0x78] sm:$0xf]
        %v527 = vld [vmem:[#allocation4 + $0x7c] sm:$0xf]
        %v544 = vunpack.c.l.b16 %v512
        %v545 = vunpack.c.l.b16 %v513
        %v546 = vunpack.c.l.b16 %v514
        %v547 = vunpack.c.l.b16 %v515
        %v548 = vunpack.c.l.b16 %v516
        %v549 = vunpack.c.l.b16 %v517
        %v550 = vunpack.c.l.b16 %v518
        %v551 = vunpack.c.l.b16 %v519
        %v552 = vunpack.c.l.b16 %v520
        %v553 = vunpack.c.l.b16 %v521
        %v554 = vunpack.c.l.b16 %v522
        %v555 = vunpack.c.l.b16 %v523
        %v556 = vunpack.c.l.b16 %v524
        %v557 = vunpack.c.l.b16 %v525
        %v558 = vunpack.c.l.b16 %v526
        %v559 = vunpack.c.l.b16 %v527
        %v560 = vpack.c.b16 %v545, %v544
        %v561 = vpack.c.b16 %v547, %v546
        %v562 = vpack.c.b16 %v549, %v548
        %v563 = vpack.c.b16 %v551, %v550
        %v564 = vpack.c.b16 %v553, %v552
        %v565 = vpack.c.b16 %v555, %v554
        %v566 = vpack.c.b16 %v557, %v556
        %v567 = vpack.c.b16 %v559, %v558
        %576 = vmatprep.subr.bf16.mxu0 0
        %577 = vmatpush1.bf16.msra.mxu0 %v560
        %578 = vmatprep.subr.bf16.mxu0 0
        %579 = vmatpush1.bf16.msra.mxu0 %v561
        %580 = vmatprep.subr.bf16.mxu0 0
        %581 = vmatpush1.bf16.msra.mxu0 %v562
        %582 = vmatprep.subr.bf16.mxu0 0
        %583 = vmatpush1.bf16.msra.mxu0 %v563
        %584 = vmatprep.subr.bf16.mxu0 0
        %585 = vmatpush1.bf16.msra.mxu0 %v564
        %586 = vmatprep.subr.bf16.mxu0 0
        %587 = vmatpush1.bf16.msra.mxu0 %v565
        %588 = vmatprep.subr.bf16.mxu0 0
        %589 = vmatpush1.bf16.msra.mxu0 %v566
        %590 = vmatprep.subr.bf16.mxu0 0
        %591 = vmatpush1.bf16.msra.mxu0 %v567
        %592 = vmatprep.subr.bf16.mxu0 0
        %593 = vmatpush1.bf16.msra.mxu0 0
        %594 = vmatprep.subr.bf16.mxu0 0
        %595 = vmatpush1.bf16.msra.mxu0 0
        %596 = vmatprep.subr.bf16.mxu0 0
        %597 = vmatpush1.bf16.msra.mxu0 0
        %598 = vmatprep.subr.bf16.mxu0 0
        %599 = vmatpush1.bf16.msra.mxu0 0
        %600 = vmatprep.subr.bf16.mxu0 0
        %601 = vmatpush1.bf16.msra.mxu0 0
        %602 = vmatprep.subr.bf16.mxu0 0
        %603 = vmatpush1.bf16.msra.mxu0 0
        %604 = vmatprep.subr.bf16.mxu0 0
        %605 = vmatpush1.bf16.msra.mxu0 0
        %606 = vmatprep.subr.bf16.mxu0 0
        %607 = vmatpush1.bf16.msra.mxu0 0
        %608 = vmatprep.mubr.bf16.mxu0 0
        %609 = vmatmul.mubr.bf16.gmra.mrb[0].mxu0 %v508
        %v610 = vpop.f32.mrb[0].mxu0
        %v611 = vadd.f32 0.0, %v610
        %v612 = vpop.f32.mrb[0].mxu0
        %v613 = vpop.f32.mrb[0].mxu0
        %v614 = vadd.f32 0.0, %v613
        %v615 = vpop.f32.mrb[0].mxu0
        %616 = vmatprep.mubr.bf16.mxu0 0
        %617 = vmatmul.mubr.bf16.gmra.mrb[0].mxu0 %v509
        %v618 = vpop.f32.mrb[0].mxu0
        %v619 = vadd.f32 0.0, %v618
        %v620 = vpop.f32.mrb[0].mxu0
        %v621 = vpop.f32.mrb[0].mxu0
        %v622 = vadd.f32 0.0, %v621
        %v623 = vpop.f32.mrb[0].mxu0
        %624 = vmatprep.mubr.bf16.mxu0 0
        %625 = vmatmul.mubr.bf16.gmra.mrb[0].mxu0 %v510
        %v626 = vpop.f32.mrb[0].mxu0
        %v627 = vadd.f32 0.0, %v626
        %v628 = vpop.f32.mrb[0].mxu0
        %v629 = vpop.f32.mrb[0].mxu0
        %v630 = vadd.f32 0.0, %v629
        %v631 = vpop.f32.mrb[0].mxu0
        %632 = vmatprep.mubr.bf16.mxu0 0
        %633 = vmatmul.mubr.bf16.gmra.mrb[0].mxu0 %v511
        %v634 = vpop.f32.mrb[0].mxu0
        %v635 = vadd.f32 0.0, %v634
        %v636 = vpop.f32.mrb[0].mxu0
        %v637 = vpop.f32.mrb[0].mxu0
        %v638 = vadd.f32 0.0, %v637
        %v639 = vpop.f32.mrb[0].mxu0
        %640 = vdwg.mxu0
        %v657 = vunpack.c.l.b16 %v474
        %v658 = vunpack.c.l.b16 %v475
        %v659 = vunpack.c.l.b16 %v476
        %v660 = vunpack.c.l.b16 %v477
        %v661 = vunpack.c.l.b16 %v478
        %v662 = vunpack.c.l.b16 %v479
        %v663 = vunpack.c.l.b16 %v480
        %v664 = vunpack.c.l.b16 %v481
        %v665 = vunpack.c.l.b16 %v482
        %v666 = vunpack.c.l.b16 %v483
        %v667 = vunpack.c.l.b16 %v484
        %v668 = vunpack.c.l.b16 %v485
        %v669 = vunpack.c.l.b16 %v486
        %v670 = vunpack.c.l.b16 %v487
        %v671 = vunpack.c.l.b16 %v488
        %v672 = vunpack.c.l.b16 %v489
        %v673 = vpack.c.b16 %v658, %v657
        %v674 = vpack.c.b16 %v660, %v659
        %v675 = vpack.c.b16 %v662, %v661
        %v676 = vpack.c.b16 %v664, %v663
        %v677 = vpack.c.b16 %v666, %v665
        %v678 = vpack.c.b16 %v668, %v667
        %v679 = vpack.c.b16 %v670, %v669
        %v680 = vpack.c.b16 %v672, %v671
        %689 = vmatprep.subr.bf16.mxu0 0
        %690 = vmatpush1.bf16.msra.mxu0 %v673
        %691 = vmatprep.subr.bf16.mxu0 0
        %692 = vmatpush1.bf16.msra.mxu0 %v674
        %693 = vmatprep.subr.bf16.mxu0 0
        %694 = vmatpush1.bf16.msra.mxu0 %v675
        %695 = vmatprep.subr.bf16.mxu0 0
        %696 = vmatpush1.bf16.msra.mxu0 %v676
        %697 = vmatprep.subr.bf16.mxu0 0
        %698 = vmatpush1.bf16.msra.mxu0 %v677
        %699 = vmatprep.subr.bf16.mxu0 0
        %700 = vmatpush1.bf16.msra.mxu0 %v678
        %701 = vmatprep.subr.bf16.mxu0 0
        %702 = vmatpush1.bf16.msra.mxu0 %v679
        %703 = vmatprep.subr.bf16.mxu0 0
        %704 = vmatpush1.bf16.msra.mxu0 %v680
        %705 = vmatprep.subr.bf16.mxu0 0
        %706 = vmatpush1.bf16.msra.mxu0 0
        %707 = vmatprep.subr.bf16.mxu0 0
        %708 = vmatpush1.bf16.msra.mxu0 0
        %709 = vmatprep.subr.bf16.mxu0 0
        %710 = vmatpush1.bf16.msra.mxu0 0
        %711 = vmatprep.subr.bf16.mxu0 0
        %712 = vmatpush1.bf16.msra.mxu0 0
        %713 = vmatprep.subr.bf16.mxu0 0
        %714 = vmatpush1.bf16.msra.mxu0 0
        %715 = vmatprep.subr.bf16.mxu0 0
        %716 = vmatpush1.bf16.msra.mxu0 0
        %717 = vmatprep.subr.bf16.mxu0 0
        %718 = vmatpush1.bf16.msra.mxu0 0
        %719 = vmatprep.subr.bf16.mxu0 0
        %720 = vmatpush1.bf16.msra.mxu0 0
        %721 = vmatprep.mubr.bf16.mxu0 0
        %722 = vmatmul.mubr.bf16.gmra.mrb[0].mxu0 %v470
        %v723 = vpop.f32.mrb[0].mxu0
        %v724 = vadd.f32 %v611, %v723
        %v725 = vpop.f32.mrb[0].mxu0
        %v726 = vpop.f32.mrb[0].mxu0
        %v727 = vadd.f32 %v614, %v726
        %v728 = vpop.f32.mrb[0].mxu0
        %729 = vmatprep.mubr.bf16.mxu0 0
        %730 = vmatmul.mubr.bf16.gmra.mrb[0].mxu0 %v471
        %v731 = vpop.f32.mrb[0].mxu0
        %v732 = vadd.f32 %v619, %v731
        %v733 = vpop.f32.mrb[0].mxu0
        %v734 = vpop.f32.mrb[0].mxu0
        %v735 = vadd.f32 %v622, %v734
        %v736 = vpop.f32.mrb[0].mxu0
        %737 = vmatprep.mubr.bf16.mxu0 0
        %738 = vmatmul.mubr.bf16.gmra.mrb[0].mxu0 %v472
        %v739 = vpop.f32.mrb[0].mxu0
        %v740 = vadd.f32 %v627, %v739
        %v741 = vpop.f32.mrb[0].mxu0
        %v742 = vpop.f32.mrb[0].mxu0
        %v743 = vadd.f32 %v630, %v742
        %v744 = vpop.f32.mrb[0].mxu0
        %745 = vmatprep.mubr.bf16.mxu0 0
        %746 = vmatmul.mubr.bf16.gmra.mrb[0].mxu0 %v473
        %v747 = vpop.f32.mrb[0].mxu0
        %v748 = vadd.f32 %v635, %v747
        %v749 = vpop.f32.mrb[0].mxu0
        %v750 = vpop.f32.mrb[0].mxu0
        %v751 = vadd.f32 %v638, %v750
        %v752 = vpop.f32.mrb[0].mxu0
        %753 = vdwg.mxu0
        %v754 = vrot.slane %v440, 6
        %v755 = vrot.slane %v441, 6
        %v756 = vrot.slane %v442, 6
        %v757 = vrot.slane %v443, 6
        %v758 = vrot.slane %v444, 6
        %v759 = vrot.slane %v445, 6
        %v760 = vrot.slane %v446, 6
        %v761 = vrot.slane %v447, 6
        %v762 = vrot.slane %v448, 6
        %vm763 = vcmp.lt.s32.totalorder %v460, 2
        %v764 = vsel %vm763, %v761, %v762
        %v765 = vsel %vm763, %v760, %v761
        %v766 = vsel %vm763, %v759, %v760
        %v767 = vsel %vm763, %v758, %v759
        %v768 = vsel %vm763, %v757, %v758
        %v769 = vsel %vm763, %v756, %v757
        %v770 = vsel %vm763, %v755, %v756
        %v771 = vsel %vm763, %v754, %v755
        %v772 = vpack.c.bf16 %v770, %v771
        %v773 = vpack.c.bf16 %v768, %v769
        %v774 = vpack.c.bf16 %v766, %v767
        %v775 = vpack.c.bf16 %v764, %v765
        %v776 = vld [vmem:[#allocation4 + $0x80] sm:$0xf]
        %v777 = vld [vmem:[#allocation4 + $0x84] sm:$0xf]
        %v778 = vld [vmem:[#allocation4 + $0x88] sm:$0xf]
        %v779 = vld [vmem:[#allocation4 + $0x8c] sm:$0xf]
        %v780 = vld [vmem:[#allocation4 + $0x90] sm:$0xf]
        %v781 = vld [vmem:[#allocation4 + $0x94] sm:$0xf]
        %v782 = vld [vmem:[#allocation4 + $0x98] sm:$0xf]
        %v783 = vld [vmem:[#allocation4 + $0x9c] sm:$0xf]
        %v784 = vld [vmem:[#allocation4 + $0xa0] sm:$0xf]
        %v785 = vld [vmem:[#allocation4 + $0xa4] sm:$0xf]
        %v786 = vld [vmem:[#allocation4 + $0xa8] sm:$0xf]
        %v787 = vld [vmem:[#allocation4 + $0xac] sm:$0xf]
        %v788 = vld [vmem:[#allocation4 + $0xb0] sm:$0xf]
        %v789 = vld [vmem:[#allocation4 + $0xb4] sm:$0xf]
        %v790 = vld [vmem:[#allocation4 + $0xb8] sm:$0xf]
        %v791 = vld [vmem:[#allocation4 + $0xbc] sm:$0xf]
        %v808 = vunpack.c.l.b16 %v776
        %v809 = vunpack.c.l.b16 %v777
        %v810 = vunpack.c.l.b16 %v778
        %v811 = vunpack.c.l.b16 %v779
        %v812 = vunpack.c.l.b16 %v780
        %v813 = vunpack.c.l.b16 %v781
        %v814 = vunpack.c.l.b16 %v782
        %v815 = vunpack.c.l.b16 %v783
        %v816 = vunpack.c.l.b16 %v784
        %v817 = vunpack.c.l.b16 %v785
        %v818 = vunpack.c.l.b16 %v786
        %v819 = vunpack.c.l.b16 %v787
        %v820 = vunpack.c.l.b16 %v788
        %v821 = vunpack.c.l.b16 %v789
        %v822 = vunpack.c.l.b16 %v790
        %v823 = vunpack.c.l.b16 %v791
        %v824 = vpack.c.b16 %v809, %v808
        %v825 = vpack.c.b16 %v811, %v810
        %v826 = vpack.c.b16 %v813, %v812
        %v827 = vpack.c.b16 %v815, %v814
        %v828 = vpack.c.b16 %v817, %v816
        %v829 = vpack.c.b16 %v819, %v818
        %v830 = vpack.c.b16 %v821, %v820
        %v831 = vpack.c.b16 %v823, %v822
        %840 = vmatprep.subr.bf16.mxu0 0
        %841 = vmatpush1.bf16.msra.mxu0 %v824
        %842 = vmatprep.subr.bf16.mxu0 0
        %843 = vmatpush1.bf16.msra.mxu0 %v825
        %844 = vmatprep.subr.bf16.mxu0 0
        %845 = vmatpush1.bf16.msra.mxu0 %v826
        %846 = vmatprep.subr.bf16.mxu0 0
        %847 = vmatpush1.bf16.msra.mxu0 %v827
        %848 = vmatprep.subr.bf16.mxu0 0
        %849 = vmatpush1.bf16.msra.mxu0 %v828
        %850 = vmatprep.subr.bf16.mxu0 0
        %851 = vmatpush1.bf16.msra.mxu0 %v829
        %852 = vmatprep.subr.bf16.mxu0 0
        %853 = vmatpush1.bf16.msra.mxu0 %v830
        %854 = vmatprep.subr.bf16.mxu0 0
        %855 = vmatpush1.bf16.msra.mxu0 %v831
        %856 = vmatprep.subr.bf16.mxu0 0
        %857 = vmatpush1.bf16.msra.mxu0 0
        %858 = vmatprep.subr.bf16.mxu0 0
        %859 = vmatpush1.bf16.msra.mxu0 0
        %860 = vmatprep.subr.bf16.mxu0 0
        %861 = vmatpush1.bf16.msra.mxu0 0
        %862 = vmatprep.subr.bf16.mxu0 0
        %863 = vmatpush1.bf16.msra.mxu0 0
        %864 = vmatprep.subr.bf16.mxu0 0
        %865 = vmatpush1.bf16.msra.mxu0 0
        %866 = vmatprep.subr.bf16.mxu0 0
        %867 = vmatpush1.bf16.msra.mxu0 0
        %868 = vmatprep.subr.bf16.mxu0 0
        %869 = vmatpush1.bf16.msra.mxu0 0
        %870 = vmatprep.subr.bf16.mxu0 0
        %871 = vmatpush1.bf16.msra.mxu0 0
        %872 = vmatprep.mubr.bf16.mxu0 0
        %873 = vmatmul.mubr.bf16.gmra.mrb[0].mxu0 %v772
        %v874 = vpop.f32.mrb[0].mxu0
        %v875 = vadd.f32 0.0, %v874
        %v876 = vpop.f32.mrb[0].mxu0
        %v877 = vpop.f32.mrb[0].mxu0
        %v878 = vadd.f32 0.0, %v877
        %v879 = vpop.f32.mrb[0].mxu0
        %880 = vmatprep.mubr.bf16.mxu0 0
        %881 = vmatmul.mubr.bf16.gmra.mrb[0].mxu0 %v773
        %v882 = vpop.f32.mrb[0].mxu0
        %v883 = vadd.f32 0.0, %v882
        %v884 = vpop.f32.mrb[0].mxu0
        %v885 = vpop.f32.mrb[0].mxu0
        %v886 = vadd.f32 0.0, %v885
        %v887 = vpop.f32.mrb[0].mxu0
        %888 = vmatprep.mubr.bf16.mxu0 0
        %889 = vmatmul.mubr.bf16.gmra.mrb[0].mxu0 %v774
        %v890 = vpop.f32.mrb[0].mxu0
        %v891 = vadd.f32 0.0, %v890
        %v892 = vpop.f32.mrb[0].mxu0
        %v893 = vpop.f32.mrb[0].mxu0
        %v894 = vadd.f32 0.0, %v893
        %v895 = vpop.f32.mrb[0].mxu0
        %896 = vmatprep.mubr.bf16.mxu0 0
        %897 = vmatmul.mubr.bf16.gmra.mrb[0].mxu0 %v775
        %v898 = vpop.f32.mrb[0].mxu0
        %v899 = vadd.f32 0.0, %v898
        %v900 = vpop.f32.mrb[0].mxu0
        %v901 = vpop.f32.mrb[0].mxu0
        %v902 = vadd.f32 0.0, %v901
        %v903 = vpop.f32.mrb[0].mxu0
        %904 = vdwg.mxu0
        %v905 = vadd.f32 %v724, %v875
        %v906 = vadd.f32 %v727, %v878
        %v907 = vadd.f32 %v732, %v883
        %v908 = vadd.f32 %v735, %v886
        %v909 = vadd.f32 %v740, %v891
        %v910 = vadd.f32 %v743, %v894
        %v911 = vadd.f32 %v748, %v899
        %v912 = vadd.f32 %v751, %v902
        %v913 = vrot.slane %v440, 7
        %v914 = vrot.slane %v441, 7
        %v915 = vrot.slane %v442, 7
        %v916 = vrot.slane %v443, 7
        %v917 = vrot.slane %v444, 7
        %v918 = vrot.slane %v445, 7
        %v919 = vrot.slane %v446, 7
        %v920 = vrot.slane %v447, 7
        %v921 = vrot.slane %v448, 7
        %vm922 = vcmp.lt.s32.totalorder %v460, 1
        %v923 = vsel %vm922, %v920, %v921
        %v924 = vsel %vm922, %v919, %v920
        %v925 = vsel %vm922, %v918, %v919
        %v926 = vsel %vm922, %v917, %v918
        %v927 = vsel %vm922, %v916, %v917
        %v928 = vsel %vm922, %v915, %v916
        %v929 = vsel %vm922, %v914, %v915
        %v930 = vsel %vm922, %v913, %v914
        %v931 = vpack.c.bf16 %v929, %v930
        %v932 = vpack.c.bf16 %v927, %v928
        %v933 = vpack.c.bf16 %v925, %v926
        %v934 = vpack.c.bf16 %v923, %v924
        %v935 = vld [vmem:[#allocation4 + $0xc0] sm:$0xf]
        %v936 = vld [vmem:[#allocation4 + $0xc4] sm:$0xf]
        %v937 = vld [vmem:[#allocation4 + $0xc8] sm:$0xf]
        %v938 = vld [vmem:[#allocation4 + $0xcc] sm:$0xf]
        %v939 = vld [vmem:[#allocation4 + $0xd0] sm:$0xf]
        %v940 = vld [vmem:[#allocation4 + $0xd4] sm:$0xf]
        %v941 = vld [vmem:[#allocation4 + $0xd8] sm:$0xf]
        %v942 = vld [vmem:[#allocation4 + $0xdc] sm:$0xf]
        %v943 = vld [vmem:[#allocation4 + $0xe0] sm:$0xf]
        %v944 = vld [vmem:[#allocation4 + $0xe4] sm:$0xf]
        %v945 = vld [vmem:[#allocation4 + $0xe8] sm:$0xf]
        %v946 = vld [vmem:[#allocation4 + $0xec] sm:$0xf]
        %v947 = vld [vmem:[#allocation4 + $0xf0] sm:$0xf]
        %v948 = vld [vmem:[#allocation4 + $0xf4] sm:$0xf]
        %v949 = vld [vmem:[#allocation4 + $0xf8] sm:$0xf]
        %v950 = vld [vmem:[#allocation4 + $0xfc] sm:$0xf]
        %v967 = vunpack.c.l.b16 %v935
        %v968 = vunpack.c.l.b16 %v936
        %v969 = vunpack.c.l.b16 %v937
        %v970 = vunpack.c.l.b16 %v938
        %v971 = vunpack.c.l.b16 %v939
        %v972 = vunpack.c.l.b16 %v940
        %v973 = vunpack.c.l.b16 %v941
        %v974 = vunpack.c.l.b16 %v942
        %v975 = vunpack.c.l.b16 %v943
        %v976 = vunpack.c.l.b16 %v944
        %v977 = vunpack.c.l.b16 %v945
        %v978 = vunpack.c.l.b16 %v946
        %v979 = vunpack.c.l.b16 %v947
        %v980 = vunpack.c.l.b16 %v948
        %v981 = vunpack.c.l.b16 %v949
        %v982 = vunpack.c.l.b16 %v950
        %v983 = vpack.c.b16 %v968, %v967
        %v984 = vpack.c.b16 %v970, %v969
        %v985 = vpack.c.b16 %v972, %v971
        %v986 = vpack.c.b16 %v974, %v973
        %v987 = vpack.c.b16 %v976, %v975
        %v988 = vpack.c.b16 %v978, %v977
        %v989 = vpack.c.b16 %v980, %v979
        %v990 = vpack.c.b16 %v982, %v981
        %999 = vmatprep.subr.bf16.mxu0 0
        %1000 = vmatpush1.bf16.msra.mxu0 %v983
        %1001 = vmatprep.subr.bf16.mxu0 0
        %1002 = vmatpush1.bf16.msra.mxu0 %v984
        %1003 = vmatprep.subr.bf16.mxu0 0
        %1004 = vmatpush1.bf16.msra.mxu0 %v985
        %1005 = vmatprep.subr.bf16.mxu0 0
        %1006 = vmatpush1.bf16.msra.mxu0 %v986
        %1007 = vmatprep.subr.bf16.mxu0 0
        %1008 = vmatpush1.bf16.msra.mxu0 %v987
        %1009 = vmatprep.subr.bf16.mxu0 0
        %1010 = vmatpush1.bf16.msra.mxu0 %v988
        %1011 = vmatprep.subr.bf16.mxu0 0
        %1012 = vmatpush1.bf16.msra.mxu0 %v989
        %1013 = vmatprep.subr.bf16.mxu0 0
        %1014 = vmatpush1.bf16.msra.mxu0 %v990
        %1015 = vmatprep.subr.bf16.mxu0 0
        %1016 = vmatpush1.bf16.msra.mxu0 0
        %1017 = vmatprep.subr.bf16.mxu0 0
        %1018 = vmatpush1.bf16.msra.mxu0 0
        %1019 = vmatprep.subr.bf16.mxu0 0
        %1020 = vmatpush1.bf16.msra.mxu0 0
        %1021 = vmatprep.subr.bf16.mxu0 0
        %1022 = vmatpush1.bf16.msra.mxu0 0
        %1023 = vmatprep.subr.bf16.mxu0 0
        %1024 = vmatpush1.bf16.msra.mxu0 0
        %1025 = vmatprep.subr.bf16.mxu0 0
        %1026 = vmatpush1.bf16.msra.mxu0 0
        %1027 = vmatprep.subr.bf16.mxu0 0
        %1028 = vmatpush1.bf16.msra.mxu0 0
        %1029 = vmatprep.subr.bf16.mxu0 0
        %1030 = vmatpush1.bf16.msra.mxu0 0
        %1031 = vmatprep.mubr.bf16.mxu0 0
        %1032 = vmatmul.mubr.bf16.gmra.mrb[0].mxu0 %v931
        %v1033 = vpop.f32.mrb[0].mxu0
        %v1034 = vadd.f32 0.0, %v1033
        %v1035 = vpop.f32.mrb[0].mxu0
        %v1036 = vpop.f32.mrb[0].mxu0
        %v1037 = vadd.f32 0.0, %v1036
        %v1038 = vpop.f32.mrb[0].mxu0
        %1039 = vmatprep.mubr.bf16.mxu0 0
        %1040 = vmatmul.mubr.bf16.gmra.mrb[0].mxu0 %v932
        %v1041 = vpop.f32.mrb[0].mxu0
        %v1042 = vadd.f32 0.0, %v1041
        %v1043 = vpop.f32.mrb[0].mxu0
        %v1044 = vpop.f32.mrb[0].mxu0
        %v1045 = vadd.f32 0.0, %v1044
        %v1046 = vpop.f32.mrb[0].mxu0
        %1047 = vmatprep.mubr.bf16.mxu0 0
        %1048 = vmatmul.mubr.bf16.gmra.mrb[0].mxu0 %v933
        %v1049 = vpop.f32.mrb[0].mxu0
        %v1050 = vadd.f32 0.0, %v1049
        %v1051 = vpop.f32.mrb[0].mxu0
        %v1052 = vpop.f32.mrb[0].mxu0
        %v1053 = vadd.f32 0.0, %v1052
        %v1054 = vpop.f32.mrb[0].mxu0
        %1055 = vmatprep.mubr.bf16.mxu0 0
        %1056 = vmatmul.mubr.bf16.gmra.mrb[0].mxu0 %v934
        %v1057 = vpop.f32.mrb[0].mxu0
        %v1058 = vadd.f32 0.0, %v1057
        %v1059 = vpop.f32.mrb[0].mxu0
        %v1060 = vpop.f32.mrb[0].mxu0
        %v1061 = vadd.f32 0.0, %v1060
        %v1062 = vpop.f32.mrb[0].mxu0
        %1063 = vdwg.mxu0
        %v1064 = vadd.f32 %v905, %v1034
        %v1065 = vadd.f32 %v906, %v1037
        %v1066 = vadd.f32 %v907, %v1042
        %v1067 = vadd.f32 %v908, %v1045
        %v1068 = vadd.f32 %v909, %v1050
        %v1069 = vadd.f32 %v910, %v1053
        %v1070 = vadd.f32 %v911, %v1058
        %v1071 = vadd.f32 %v912, %v1061
        %v1072 = vpack.c.bf16 %v442, %v441
        %v1073 = vpack.c.bf16 %v444, %v443
        %v1074 = vpack.c.bf16 %v446, %v445
        %v1075 = vpack.c.bf16 %v448, %v447
        %v1076 = vld [vmem:[#allocation4 + $0x100] sm:$0xf]
        %v1077 = vld [vmem:[#allocation4 + $0x104] sm:$0xf]
        %v1078 = vld [vmem:[#allocation4 + $0x108] sm:$0xf]
        %v1079 = vld [vmem:[#allocation4 + $0x10c] sm:$0xf]
        %v1080 = vld [vmem:[#allocation4 + $0x110] sm:$0xf]
        %v1081 = vld [vmem:[#allocation4 + $0x114] sm:$0xf]
        %v1082 = vld [vmem:[#allocation4 + $0x118] sm:$0xf]
        %v1083 = vld [vmem:[#allocation4 + $0x11c] sm:$0xf]
        %v1084 = vld [vmem:[#allocation4 + $0x120] sm:$0xf]
        %v1085 = vld [vmem:[#allocation4 + $0x124] sm:$0xf]
        %v1086 = vld [vmem:[#allocation4 + $0x128] sm:$0xf]
        %v1087 = vld [vmem:[#allocation4 + $0x12c] sm:$0xf]
        %v1088 = vld [vmem:[#allocation4 + $0x130] sm:$0xf]
        %v1089 = vld [vmem:[#allocation4 + $0x134] sm:$0xf]
        %v1090 = vld [vmem:[#allocation4 + $0x138] sm:$0xf]
        %v1091 = vld [vmem:[#allocation4 + $0x13c] sm:$0xf]
        %v1108 = vunpack.c.l.b16 %v1076
        %v1109 = vunpack.c.l.b16 %v1077
        %v1110 = vunpack.c.l.b16 %v1078
        %v1111 = vunpack.c.l.b16 %v1079
        %v1112 = vunpack.c.l.b16 %v1080
        %v1113 = vunpack.c.l.b16 %v1081
        %v1114 = vunpack.c.l.b16 %v1082
        %v1115 = vunpack.c.l.b16 %v1083
        %v1116 = vunpack.c.l.b16 %v1084
        %v1117 = vunpack.c.l.b16 %v1085
        %v1118 = vunpack.c.l.b16 %v1086
        %v1119 = vunpack.c.l.b16 %v1087
        %v1120 = vunpack.c.l.b16 %v1088
        %v1121 = vunpack.c.l.b16 %v1089
        %v1122 = vunpack.c.l.b16 %v1090
        %v1123 = vunpack.c.l.b16 %v1091
        %v1124 = vpack.c.b16 %v1109, %v1108
        %v1125 = vpack.c.b16 %v1111, %v1110
        %v1126 = vpack.c.b16 %v1113, %v1112
        %v1127 = vpack.c.b16 %v1115, %v1114
        %v1128 = vpack.c.b16 %v1117, %v1116
        %v1129 = vpack.c.b16 %v1119, %v1118
        %v1130 = vpack.c.b16 %v1121, %v1120
        %v1131 = vpack.c.b16 %v1123, %v1122
        %1140 = vmatprep.subr.bf16.mxu0 0
        %1141 = vmatpush1.bf16.msra.mxu0 %v1124
        %1142 = vmatprep.subr.bf16.mxu0 0
        %1143 = vmatpush1.bf16.msra.mxu0 %v1125
        %1144 = vmatprep.subr.bf16.mxu0 0
        %1145 = vmatpush1.bf16.msra.mxu0 %v1126
        %1146 = vmatprep.subr.bf16.mxu0 0
        %1147 = vmatpush1.bf16.msra.mxu0 %v1127
        %1148 = vmatprep.subr.bf16.mxu0 0
        %1149 = vmatpush1.bf16.msra.mxu0 %v1128
        %1150 = vmatprep.subr.bf16.mxu0 0
        %1151 = vmatpush1.bf16.msra.mxu0 %v1129
        %1152 = vmatprep.subr.bf16.mxu0 0
        %1153 = vmatpush1.bf16.msra.mxu0 %v1130
        %1154 = vmatprep.subr.bf16.mxu0 0
        %1155 = vmatpush1.bf16.msra.mxu0 %v1131
        %1156 = vmatprep.subr.bf16.mxu0 0
        %1157 = vmatpush1.bf16.msra.mxu0 0
        %1158 = vmatprep.subr.bf16.mxu0 0
        %1159 = vmatpush1.bf16.msra.mxu0 0
        %1160 = vmatprep.subr.bf16.mxu0 0
        %1161 = vmatpush1.bf16.msra.mxu0 0
        %1162 = vmatprep.subr.bf16.mxu0 0
        %1163 = vmatpush1.bf16.msra.mxu0 0
        %1164 = vmatprep.subr.bf16.mxu0 0
        %1165 = vmatpush1.bf16.msra.mxu0 0
        %1166 = vmatprep.subr.bf16.mxu0 0
        %1167 = vmatpush1.bf16.msra.mxu0 0
        %1168 = vmatprep.subr.bf16.mxu0 0
        %1169 = vmatpush1.bf16.msra.mxu0 0
        %1170 = vmatprep.subr.bf16.mxu0 0
        %1171 = vmatpush1.bf16.msra.mxu0 0
        %1172 = vmatprep.mubr.bf16.mxu0 0
        %1173 = vmatmul.mubr.bf16.gmra.mrb[0].mxu0 %v1072
        %v1174 = vpop.f32.mrb[0].mxu0
        %v1175 = vadd.f32 0.0, %v1174
        %v1176 = vpop.f32.mrb[0].mxu0
        %v1177 = vpop.f32.mrb[0].mxu0
        %v1178 = vadd.f32 0.0, %v1177
        %v1179 = vpop.f32.mrb[0].mxu0
        %1180 = vmatprep.mubr.bf16.mxu0 0
        %1181 = vmatmul.mubr.bf16.gmra.mrb[0].mxu0 %v1073
        %v1182 = vpop.f32.mrb[0].mxu0
        %v1183 = vadd.f32 0.0, %v1182
        %v1184 = vpop.f32.mrb[0].mxu0
        %v1185 = vpop.f32.mrb[0].mxu0
        %v1186 = vadd.f32 0.0, %v1185
        %v1187 = vpop.f32.mrb[0].mxu0
        %1188 = vmatprep.mubr.bf16.mxu0 0
        %1189 = vmatmul.mubr.bf16.gmra.mrb[0].mxu0 %v1074
        %v1190 = vpop.f32.mrb[0].mxu0
        %v1191 = vadd.f32 0.0, %v1190
        %v1192 = vpop.f32.mrb[0].mxu0
        %v1193 = vpop.f32.mrb[0].mxu0
        %v1194 = vadd.f32 0.0, %v1193
        %v1195 = vpop.f32.mrb[0].mxu0
        %1196 = vmatprep.mubr.bf16.mxu0 0
        %1197 = vmatmul.mubr.bf16.gmra.mrb[0].mxu0 %v1075
        %v1198 = vpop.f32.mrb[0].mxu0
        %v1199 = vadd.f32 0.0, %v1198
        %v1200 = vpop.f32.mrb[0].mxu0
        %v1201 = vpop.f32.mrb[0].mxu0
        %v1202 = vadd.f32 0.0, %v1201
        %v1203 = vpop.f32.mrb[0].mxu0
        %1204 = vdwg.mxu0
        %v1205 = vadd.f32 %v1064, %v1175
        %v1206 = vadd.f32 %v1065, %v1178
        %v1207 = vadd.f32 %v1066, %v1183
        %v1208 = vadd.f32 %v1067, %v1186
        %v1209 = vadd.f32 %v1068, %v1191
        %v1210 = vadd.f32 %v1069, %v1194
        %v1211 = vadd.f32 %v1070, %v1199
        %v1212 = vadd.f32 %v1071, %v1202
        %v1213 = vrot.slane %v441, 1
        %v1214 = vrot.slane %v442, 1
        %v1215 = vrot.slane %v443, 1
        %v1216 = vrot.slane %v444, 1
        %v1217 = vrot.slane %v445, 1
        %v1218 = vrot.slane %v446, 1
        %v1219 = vrot.slane %v447, 1
        %v1220 = vrot.slane %v448, 1
        %v1221 = vrot.slane %v449, 1
        %vm1222 = vcmp.lt.s32.totalorder %v460, 7
        %v1223 = vsel %vm1222, %v1220, %v1221
        %v1224 = vsel %vm1222, %v1219, %v1220
        %v1225 = vsel %vm1222, %v1218, %v1219
        %v1226 = vsel %vm1222, %v1217, %v1218
        %v1227 = vsel %vm1222, %v1216, %v1217
        %v1228 = vsel %vm1222, %v1215, %v1216
        %v1229 = vsel %vm1222, %v1214, %v1215
        %v1230 = vsel %vm1222, %v1213, %v1214
        %v1231 = vpack.c.bf16 %v1229, %v1230
        %v1232 = vpack.c.bf16 %v1227, %v1228
        %v1233 = vpack.c.bf16 %v1225, %v1226
        %v1234 = vpack.c.bf16 %v1223, %v1224
        %v1235 = vld [vmem:[#allocation4 + $0x140] sm:$0xf]
        %v1236 = vld [vmem:[#allocation4 + $0x144] sm:$0xf]
        %v1237 = vld [vmem:[#allocation4 + $0x148] sm:$0xf]
        %v1238 = vld [vmem:[#allocation4 + $0x14c] sm:$0xf]
        %v1239 = vld [vmem:[#allocation4 + $0x150] sm:$0xf]
        %v1240 = vld [vmem:[#allocation4 + $0x154] sm:$0xf]
        %v1241 = vld [vmem:[#allocation4 + $0x158] sm:$0xf]
        %v1242 = vld [vmem:[#allocation4 + $0x15c] sm:$0xf]
        %v1243 = vld [vmem:[#allocation4 + $0x160] sm:$0xf]
        %v1244 = vld [vmem:[#allocation4 + $0x164] sm:$0xf]
        %v1245 = vld [vmem:[#allocation4 + $0x168] sm:$0xf]
        %v1246 = vld [vmem:[#allocation4 + $0x16c] sm:$0xf]
        %v1247 = vld [vmem:[#allocation4 + $0x170] sm:$0xf]
        %v1248 = vld [vmem:[#allocation4 + $0x174] sm:$0xf]
        %v1249 = vld [vmem:[#allocation4 + $0x178] sm:$0xf]
        %v1250 = vld [vmem:[#allocation4 + $0x17c] sm:$0xf]
        %v1267 = vunpack.c.l.b16 %v1235
        %v1268 = vunpack.c.l.b16 %v1236
        %v1269 = vunpack.c.l.b16 %v1237
        %v1270 = vunpack.c.l.b16 %v1238
        %v1271 = vunpack.c.l.b16 %v1239
        %v1272 = vunpack.c.l.b16 %v1240
        %v1273 = vunpack.c.l.b16 %v1241
        %v1274 = vunpack.c.l.b16 %v1242
        %v1275 = vunpack.c.l.b16 %v1243
        %v1276 = vunpack.c.l.b16 %v1244
        %v1277 = vunpack.c.l.b16 %v1245
        %v1278 = vunpack.c.l.b16 %v1246
        %v1279 = vunpack.c.l.b16 %v1247
        %v1280 = vunpack.c.l.b16 %v1248
        %v1281 = vunpack.c.l.b16 %v1249
        %v1282 = vunpack.c.l.b16 %v1250
        %v1283 = vpack.c.b16 %v1268, %v1267
        %v1284 = vpack.c.b16 %v1270, %v1269
        %v1285 = vpack.c.b16 %v1272, %v1271
        %v1286 = vpack.c.b16 %v1274, %v1273
        %v1287 = vpack.c.b16 %v1276, %v1275
        %v1288 = vpack.c.b16 %v1278, %v1277
        %v1289 = vpack.c.b16 %v1280, %v1279
        %v1290 = vpack.c.b16 %v1282, %v1281
        %1299 = vmatprep.subr.bf16.mxu0 0
        %1300 = vmatpush1.bf16.msra.mxu0 %v1283
        %1301 = vmatprep.subr.bf16.mxu0 0
        %1302 = vmatpush1.bf16.msra.mxu0 %v1284
        %1303 = vmatprep.subr.bf16.mxu0 0
        %1304 = vmatpush1.bf16.msra.mxu0 %v1285
        %1305 = vmatprep.subr.bf16.mxu0 0
        %1306 = vmatpush1.bf16.msra.mxu0 %v1286
        %1307 = vmatprep.subr.bf16.mxu0 0
        %1308 = vmatpush1.bf16.msra.mxu0 %v1287
        %1309 = vmatprep.subr.bf16.mxu0 0
        %1310 = vmatpush1.bf16.msra.mxu0 %v1288
        %1311 = vmatprep.subr.bf16.mxu0 0
        %1312 = vmatpush1.bf16.msra.mxu0 %v1289
        %1313 = vmatprep.subr.bf16.mxu0 0
        %1314 = vmatpush1.bf16.msra.mxu0 %v1290
        %1315 = vmatprep.subr.bf16.mxu0 0
        %1316 = vmatpush1.bf16.msra.mxu0 0
        %1317 = vmatprep.subr.bf16.mxu0 0
        %1318 = vmatpush1.bf16.msra.mxu0 0
        %1319 = vmatprep.subr.bf16.mxu0 0
        %1320 = vmatpush1.bf16.msra.mxu0 0
        %1321 = vmatprep.subr.bf16.mxu0 0
        %1322 = vmatpush1.bf16.msra.mxu0 0
        %1323 = vmatprep.subr.bf16.mxu0 0
        %1324 = vmatpush1.bf16.msra.mxu0 0
        %1325 = vmatprep.subr.bf16.mxu0 0
        %1326 = vmatpush1.bf16.msra.mxu0 0
        %1327 = vmatprep.subr.bf16.mxu0 0
        %1328 = vmatpush1.bf16.msra.mxu0 0
        %1329 = vmatprep.subr.bf16.mxu0 0
        %1330 = vmatpush1.bf16.msra.mxu0 0
        %1331 = vmatprep.mubr.bf16.mxu0 0
        %1332 = vmatmul.mubr.bf16.gmra.mrb[0].mxu0 %v1231
        %v1333 = vpop.f32.mrb[0].mxu0
        %v1334 = vadd.f32 0.0, %v1333
        %v1335 = vpop.f32.mrb[0].mxu0
        %v1336 = vpop.f32.mrb[0].mxu0
        %v1337 = vadd.f32 0.0, %v1336
        %v1338 = vpop.f32.mrb[0].mxu0
        %1339 = vmatprep.mubr.bf16.mxu0 0
        %1340 = vmatmul.mubr.bf16.gmra.mrb[0].mxu0 %v1232
        %v1341 = vpop.f32.mrb[0].mxu0
        %v1342 = vadd.f32 0.0, %v1341
        %v1343 = vpop.f32.mrb[0].mxu0
        %v1344 = vpop.f32.mrb[0].mxu0
        %v1345 = vadd.f32 0.0, %v1344
        %v1346 = vpop.f32.mrb[0].mxu0
        %1347 = vmatprep.mubr.bf16.mxu0 0
        %1348 = vmatmul.mubr.bf16.gmra.mrb[0].mxu0 %v1233
        %v1349 = vpop.f32.mrb[0].mxu0
        %v1350 = vadd.f32 0.0, %v1349
        %v1351 = vpop.f32.mrb[0].mxu0
        %v1352 = vpop.f32.mrb[0].mxu0
        %v1353 = vadd.f32 0.0, %v1352
        %v1354 = vpop.f32.mrb[0].mxu0
        %1355 = vmatprep.mubr.bf16.mxu0 0
        %1356 = vmatmul.mubr.bf16.gmra.mrb[0].mxu0 %v1234
        %v1357 = vpop.f32.mrb[0].mxu0
        %v1358 = vadd.f32 0.0, %v1357
        %v1359 = vpop.f32.mrb[0].mxu0
        %v1360 = vpop.f32.mrb[0].mxu0
        %v1361 = vadd.f32 0.0, %v1360
        %v1362 = vpop.f32.mrb[0].mxu0
        %1363 = vdwg.mxu0
        %v1364 = vadd.f32 %v1205, %v1334
        %v1365 = vadd.f32 %v1206, %v1337
        %v1366 = vadd.f32 %v1207, %v1342
        %v1367 = vadd.f32 %v1208, %v1345
        %v1368 = vadd.f32 %v1209, %v1350
        %v1369 = vadd.f32 %v1210, %v1353
        %v1370 = vadd.f32 %v1211, %v1358
        %v1371 = vadd.f32 %v1212, %v1361
        %v1372 = vrot.slane %v441, 2
        %v1373 = vrot.slane %v442, 2
        %v1374 = vrot.slane %v443, 2
        %v1375 = vrot.slane %v444, 2
        %v1376 = vrot.slane %v445, 2
        %v1377 = vrot.slane %v446, 2
        %v1378 = vrot.slane %v447, 2
        %v1379 = vrot.slane %v448, 2
        %v1380 = vrot.slane %v449, 2
        %vm1381 = vcmp.lt.s32.totalorder %v460, 6
        %v1382 = vsel %vm1381, %v1379, %v1380
        %v1383 = vsel %vm1381, %v1378, %v1379
        %v1384 = vsel %vm1381, %v1377, %v1378
        %v1385 = vsel %vm1381, %v1376, %v1377
        %v1386 = vsel %vm1381, %v1375, %v1376
        %v1387 = vsel %vm1381, %v1374, %v1375
        %v1388 = vsel %vm1381, %v1373, %v1374
        %v1389 = vsel %vm1381, %v1372, %v1373
        %v1390 = vpack.c.bf16 %v1388, %v1389
        %v1391 = vpack.c.bf16 %v1386, %v1387
        %v1392 = vpack.c.bf16 %v1384, %v1385
        %v1393 = vpack.c.bf16 %v1382, %v1383
        %v1394 = vld [vmem:[#allocation4 + $0x180] sm:$0xf]
        %v1395 = vld [vmem:[#allocation4 + $0x184] sm:$0xf]
        %v1396 = vld [vmem:[#allocation4 + $0x188] sm:$0xf]
        %v1397 = vld [vmem:[#allocation4 + $0x18c] sm:$0xf]
        %v1398 = vld [vmem:[#allocation4 + $0x190] sm:$0xf]
        %v1399 = vld [vmem:[#allocation4 + $0x194] sm:$0xf]
        %v1400 = vld [vmem:[#allocation4 + $0x198] sm:$0xf]
        %v1401 = vld [vmem:[#allocation4 + $0x19c] sm:$0xf]
        %v1402 = vld [vmem:[#allocation4 + $0x1a0] sm:$0xf]
        %v1403 = vld [vmem:[#allocation4 + $0x1a4] sm:$0xf]
        %v1404 = vld [vmem:[#allocation4 + $0x1a8] sm:$0xf]
        %v1405 = vld [vmem:[#allocation4 + $0x1ac] sm:$0xf]
        %v1406 = vld [vmem:[#allocation4 + $0x1b0] sm:$0xf]
        %v1407 = vld [vmem:[#allocation4 + $0x1b4] sm:$0xf]
        %v1408 = vld [vmem:[#allocation4 + $0x1b8] sm:$0xf]
        %v1409 = vld [vmem:[#allocation4 + $0x1bc] sm:$0xf]
        %v1426 = vunpack.c.l.b16 %v1394
        %v1427 = vunpack.c.l.b16 %v1395
        %v1428 = vunpack.c.l.b16 %v1396
        %v1429 = vunpack.c.l.b16 %v1397
        %v1430 = vunpack.c.l.b16 %v1398
        %v1431 = vunpack.c.l.b16 %v1399
        %v1432 = vunpack.c.l.b16 %v1400
        %v1433 = vunpack.c.l.b16 %v1401
        %v1434 = vunpack.c.l.b16 %v1402
        %v1435 = vunpack.c.l.b16 %v1403
        %v1436 = vunpack.c.l.b16 %v1404
        %v1437 = vunpack.c.l.b16 %v1405
        %v1438 = vunpack.c.l.b16 %v1406
        %v1439 = vunpack.c.l.b16 %v1407
        %v1440 = vunpack.c.l.b16 %v1408
        %v1441 = vunpack.c.l.b16 %v1409
        %v1442 = vpack.c.b16 %v1427, %v1426
        %v1443 = vpack.c.b16 %v1429, %v1428
        %v1444 = vpack.c.b16 %v1431, %v1430
        %v1445 = vpack.c.b16 %v1433, %v1432
        %v1446 = vpack.c.b16 %v1435, %v1434
        %v1447 = vpack.c.b16 %v1437, %v1436
        %v1448 = vpack.c.b16 %v1439, %v1438
        %v1449 = vpack.c.b16 %v1441, %v1440
        %1458 = vmatprep.subr.bf16.mxu0 0
        %1459 = vmatpush1.bf16.msra.mxu0 %v1442
        %1460 = vmatprep.subr.bf16.mxu0 0
        %1461 = vmatpush1.bf16.msra.mxu0 %v1443
        %1462 = vmatprep.subr.bf16.mxu0 0
        %1463 = vmatpush1.bf16.msra.mxu0 %v1444
        %1464 = vmatprep.subr.bf16.mxu0 0
        %1465 = vmatpush1.bf16.msra.mxu0 %v1445
        %1466 = vmatprep.subr.bf16.mxu0 0
        %1467 = vmatpush1.bf16.msra.mxu0 %v1446
        %1468 = vmatprep.subr.bf16.mxu0 0
        %1469 = vmatpush1.bf16.msra.mxu0 %v1447
        %1470 = vmatprep.subr.bf16.mxu0 0
        %1471 = vmatpush1.bf16.msra.mxu0 %v1448
        %1472 = vmatprep.subr.bf16.mxu0 0
        %1473 = vmatpush1.bf16.msra.mxu0 %v1449
        %1474 = vmatprep.subr.bf16.mxu0 0
        %1475 = vmatpush1.bf16.msra.mxu0 0
        %1476 = vmatprep.subr.bf16.mxu0 0
        %1477 = vmatpush1.bf16.msra.mxu0 0
        %1478 = vmatprep.subr.bf16.mxu0 0
        %1479 = vmatpush1.bf16.msra.mxu0 0
        %1480 = vmatprep.subr.bf16.mxu0 0
        %1481 = vmatpush1.bf16.msra.mxu0 0
        %1482 = vmatprep.subr.bf16.mxu0 0
        %1483 = vmatpush1.bf16.msra.mxu0 0
        %1484 = vmatprep.subr.bf16.mxu0 0
        %1485 = vmatpush1.bf16.msra.mxu0 0
        %1486 = vmatprep.subr.bf16.mxu0 0
        %1487 = vmatpush1.bf16.msra.mxu0 0
        %1488 = vmatprep.subr.bf16.mxu0 0
        %1489 = vmatpush1.bf16.msra.mxu0 0
        %1490 = vmatprep.mubr.bf16.mxu0 0
        %1491 = vmatmul.mubr.bf16.gmra.mrb[0].mxu0 %v1390
        %v1492 = vpop.f32.mrb[0].mxu0
        %v1493 = vadd.f32 0.0, %v1492
        %v1494 = vpop.f32.mrb[0].mxu0
        %v1495 = vpop.f32.mrb[0].mxu0
        %v1496 = vadd.f32 0.0, %v1495
        %v1497 = vpop.f32.mrb[0].mxu0
        %1498 = vmatprep.mubr.bf16.mxu0 0
        %1499 = vmatmul.mubr.bf16.gmra.mrb[0].mxu0 %v1391
        %v1500 = vpop.f32.mrb[0].mxu0
        %v1501 = vadd.f32 0.0, %v1500
        %v1502 = vpop.f32.mrb[0].mxu0
        %v1503 = vpop.f32.mrb[0].mxu0
        %v1504 = vadd.f32 0.0, %v1503
        %v1505 = vpop.f32.mrb[0].mxu0
        %1506 = vmatprep.mubr.bf16.mxu0 0
        %1507 = vmatmul.mubr.bf16.gmra.mrb[0].mxu0 %v1392
        %v1508 = vpop.f32.mrb[0].mxu0
        %v1509 = vadd.f32 0.0, %v1508
        %v1510 = vpop.f32.mrb[0].mxu0
        %v1511 = vpop.f32.mrb[0].mxu0
        %v1512 = vadd.f32 0.0, %v1511
        %v1513 = vpop.f32.mrb[0].mxu0
        %1514 = vmatprep.mubr.bf16.mxu0 0
        %1515 = vmatmul.mubr.bf16.gmra.mrb[0].mxu0 %v1393
        %v1516 = vpop.f32.mrb[0].mxu0
        %v1517 = vadd.f32 0.0, %v1516
        %v1518 = vpop.f32.mrb[0].mxu0
        %v1519 = vpop.f32.mrb[0].mxu0
        %v1520 = vadd.f32 0.0, %v1519
        %v1521 = vpop.f32.mrb[0].mxu0
        %1522 = vdwg.mxu0
        %v1523 = vadd.f32 %v1364, %v1493
        %v1524 = vadd.f32 %v1365, %v1496
        %v1525 = vadd.f32 %v1366, %v1501
        %v1526 = vadd.f32 %v1367, %v1504
        %v1527 = vadd.f32 %v1368, %v1509
        %v1528 = vadd.f32 %v1369, %v1512
        %v1529 = vadd.f32 %v1370, %v1517
        %v1530 = vadd.f32 %v1371, %v1520
        %v1531 = vrot.slane %v441, 3
        %v1532 = vrot.slane %v442, 3
        %v1533 = vrot.slane %v443, 3
        %v1534 = vrot.slane %v444, 3
        %v1535 = vrot.slane %v445, 3
        %v1536 = vrot.slane %v446, 3
        %v1537 = vrot.slane %v447, 3
        %v1538 = vrot.slane %v448, 3
        %v1539 = vrot.slane %v449, 3
        %vm1540 = vcmp.lt.s32.totalorder %v460, 5
        %v1541 = vsel %vm1540, %v1538, %v1539
        %v1542 = vsel %vm1540, %v1537, %v1538
        %v1543 = vsel %vm1540, %v1536, %v1537
        %v1544 = vsel %vm1540, %v1535, %v1536
        %v1545 = vsel %vm1540, %v1534, %v1535
        %v1546 = vsel %vm1540, %v1533, %v1534
        %v1547 = vsel %vm1540, %v1532, %v1533
        %v1548 = vsel %vm1540, %v1531, %v1532
        %v1549 = vpack.c.bf16 %v1547, %v1548
        %v1550 = vpack.c.bf16 %v1545, %v1546
        %v1551 = vpack.c.bf16 %v1543, %v1544
        %v1552 = vpack.c.bf16 %v1541, %v1542
        %v1553 = vld [vmem:[#allocation4 + $0x1c0] sm:$0xf]
        %v1554 = vld [vmem:[#allocation4 + $0x1c4] sm:$0xf]
        %v1555 = vld [vmem:[#allocation4 + $0x1c8] sm:$0xf]
        %v1556 = vld [vmem:[#allocation4 + $0x1cc] sm:$0xf]
        %v1557 = vld [vmem:[#allocation4 + $0x1d0] sm:$0xf]
        %v1558 = vld [vmem:[#allocation4 + $0x1d4] sm:$0xf]
        %v1559 = vld [vmem:[#allocation4 + $0x1d8] sm:$0xf]
        %v1560 = vld [vmem:[#allocation4 + $0x1dc] sm:$0xf]
        %v1561 = vld [vmem:[#allocation4 + $0x1e0] sm:$0xf]
        %v1562 = vld [vmem:[#allocation4 + $0x1e4] sm:$0xf]
        %v1563 = vld [vmem:[#allocation4 + $0x1e8] sm:$0xf]
        %v1564 = vld [vmem:[#allocation4 + $0x1ec] sm:$0xf]
        %v1565 = vld [vmem:[#allocation4 + $0x1f0] sm:$0xf]
        %v1566 = vld [vmem:[#allocation4 + $0x1f4] sm:$0xf]
        %v1567 = vld [vmem:[#allocation4 + $0x1f8] sm:$0xf]
        %v1568 = vld [vmem:[#allocation4 + $0x1fc] sm:$0xf]
        %v1585 = vunpack.c.l.b16 %v1553
        %v1586 = vunpack.c.l.b16 %v1554
        %v1587 = vunpack.c.l.b16 %v1555
        %v1588 = vunpack.c.l.b16 %v1556
        %v1589 = vunpack.c.l.b16 %v1557
        %v1590 = vunpack.c.l.b16 %v1558
        %v1591 = vunpack.c.l.b16 %v1559
        %v1592 = vunpack.c.l.b16 %v1560
        %v1593 = vunpack.c.l.b16 %v1561
        %v1594 = vunpack.c.l.b16 %v1562
        %v1595 = vunpack.c.l.b16 %v1563
        %v1596 = vunpack.c.l.b16 %v1564
        %v1597 = vunpack.c.l.b16 %v1565
        %v1598 = vunpack.c.l.b16 %v1566
        %v1599 = vunpack.c.l.b16 %v1567
        %v1600 = vunpack.c.l.b16 %v1568
        %v1601 = vpack.c.b16 %v1586, %v1585
        %v1602 = vpack.c.b16 %v1588, %v1587
        %v1603 = vpack.c.b16 %v1590, %v1589
        %v1604 = vpack.c.b16 %v1592, %v1591
        %v1605 = vpack.c.b16 %v1594, %v1593
        %v1606 = vpack.c.b16 %v1596, %v1595
        %v1607 = vpack.c.b16 %v1598, %v1597
        %v1608 = vpack.c.b16 %v1600, %v1599
        %1617 = vmatprep.subr.bf16.mxu0 0
        %1618 = vmatpush1.bf16.msra.mxu0 %v1601
        %1619 = vmatprep.subr.bf16.mxu0 0
        %1620 = vmatpush1.bf16.msra.mxu0 %v1602
        %1621 = vmatprep.subr.bf16.mxu0 0
        %1622 = vmatpush1.bf16.msra.mxu0 %v1603
        %1623 = vmatprep.subr.bf16.mxu0 0
        %1624 = vmatpush1.bf16.msra.mxu0 %v1604
        %1625 = vmatprep.subr.bf16.mxu0 0
        %1626 = vmatpush1.bf16.msra.mxu0 %v1605
        %1627 = vmatprep.subr.bf16.mxu0 0
        %1628 = vmatpush1.bf16.msra.mxu0 %v1606
        %1629 = vmatprep.subr.bf16.mxu0 0
        %1630 = vmatpush1.bf16.msra.mxu0 %v1607
        %1631 = vmatprep.subr.bf16.mxu0 0
        %1632 = vmatpush1.bf16.msra.mxu0 %v1608
        %1633 = vmatprep.subr.bf16.mxu0 0
        %1634 = vmatpush1.bf16.msra.mxu0 0
        %1635 = vmatprep.subr.bf16.mxu0 0
        %1636 = vmatpush1.bf16.msra.mxu0 0
        %1637 = vmatprep.subr.bf16.mxu0 0
        %1638 = vmatpush1.bf16.msra.mxu0 0
        %1639 = vmatprep.subr.bf16.mxu0 0
        %1640 = vmatpush1.bf16.msra.mxu0 0
        %1641 = vmatprep.subr.bf16.mxu0 0
        %1642 = vmatpush1.bf16.msra.mxu0 0
        %1643 = vmatprep.subr.bf16.mxu0 0
        %1644 = vmatpush1.bf16.msra.mxu0 0
        %1645 = vmatprep.subr.bf16.mxu0 0
        %1646 = vmatpush1.bf16.msra.mxu0 0
        %1647 = vmatprep.subr.bf16.mxu0 0
        %1648 = vmatpush1.bf16.msra.mxu0 0
        %1649 = vmatprep.mubr.bf16.mxu0 0
        %1650 = vmatmul.mubr.bf16.gmra.mrb[0].mxu0 %v1549
        %v1651 = vpop.f32.mrb[0].mxu0
        %v1652 = vadd.f32 0.0, %v1651
        %v1653 = vpop.f32.mrb[0].mxu0
        %v1654 = vpop.f32.mrb[0].mxu0
        %v1655 = vadd.f32 0.0, %v1654
        %v1656 = vpop.f32.mrb[0].mxu0
        %1657 = vmatprep.mubr.bf16.mxu0 0
        %1658 = vmatmul.mubr.bf16.gmra.mrb[0].mxu0 %v1550
        %v1659 = vpop.f32.mrb[0].mxu0
        %v1660 = vadd.f32 0.0, %v1659
        %v1661 = vpop.f32.mrb[0].mxu0
        %v1662 = vpop.f32.mrb[0].mxu0
        %v1663 = vadd.f32 0.0, %v1662
        %v1664 = vpop.f32.mrb[0].mxu0
        %1665 = vmatprep.mubr.bf16.mxu0 0
        %1666 = vmatmul.mubr.bf16.gmra.mrb[0].mxu0 %v1551
        %v1667 = vpop.f32.mrb[0].mxu0
        %v1668 = vadd.f32 0.0, %v1667
        %v1669 = vpop.f32.mrb[0].mxu0
        %v1670 = vpop.f32.mrb[0].mxu0
        %v1671 = vadd.f32 0.0, %v1670
        %v1672 = vpop.f32.mrb[0].mxu0
        %1673 = vmatprep.mubr.bf16.mxu0 0
        %1674 = vmatmul.mubr.bf16.gmra.mrb[0].mxu0 %v1552
        %v1675 = vpop.f32.mrb[0].mxu0
        %v1676 = vadd.f32 0.0, %v1675
        %v1677 = vpop.f32.mrb[0].mxu0
        %v1678 = vpop.f32.mrb[0].mxu0
        %v1679 = vadd.f32 0.0, %v1678
        %v1680 = vpop.f32.mrb[0].mxu0
        %1681 = vdwg.mxu0
        %v1682 = vadd.f32 %v1523, %v1652
        %v1683 = vadd.f32 %v1524, %v1655
        %v1684 = vadd.f32 %v1525, %v1660
        %v1685 = vadd.f32 %v1526, %v1663
        %v1686 = vadd.f32 %v1527, %v1668
        %v1687 = vadd.f32 %v1528, %v1671
        %v1688 = vadd.f32 %v1529, %v1676
        %v1689 = vadd.f32 %v1530, %v1679
        %v1690 = vld [vmem:[%s2] sm:$0x1]
        %v1692 = vlaneseq
        %v1693 = vshrl.u32 %v1692, 7
        %v1694 = vsub.s32 0, %v1693
        %v1695 = vrot.slane %v1690, %v1694
        %v1697 = vadd.f32 %v1682, %v1695
        %v1698 = vadd.f32 %v1683, %v1695
        %v1699 = vadd.f32 %v1684, %v1695
        %v1700 = vadd.f32 %v1685, %v1695
        %v1701 = vadd.f32 %v1686, %v1695
        %v1702 = vadd.f32 %v1687, %v1695
        %v1703 = vadd.f32 %v1688, %v1695
        %v1704 = vadd.f32 %v1689, %v1695
        %v1705 = vmul.f32 %v1697, 0.5
        %v1706 = vmul.f32 %v1698, 0.5
        %v1707 = vmul.f32 %v1699, 0.5
        %v1708 = vmul.f32 %v1700, 0.5
        %v1709 = vmul.f32 %v1701, 0.5
        %v1710 = vmul.f32 %v1702, 0.5
        %v1711 = vmul.f32 %v1703, 0.5
        %v1712 = vmul.f32 %v1704, 0.5
        %v1713 = vmul.f32 %v1697, 0.70710677
        %v1714 = vmul.f32 %v1698, 0.70710677
        %v1715 = vmul.f32 %v1699, 0.70710677
        %v1716 = vmul.f32 %v1700, 0.70710677
        %v1717 = vmul.f32 %v1701, 0.70710677
        %v1718 = vmul.f32 %v1702, 0.70710677
        %v1719 = vmul.f32 %v1703, 0.70710677
        %v1720 = vmul.f32 %v1704, 0.70710677
        %vm1721 = vcmp.ge.f32.partialorder %v1713, 0.0
        %vm1722 = vcmp.ge.f32.partialorder %v1714, 0.0
        %vm1723 = vcmp.ge.f32.partialorder %v1715, 0.0
        %vm1724 = vcmp.ge.f32.partialorder %v1716, 0.0
        %vm1725 = vcmp.ge.f32.partialorder %v1717, 0.0
        %vm1726 = vcmp.ge.f32.partialorder %v1718, 0.0
        %vm1727 = vcmp.ge.f32.partialorder %v1719, 0.0
        %vm1728 = vcmp.ge.f32.partialorder %v1720, 0.0
        %v1729 = vsel %vm1721, 1.0, -1.0
        %v1730 = vsel %vm1722, 1.0, -1.0
        %v1731 = vsel %vm1723, 1.0, -1.0
        %v1732 = vsel %vm1724, 1.0, -1.0
        %v1733 = vsel %vm1725, 1.0, -1.0
        %v1734 = vsel %vm1726, 1.0, -1.0
        %v1735 = vsel %vm1727, 1.0, -1.0
        %v1736 = vsel %vm1728, 1.0, -1.0
        %v1737 = vand.u32 2147483647, %v1713
        %v1738 = vand.u32 2147483647, %v1714
        %v1739 = vand.u32 2147483647, %v1715
        %v1740 = vand.u32 2147483647, %v1716
        %v1741 = vand.u32 2147483647, %v1717
        %v1742 = vand.u32 2147483647, %v1718
        %v1743 = vand.u32 2147483647, %v1719
        %v1744 = vand.u32 2147483647, %v1720
        %v1745 = vmul.f32 %v1737, 0.3275911
        %v1746 = vmul.f32 %v1738, 0.3275911
        %v1747 = vmul.f32 %v1739, 0.3275911
        %v1748 = vmul.f32 %v1740, 0.3275911
        %v1749 = vmul.f32 %v1741, 0.3275911
        %v1750 = vmul.f32 %v1742, 0.3275911
        %v1751 = vmul.f32 %v1743, 0.3275911
        %v1752 = vmul.f32 %v1744, 0.3275911
        %v1753 = vadd.f32 %v1745, 1.0
        %v1754 = vadd.f32 %v1746, 1.0
        %v1755 = vadd.f32 %v1747, 1.0
        %v1756 = vadd.f32 %v1748, 1.0
        %v1757 = vadd.f32 %v1749, 1.0
        %v1758 = vadd.f32 %v1750, 1.0
        %v1759 = vadd.f32 %v1751, 1.0
        %v1760 = vadd.f32 %v1752, 1.0
        %v1761 = vrcp.pop %v1753
        %v1762 = vmul.f32 1.0, %v1761
        %v1763 = vrcp.pop %v1754
        %v1764 = vmul.f32 1.0, %v1763
        %v1765 = vrcp.pop %v1755
        %v1766 = vmul.f32 1.0, %v1765
        %v1767 = vrcp.pop %v1756
        %v1768 = vmul.f32 1.0, %v1767
        %v1769 = vrcp.pop %v1757
        %v1770 = vmul.f32 1.0, %v1769
        %v1771 = vrcp.pop %v1758
        %v1772 = vmul.f32 1.0, %v1771
        %v1773 = vrcp.pop %v1759
        %v1774 = vmul.f32 1.0, %v1773
        %v1775 = vrcp.pop %v1760
        %v1776 = vmul.f32 1.0, %v1775
        %v1777 = vmul.f32 %v1762, 1.0614054
        %v1778 = vmul.f32 %v1764, 1.0614054
        %v1779 = vmul.f32 %v1766, 1.0614054
        %v1780 = vmul.f32 %v1768, 1.0614054
        %v1781 = vmul.f32 %v1770, 1.0614054
        %v1782 = vmul.f32 %v1772, 1.0614054
        %v1783 = vmul.f32 %v1774, 1.0614054
        %v1784 = vmul.f32 %v1776, 1.0614054
        %v1785 = vadd.f32 %v1777, -1.4531521
        %v1786 = vadd.f32 %v1778, -1.4531521
        %v1787 = vadd.f32 %v1779, -1.4531521
        %v1788 = vadd.f32 %v1780, -1.4531521
        %v1789 = vadd.f32 %v1781, -1.4531521
        %v1790 = vadd.f32 %v1782, -1.4531521
        %v1791 = vadd.f32 %v1783, -1.4531521
        %v1792 = vadd.f32 %v1784, -1.4531521
        %v1793 = vmul.f32 %v1785, %v1762
        %v1794 = vmul.f32 %v1786, %v1764
        %v1795 = vmul.f32 %v1787, %v1766
        %v1796 = vmul.f32 %v1788, %v1768
        %v1797 = vmul.f32 %v1789, %v1770
        %v1798 = vmul.f32 %v1790, %v1772
        %v1799 = vmul.f32 %v1791, %v1774
        %v1800 = vmul.f32 %v1792, %v1776
        %v1801 = vadd.f32 %v1793, 1.4214138
        %v1802 = vadd.f32 %v1794, 1.4214138
        %v1803 = vadd.f32 %v1795, 1.4214138
        %v1804 = vadd.f32 %v1796, 1.4214138
        %v1805 = vadd.f32 %v1797, 1.4214138
        %v1806 = vadd.f32 %v1798, 1.4214138
        %v1807 = vadd.f32 %v1799, 1.4214138
        %v1808 = vadd.f32 %v1800, 1.4214138
        %v1809 = vmul.f32 %v1801, %v1762
        %v1810 = vmul.f32 %v1802, %v1764
        %v1811 = vmul.f32 %v1803, %v1766
        %v1812 = vmul.f32 %v1804, %v1768
        %v1813 = vmul.f32 %v1805, %v1770
        %v1814 = vmul.f32 %v1806, %v1772
        %v1815 = vmul.f32 %v1807, %v1774
        %v1816 = vmul.f32 %v1808, %v1776
        %v1817 = vadd.f32 %v1809, -0.28449672
        %v1818 = vadd.f32 %v1810, -0.28449672
        %v1819 = vadd.f32 %v1811, -0.28449672
        %v1820 = vadd.f32 %v1812, -0.28449672
        %v1821 = vadd.f32 %v1813, -0.28449672
        %v1822 = vadd.f32 %v1814, -0.28449672
        %v1823 = vadd.f32 %v1815, -0.28449672
        %v1824 = vadd.f32 %v1816, -0.28449672
        %v1825 = vmul.f32 %v1817, %v1762
        %v1826 = vmul.f32 %v1818, %v1764
        %v1827 = vmul.f32 %v1819, %v1766
        %v1828 = vmul.f32 %v1820, %v1768
        %v1829 = vmul.f32 %v1821, %v1770
        %v1830 = vmul.f32 %v1822, %v1772
        %v1831 = vmul.f32 %v1823, %v1774
        %v1832 = vmul.f32 %v1824, %v1776
        %v1833 = vadd.f32 %v1825, 0.2548296
        %v1834 = vadd.f32 %v1826, 0.2548296
        %v1835 = vadd.f32 %v1827, 0.2548296
        %v1836 = vadd.f32 %v1828, 0.2548296
        %v1837 = vadd.f32 %v1829, 0.2548296
        %v1838 = vadd.f32 %v1830, 0.2548296
        %v1839 = vadd.f32 %v1831, 0.2548296
        %v1840 = vadd.f32 %v1832, 0.2548296
        %v1841 = vmul.f32 %v1833, %v1762
        %v1842 = vmul.f32 %v1834, %v1764
        %v1843 = vmul.f32 %v1835, %v1766
        %v1844 = vmul.f32 %v1836, %v1768
        %v1845 = vmul.f32 %v1837, %v1770
        %v1846 = vmul.f32 %v1838, %v1772
        %v1847 = vmul.f32 %v1839, %v1774
        %v1848 = vmul.f32 %v1840, %v1776
        %v1849 = vmul.f32 %v1737, %v1737
        %v1850 = vmul.f32 %v1738, %v1738
        %v1851 = vmul.f32 %v1739, %v1739
        %v1852 = vmul.f32 %v1740, %v1740
        %v1853 = vmul.f32 %v1741, %v1741
        %v1854 = vmul.f32 %v1742, %v1742
        %v1855 = vmul.f32 %v1743, %v1743
        %v1856 = vmul.f32 %v1744, %v1744
        %v1857 = vsub.f32 0.0, %v1849
        %v1858 = vsub.f32 0.0, %v1850
        %v1859 = vsub.f32 0.0, %v1851
        %v1860 = vsub.f32 0.0, %v1852
        %v1861 = vsub.f32 0.0, %v1853
        %v1862 = vsub.f32 0.0, %v1854
        %v1863 = vsub.f32 0.0, %v1855
        %v1864 = vsub.f32 0.0, %v1856
        %v1865 = vmul.f32 %v1857, 1.442695
        %v1866 = vpow.pop %v1865
        %v1867 = vmul.f32 %v1858, 1.442695
        %v1868 = vpow.pop %v1867
        %v1869 = vmul.f32 %v1859, 1.442695
        %v1870 = vpow.pop %v1869
        %v1871 = vmul.f32 %v1860, 1.442695
        %v1872 = vpow.pop %v1871
        %v1873 = vmul.f32 %v1861, 1.442695
        %v1874 = vpow.pop %v1873
        %v1875 = vmul.f32 %v1862, 1.442695
        %v1876 = vpow.pop %v1875
        %v1877 = vmul.f32 %v1863, 1.442695
        %v1878 = vpow.pop %v1877
        %v1879 = vmul.f32 %v1864, 1.442695
        %v1880 = vpow.pop %v1879
        %v1881 = vmul.f32 %v1841, %v1866
        %v1882 = vmul.f32 %v1842, %v1868
        %v1883 = vmul.f32 %v1843, %v1870
        %v1884 = vmul.f32 %v1844, %v1872
        %v1885 = vmul.f32 %v1845, %v1874
        %v1886 = vmul.f32 %v1846, %v1876
        %v1887 = vmul.f32 %v1847, %v1878
        %v1888 = vmul.f32 %v1848, %v1880
        %v1889 = vsub.f32 1.0, %v1881
        %v1890 = vsub.f32 1.0, %v1882
        %v1891 = vsub.f32 1.0, %v1883
        %v1892 = vsub.f32 1.0, %v1884
        %v1893 = vsub.f32 1.0, %v1885
        %v1894 = vsub.f32 1.0, %v1886
        %v1895 = vsub.f32 1.0, %v1887
        %v1896 = vsub.f32 1.0, %v1888
        %v1897 = vmul.f32 %v1729, %v1889
        %v1898 = vmul.f32 %v1730, %v1890
        %v1899 = vmul.f32 %v1731, %v1891
        %v1900 = vmul.f32 %v1732, %v1892
        %v1901 = vmul.f32 %v1733, %v1893
        %v1902 = vmul.f32 %v1734, %v1894
        %v1903 = vmul.f32 %v1735, %v1895
        %v1904 = vmul.f32 %v1736, %v1896
        %v1905 = vadd.f32 %v1897, 1.0
        %v1906 = vadd.f32 %v1898, 1.0
        %v1907 = vadd.f32 %v1899, 1.0
        %v1908 = vadd.f32 %v1900, 1.0
        %v1909 = vadd.f32 %v1901, 1.0
        %v1910 = vadd.f32 %v1902, 1.0
        %v1911 = vadd.f32 %v1903, 1.0
        %v1912 = vadd.f32 %v1904, 1.0
        %v1913 = vmul.f32 %v1705, %v1905
        %v1914 = vmul.f32 %v1706, %v1906
        %v1915 = vmul.f32 %v1707, %v1907
        %v1916 = vmul.f32 %v1708, %v1908
        %v1917 = vmul.f32 %v1709, %v1909
        %v1918 = vmul.f32 %v1710, %v1910
        %v1919 = vmul.f32 %v1711, %v1911
        %v1920 = vmul.f32 %v1712, %v1912
        %v1921 = vadd.f32 %v1913, %v441
        %v1922 = vadd.f32 %v1914, %v442
        %v1923 = vadd.f32 %v1915, %v443
        %v1924 = vadd.f32 %v1916, %v444
        %v1925 = vadd.f32 %v1917, %v445
        %v1926 = vadd.f32 %v1918, %v446
        %v1927 = vadd.f32 %v1919, %v447
        %v1928 = vadd.f32 %v1920, %v448
        %1929 = vadd.xlane.f32.xlu0 %v1921
        %v1930 = vpop.xlane.xlu0 %1929
        %1931 = vadd.xlane.f32.xlu0 %v1922
        %v1932 = vpop.xlane.xlu0 %1931
        %1933 = vadd.xlane.f32.xlu0 %v1923
        %v1934 = vpop.xlane.xlu0 %1933
        %1935 = vadd.xlane.f32.xlu0 %v1924
        %v1936 = vpop.xlane.xlu0 %1935
        %1937 = vadd.xlane.f32.xlu0 %v1925
        %v1938 = vpop.xlane.xlu0 %1937
        %1939 = vadd.xlane.f32.xlu0 %v1926
        %v1940 = vpop.xlane.xlu0 %1939
        %1941 = vadd.xlane.f32.xlu0 %v1927
        %v1942 = vpop.xlane.xlu0 %1941
        %1943 = vadd.xlane.f32.xlu0 %v1928
        %v1944 = vpop.xlane.xlu0 %1943
        %v1945 = vrcp.pop 128.0
        %v1946 = vmul.f32 %v1930, %v1945
        %v1947 = vmul.f32 %v1932, %v1945
        %v1948 = vmul.f32 %v1934, %v1945
        %v1949 = vmul.f32 %v1936, %v1945
        %v1950 = vmul.f32 %v1938, %v1945
        %v1951 = vmul.f32 %v1940, %v1945
        %v1952 = vmul.f32 %v1942, %v1945
        %v1953 = vmul.f32 %v1944, %v1945
        %v1954 = vsub.f32 %v1921, %v1946
        %v1955 = vsub.f32 %v1922, %v1947
        %v1956 = vsub.f32 %v1923, %v1948
        %v1957 = vsub.f32 %v1924, %v1949
        %v1958 = vsub.f32 %v1925, %v1950
        %v1959 = vsub.f32 %v1926, %v1951
        %v1960 = vsub.f32 %v1927, %v1952
        %v1961 = vsub.f32 %v1928, %v1953
        %v1962 = vmul.f32 %v1954, %v1954
        %v1963 = vmul.f32 %v1955, %v1955
        %v1964 = vmul.f32 %v1956, %v1956
        %v1965 = vmul.f32 %v1957, %v1957
        %v1966 = vmul.f32 %v1958, %v1958
        %v1967 = vmul.f32 %v1959, %v1959
        %v1968 = vmul.f32 %v1960, %v1960
        %v1969 = vmul.f32 %v1961, %v1961
        %1970 = vadd.xlane.f32.xlu0 %v1962
        %v1971 = vpop.xlane.xlu0 %1970
        %1972 = vadd.xlane.f32.xlu0 %v1963
        %v1973 = vpop.xlane.xlu0 %1972
        %1974 = vadd.xlane.f32.xlu0 %v1964
        %v1975 = vpop.xlane.xlu0 %1974
        %1976 = vadd.xlane.f32.xlu0 %v1965
        %v1977 = vpop.xlane.xlu0 %1976
        %1978 = vadd.xlane.f32.xlu0 %v1966
        %v1979 = vpop.xlane.xlu0 %1978
        %1980 = vadd.xlane.f32.xlu0 %v1967
        %v1981 = vpop.xlane.xlu0 %1980
        %1982 = vadd.xlane.f32.xlu0 %v1968
        %v1983 = vpop.xlane.xlu0 %1982
        %1984 = vadd.xlane.f32.xlu0 %v1969
        %v1985 = vpop.xlane.xlu0 %1984
        %v1986 = vmul.f32 %v1971, %v1945
        %v1987 = vmul.f32 %v1973, %v1945
        %v1988 = vmul.f32 %v1975, %v1945
        %v1989 = vmul.f32 %v1977, %v1945
        %v1990 = vmul.f32 %v1979, %v1945
        %v1991 = vmul.f32 %v1981, %v1945
        %v1992 = vmul.f32 %v1983, %v1945
        %v1993 = vmul.f32 %v1985, %v1945
        %v1994 = vadd.f32 %v1986, 1e-05
        %v1995 = vadd.f32 %v1987, 1e-05
        %v1996 = vadd.f32 %v1988, 1e-05
        %v1997 = vadd.f32 %v1989, 1e-05
        %v1998 = vadd.f32 %v1990, 1e-05
        %v1999 = vadd.f32 %v1991, 1e-05
        %v2000 = vadd.f32 %v1992, 1e-05
        %v2001 = vadd.f32 %v1993, 1e-05
        %v2002 = vrsqrt.pop %v1994
        %v2003 = vrsqrt.pop %v1995
        %v2004 = vrsqrt.pop %v1996
        %v2005 = vrsqrt.pop %v1997
        %v2006 = vrsqrt.pop %v1998
        %v2007 = vrsqrt.pop %v1999
        %v2008 = vrsqrt.pop %v2000
        %v2009 = vrsqrt.pop %v2001
        %v2010 = vmul.f32 %v1954, %v2002
        %v2011 = vmul.f32 %v1955, %v2003
        %v2012 = vmul.f32 %v1956, %v2004
        %v2013 = vmul.f32 %v1957, %v2005
        %v2014 = vmul.f32 %v1958, %v2006
        %v2015 = vmul.f32 %v1959, %v2007
        %v2016 = vmul.f32 %v1960, %v2008
        %v2017 = vmul.f32 %v1961, %v2009
        %v2018 = vld [vmem:[%s3] sm:$0x1]
        %v2020 = vlaneseq
        %v2021 = vshrl.u32 %v2020, 7
        %v2022 = vsub.s32 0, %v2021
        %v2023 = vrot.slane %v2018, %v2022
        %v2025 = vmul.f32 %v2010, %v2023
        %v2026 = vmul.f32 %v2011, %v2023
        %v2027 = vmul.f32 %v2012, %v2023
        %v2028 = vmul.f32 %v2013, %v2023
        %v2029 = vmul.f32 %v2014, %v2023
        %v2030 = vmul.f32 %v2015, %v2023
        %v2031 = vmul.f32 %v2016, %v2023
        %v2032 = vmul.f32 %v2017, %v2023
        %v2033 = vld [vmem:[%s4] sm:$0x1]
        %v2035 = vlaneseq
        %v2036 = vshrl.u32 %v2035, 7
        %v2037 = vsub.s32 0, %v2036
        %v2038 = vrot.slane %v2033, %v2037
        %v2040 = vadd.f32 %v2025, %v2038
        %v2041 = vadd.f32 %v2026, %v2038
        %v2042 = vadd.f32 %v2027, %v2038
        %v2043 = vadd.f32 %v2028, %v2038
        %v2044 = vadd.f32 %v2029, %v2038
        %v2045 = vadd.f32 %v2030, %v2038
        %v2046 = vadd.f32 %v2031, %v2038
        %v2047 = vadd.f32 %v2032, %v2038
        %2048 = vst [vmem:[%s205] sm:$0xff] %v2040
        %2049 = vst [vmem:[%s205 + $0x8] sm:$0xff] %v2041
        %2050 = vst [vmem:[%s205 + $0x10] sm:$0xff] %v2042
        %2051 = vst [vmem:[%s205 + $0x18] sm:$0xff] %v2043
        %2052 = vst [vmem:[%s205 + $0x20] sm:$0xff] %v2044
        %2053 = vst [vmem:[%s205 + $0x28] sm:$0xff] %v2045
        %2054 = vst [vmem:[%s205 + $0x30] sm:$0xff] %v2046
        %2055 = vst [vmem:[%s205 + $0x38] sm:$0xff] %v2047
        %s2056 = sand.u32 %s126, 1
        %s2057 = scalar_lea.sflag [#allocation6], %s2056
        %s2058 = sand.u32 %s126, 1
        %s2059 = smul.addr %s2058, 64
        %s2060 = scalar_lea.vmem [#allocation7], %s2059
        // Predicated region
        $region117: #{tpu_custom_call.1} parent=35 // pred_check
          %p2061 = pneg %p136
        $region118: #{tpu_custom_call.1} parent=35 // pred_check_branch
          %2063 = sbr.rel (%p2061) target = $region120
        $region119: #{tpu_custom_call.1} parent=35 // pred_region
          %s2064 = smul.u32 8, %s25
          %s2066 = ssub.s32 1024, 1024
          %2067 = vsyncadd %s2057, %s2066
          %s2068 = smul.addr %s24, 24
          %s2069 = sadd.s32 %s2064, %s2068
          %s2070 = smul.addr %s2069, 128
          %s2071 = scalar_lea.hbm %s5, %s2070
          %s2072 = sshll.u32 %s2060, 4
          %s2073 = int_to_ptr.vmem [resolvable:$true] %s2072
          %2078 = dma.vmem_to_hbm [thread:$0]  %s2073, 1024, %s2071, %s2057, 128, 128, 8
        $region120: #{tpu_custom_call.1} parent=35 // pred_fallthru
          _
      $region36: #{tpu_custom_call.1} parent=5 // pred_fallthru
        _
      %p2079 = scmp.le.s32.totalorder 2, %s15
      // Predicated region
      $region121: #{tpu_custom_call.1} parent=5 // pred_check
        %p2080 = pneg %p2079
      $region122: #{tpu_custom_call.1} parent=5 // pred_check_branch
        %2082 = sbr.rel (%p2080) target = $region124
      $region123: #{tpu_custom_call.1} parent=5 // pred_region
        %s2083 = ssub.s32 %s15, 2
        // Predicated region
        $region125: #{tpu_custom_call.1} parent=123 // pred_check
          %p2084 = pneg %p142
        $region126: #{tpu_custom_call.1} parent=123 // pred_check_branch
          %2086 = sbr.rel (%p2084) target = $region128
        $region127: #{tpu_custom_call.1} parent=123 // pred_region
          %s2087 = sand.u32 %s127, 1
          %s2088 = scalar_lea.sflag [#allocation6], %s2087
          %s2089 = sand.u32 %s127, 1
          %s2090 = smul.addr %s2089, 64
          %s2091 = scalar_lea.vmem [#allocation7], %s2090
          %2092 = dma.done %s2088, 1024
        $region128: #{tpu_custom_call.1} parent=123 // pred_fallthru
          _
      $region124: #{tpu_custom_call.1} parent=5 // pred_fallthru
        _
    $region6: #{tpu_custom_call.1} parent=1 // loop_footer
      %s19 = sadd.s32 1, %s15
    $region7: #{tpu_custom_call.1} parent=1 // loop_footer_branch
      %14 = sbr.rel target = $region3
    $region8: #{tpu_custom_call.1} parent=1 // loop_exit
      _
    %2093 = vsyncpa [#allocation5], 1
    %s2094 = scalar_lea.sflag [#allocation5], 1
    %2095 = vsyncpa %s2094, 1
    %2096 = vsyncpa [#allocation6], 1
    %s2097 = scalar_lea.sflag [#allocation6], 1
    %2098 = vsyncpa %s2097, 1
  %2099 = vsyncmov [#allocation3]
  %s2100 = vpop.sfrf %2099
  %p2101 = scmp.eq.s32.totalorder %s2100, 0
  %p2102 = pneg %p2101
  %2104 = shalt.err (%p2102)
  %s2105 = scalar_lea.sflag [#allocation3], 1
  %2106 = vsyncmov %s2105
  %s2107 = vpop.sfrf %2106
  %p2108 = scmp.eq.s32.totalorder %s2107, 0
  %p2109 = pneg %p2108
  %2111 = shalt.err (%p2109)

// kernel: tpu_custom_call.1
$region0: #{tpu_custom_call.1}
  #allocation0 [shape = 'u32[]', space=smem, size = 0x4, offset = 0x4, fixed_abs, tag = 'smem constant byte address 0x4 - core index']
  #allocation1 [shape = 'u32[144,128]{1,0:T(1,128)}', space=vmem, size = 0x12000, scoped, tag = 'internal scratch']
  #allocation2 [shape = 'f32[2,80,128]{2,1,0:T(8,128)}', space=vmem, size = 0x14000, scoped, tag = 'scratch operand']
  #allocation3 [shape = 's32[2]{0}', space=sflag, size = 0x8, scoped, tag = 'scratch operand']
  #allocation8 [shape = 's32[]', space=sflag, size = 0x4, offset = 0, fixed_abs, tag = 'sflag constant byte address 0x0 - dummy sync flag']
  #allocation9 [shape = 's32[]', space=sflag, size = 0x4, offset = 0, fixed_abs, tag = 'sflag constant byte address 0x0 - dummy sync flag']
  #allocation10 [shape = 'u32[]', space=smem, size = 0x4, offset = 0x44, fixed_abs, tag = 'smem constant byte address 0x44 - assertion arg 0']
  #allocation11 [shape = 'u32[]', space=smem, size = 0x4, offset = 0x48, fixed_abs, tag = 'smem constant byte address 0x48 - assertion arg 1']
  #allocation12 [shape = 's32[]', space=sflag, size = 0x4, offset = 0, fixed_abs, tag = 'sflag constant byte address 0x0 - dummy sync flag']
  #allocation13 [shape = 's32[]', space=sflag, size = 0x4, offset = 0, fixed_abs, tag = 'sflag constant byte address 0x0 - dummy sync flag']
  #allocation14 [shape = 's32[]', space=sflag, size = 0x4, offset = 0, fixed_abs, tag = 'sflag constant byte address 0x0 - dummy sync flag']
  #allocation15 [shape = 's32[]', space=sflag, size = 0x4, offset = 0, fixed_abs, tag = 'sflag constant byte address 0x0 - dummy sync flag']
  #allocation16 [shape = 's32[]', space=sflag, size = 0x4, offset = 0, fixed_abs, tag = 'sflag constant byte address 0x0 - dummy sync flag']
  #allocation17 [shape = 's32[]', space=sflag, size = 0x4, offset = 0, fixed_abs, tag = 'sflag constant byte address 0x0 - dummy sync flag']
  #allocation18 [shape = 's32[]', space=sflag, size = 0x4, offset = 0, fixed_abs, tag = 'sflag constant byte address 0x0 - dummy sync flag']
  #allocation19 [shape = 's32[]', space=sflag, size = 0x4, offset = 0, fixed_abs, tag = 'sflag constant byte address 0x0 - dummy sync flag']
  #allocation20 [shape = 's32[]', space=sflag, size = 0x4, offset = 0, fixed_abs, tag = 'sflag constant byte address 0x0 - dummy sync flag']
  #allocation21 [shape = 's32[]', space=sflag, size = 0x4, offset = 0, fixed_abs, tag = 'sflag constant byte address 0x0 - dummy sync flag']
  %s0 = inlined_call_operand.hbm [shape: f32[2,192,128], index: 0, kind: input, shape index: {}]
  %s1 = inlined_call_operand.hbm [shape: bf16[1,1024,128], index: 1, kind: input, shape index: {}]
  %s2 = inlined_call_operand.vmem [shape: f32[1,128], index: 2, kind: input, shape index: {}]
  %s3 = inlined_call_operand.vmem [shape: f32[1,128], index: 3, kind: input, shape index: {}]
  %s4 = inlined_call_operand.vmem [shape: f32[1,128], index: 4, kind: input, shape index: {}]
  %s5 = inlined_call_operand.hbm [shape: f32[2,192,128], index: 5, kind: output, shape index: {}]
  %s6 = sld [smem:[#allocation0]]
  $region129: #{tpu_custom_call.1} parent=0
    _
  %s8 = ssub.s32 1, %s6
  %s9 = scalar_select 0, %s8, %s6
  $region1: #{tpu_custom_call.1} parent=0
    #allocation4 [shape = 'u8[262144]{0}', space=vmem, size = 0x40000, scoped, tag = 'input window, operand 1, single buffered']
    #allocation5 [shape = 's32[2]{0}', space=sflag, size = 0x8, scoped, tag = 'scoped memory for tpu_custom_call.1']
    #allocation6 [shape = 's32[2]{0}', space=sflag, size = 0x8, scoped, tag = 'scoped memory for tpu_custom_call.1']
    #allocation7 [shape = 'u8[65536]{0}', space=vmem, size = 0x10000, scoped, tag = 'output window, operand 0']
    %10 = vsyncpa [#allocation5], 0
    %11 = vsyncpa [#allocation6], 0
    %s12 = scalar_lea.sflag [#allocation6], 1
    %13 = vsyncpa %s12, 0
    loop: start=0, step=1, limit=8
    $region2: #{tpu_custom_call.1} parent=1 // loop_pre_header
      _
    $region3: #{tpu_custom_call.1} parent=1 // loop_header
      %s15 = sphi 0, %s19
      %p16 = scmp.ge.s32.totalorder %s15, 8
      %s22 = sphi 0, %s34
      %s23 = sphi 0, %s30
      %s24 = sphi 0, %s22
      %s25 = sphi 0, %s23
      %s26 = sphi 0, %s24
      %s27 = sphi 0, %s25
      %s35 = sphi 0, %s35
      %s37 = sphi 0, %s35
      %s38 = sphi 0, %s37
      %s52 = sphi 0, %s38
      %s56 = sphi 0, %s56
      %s58 = sphi 0, %s56
      %s59 = sphi 0, %s58
      %s73 = sphi 0, %s59
      %s77 = sphi 0, %s77
      %s79 = sphi 0, %s77
      %s80 = sphi 0, %s79
      %s94 = sphi 0, %s80
      %s98 = sphi 0, %s98
      %s100 = sphi 0, %s98
      %s101 = sphi 0, %s100
      %s115 = sphi 0, %s101
      %s123 = sphi 0, %s125
      %s126 = sphi 0, %s123
      %s127 = sphi 0, %s126
      %s143 = sphi 0, %s127
    $region4: #{tpu_custom_call.1} parent=1 // loop_header_branch
      %18 = sbr.rel (%p16) target = $region8
    $region5: #{tpu_custom_call.1} parent=1 // loop_body
      %s20 = ssub.s32 %s15, 1
      %s21 = ssub.s32 %s15, 2
      %s28 = sadd.s32 1, %s23
      %p29 = scmp.ge.s32.totalorder %s28, 3
      %s30 = scalar_select %p29, 0, %s28
      %s31 = sadd.s32 1, %s22
      %s32 = scalar_select %p29, %s31, %s22
      %p33 = scmp.ge.s32.totalorder %s32, 2
      %s34 = scalar_select %p33, 0, %s32
      %s36 = sadd.s32 %s35, 1
      %p39 = scmp.eq.s32.totalorder %s15, 5
      %p40 = scmp.ne.s32.totalorder %s35, %s37
      %p41 = scmp.eq.s32.totalorder %s15, 0
      %p42 = por %p40, %p41
      %p43 = scmp.ne.s32.totalorder %s35, %s37
      %p44 = scmp.eq.s32.totalorder %s20, 5
      %p45 = por %p43, %p44
      %p46 = scmp.ne.s32.totalorder %s37, %s38
      %p47 = scmp.eq.s32.totalorder %s20, 0
      %p48 = por %p46, %p47
      %p49 = scmp.ne.s32.totalorder %s37, %s38
      %p50 = scmp.eq.s32.totalorder %s21, 5
      %p51 = por %p49, %p50
      %p53 = scmp.ne.s32.totalorder %s38, %s52
      %p54 = scmp.eq.s32.totalorder %s21, 0
      %p55 = por %p53, %p54
      %s57 = sadd.s32 %s56, 1
      %p60 = scmp.eq.s32.totalorder %s15, 5
      %p61 = scmp.ne.s32.totalorder %s56, %s58
      %p62 = scmp.eq.s32.totalorder %s15, 0
      %p63 = por %p61, %p62
      %p64 = scmp.ne.s32.totalorder %s56, %s58
      %p65 = scmp.eq.s32.totalorder %s20, 5
      %p66 = por %p64, %p65
      %p67 = scmp.ne.s32.totalorder %s58, %s59
      %p68 = scmp.eq.s32.totalorder %s20, 0
      %p69 = por %p67, %p68
      %p70 = scmp.ne.s32.totalorder %s58, %s59
      %p71 = scmp.eq.s32.totalorder %s21, 5
      %p72 = por %p70, %p71
      %p74 = scmp.ne.s32.totalorder %s59, %s73
      %p75 = scmp.eq.s32.totalorder %s21, 0
      %p76 = por %p74, %p75
      %s78 = sadd.s32 %s77, 1
      %p81 = scmp.eq.s32.totalorder %s15, 5
      %p82 = scmp.ne.s32.totalorder %s77, %s79
      %p83 = scmp.eq.s32.totalorder %s15, 0
      %p84 = por %p82, %p83
      %p85 = scmp.ne.s32.totalorder %s77, %s79
      %p86 = scmp.eq.s32.totalorder %s20, 5
      %p87 = por %p85, %p86
      %p88 = scmp.ne.s32.totalorder %s79, %s80
      %p89 = scmp.eq.s32.totalorder %s20, 0
      %p90 = por %p88, %p89
      %p91 = scmp.ne.s32.totalorder %s79, %s80
      %p92 = scmp.eq.s32.totalorder %s21, 5
      %p93 = por %p91, %p92
      %p95 = scmp.ne.s32.totalorder %s80, %s94
      %p96 = scmp.eq.s32.totalorder %s21, 0
      %p97 = por %p95, %p96
      %s99 = sadd.s32 %s98, 1
      %p102 = scmp.eq.s32.totalorder %s15, 5
      %p103 = scmp.ne.s32.totalorder %s98, %s100
      %p104 = scmp.eq.s32.totalorder %s15, 0
      %p105 = por %p103, %p104
      %p106 = scmp.ne.s32.totalorder %s98, %s100
      %p107 = scmp.eq.s32.totalorder %s20, 5
      %p108 = por %p106, %p107
      %p109 = scmp.ne.s32.totalorder %s100, %s101
      %p110 = scmp.eq.s32.totalorder %s20, 0
      %p111 = por %p109, %p110
      %p112 = scmp.ne.s32.totalorder %s100, %s101
      %p113 = scmp.eq.s32.totalorder %s21, 5
      %p114 = por %p112, %p113
      %p116 = scmp.ne.s32.totalorder %s101, %s115
      %p117 = scmp.eq.s32.totalorder %s21, 0
      %p118 = por %p116, %p117
      %s119 = ssub.s32 %s22, %s34
      %s120 = ssub.s32 %s23, %s30
      %s121 = sor.u32 %s119, %s120
      %p122 = scmp.eq.s32.totalorder %s121, 0
      %s124 = sadd.s32 %s123, 1
      %s125 = scalar_select %p122, %s123, %s124
      %p128 = pneg %p122
      %p129 = scmp.eq.s32.totalorder %s15, 5
      %p130 = por %p128, %p129
      %p131 = scmp.ne.s32.totalorder %s123, %s126
      %p132 = scmp.eq.s32.totalorder %s15, 0
      %p133 = por %p131, %p132
      %p134 = scmp.ne.s32.totalorder %s123, %s126
      %p135 = scmp.eq.s32.totalorder %s20, 5
      %p136 = por %p134, %p135
      %p137 = scmp.ne.s32.totalorder %s126, %s127
      %p138 = scmp.eq.s32.totalorder %s20, 0
      %p139 = por %p137, %p138
      %p140 = scmp.ne.s32.totalorder %s126, %s127
      %p141 = scmp.eq.s32.totalorder %s21, 5
      %p142 = por %p140, %p141
      %p144 = scmp.ne.s32.totalorder %s127, %s143
      %p145 = scmp.eq.s32.totalorder %s21, 0
      %p146 = por %p144, %p145
      %p147 = scmp.le.s32.totalorder 1, %s15
      %p148 = scmp.lt.s32.totalorder %s15, 7
      %p149 = pnand %p147, %p148
      %p150 = pneg %p149
      // Predicated region
      $region9: #{tpu_custom_call.1} parent=5 // pred_check
        _
      $region10: #{tpu_custom_call.1} parent=5 // pred_check_branch
        %152 = sbr.rel (%p149) target = $region12
      $region11: #{tpu_custom_call.1} parent=5 // pred_region
        %s153 = ssub.s32 %s15, 1
        // Predicated region
        $region13: #{tpu_custom_call.1} parent=11 // pred_check
          %p154 = pneg %p48
        $region14: #{tpu_custom_call.1} parent=11 // pred_check_branch
          %156 = sbr.rel (%p154) target = $region16
        $region15: #{tpu_custom_call.1} parent=11 // pred_region
          %s158 = ssub.s32 8192, 8192
          %159 = vsyncadd [#allocation5], %s158
          %s160 = sshll.u32 [#allocation4], 4
          %s161 = int_to_ptr.vmem [resolvable:$true] %s160
          %166 = dma.hbm_to_vmem [thread:$0]  %s1, 8192, %s161, [#allocation5], 64, 64, 4
        $region16: #{tpu_custom_call.1} parent=11 // pred_fallthru
          _
        // Predicated region
        $region17: #{tpu_custom_call.1} parent=11 // pred_check
          %p167 = pneg %p69
        $region18: #{tpu_custom_call.1} parent=11 // pred_check_branch
          %169 = sbr.rel (%p167) target = $region20
        $region19: #{tpu_custom_call.1} parent=11 // pred_region
          _
        $region20: #{tpu_custom_call.1} parent=11 // pred_fallthru
          _
        // Predicated region
        $region21: #{tpu_custom_call.1} parent=11 // pred_check
          %p170 = pneg %p90
        $region22: #{tpu_custom_call.1} parent=11 // pred_check_branch
          %172 = sbr.rel (%p170) target = $region24
        $region23: #{tpu_custom_call.1} parent=11 // pred_region
          _
        $region24: #{tpu_custom_call.1} parent=11 // pred_fallthru
          _
        // Predicated region
        $region25: #{tpu_custom_call.1} parent=11 // pred_check
          %p173 = pneg %p111
        $region26: #{tpu_custom_call.1} parent=11 // pred_check_branch
          %175 = sbr.rel (%p173) target = $region28
        $region27: #{tpu_custom_call.1} parent=11 // pred_region
          _
        $region28: #{tpu_custom_call.1} parent=11 // pred_fallthru
          _
      $region12: #{tpu_custom_call.1} parent=5 // pred_fallthru
        _
      %p176 = scmp.lt.s32.totalorder %s15, 6
      // Predicated region
      $region29: #{tpu_custom_call.1} parent=5 // pred_check
        %p177 = pneg %p176
      $region30: #{tpu_custom_call.1} parent=5 // pred_check_branch
        %179 = sbr.rel (%p177) target = $region32
      $region31: #{tpu_custom_call.1} parent=5 // pred_region
        _
      $region32: #{tpu_custom_call.1} parent=5 // pred_fallthru
        _
      %p180 = scmp.le.s32.totalorder 1, %s15
      %p181 = scmp.lt.s32.totalorder %s15, 7
      %p182 = pnand %p180, %p181
      %p183 = pneg %p182
      // Predicated region
      $region33: #{tpu_custom_call.1} parent=5 // pred_check
        _
      $region34: #{tpu_custom_call.1} parent=5 // pred_check_branch
        %185 = sbr.rel (%p182) target = $region36
      $region35: #{tpu_custom_call.1} parent=5 // pred_region
        %s186 = ssub.s32 %s15, 1
        // Predicated region
        $region37: #{tpu_custom_call.1} parent=35 // pred_check
          %p187 = pneg %p48
        $region38: #{tpu_custom_call.1} parent=35 // pred_check_branch
          %189 = sbr.rel (%p187) target = $region40
        $region39: #{tpu_custom_call.1} parent=35 // pred_region
          %190 = dma.done [#allocation5], 8192
        $region40: #{tpu_custom_call.1} parent=35 // pred_fallthru
          _
        %p191 = pneg %p48
        %p192 = pneg %p45
        %p193 = pneg %p69
        %p194 = pneg %p66
        %p195 = pneg %p90
        %p196 = pneg %p87
        %p197 = pneg %p111
        %p198 = pneg %p108
        %p199 = pneg %p139
        %p200 = pneg %p136
        %s201 = sand.u32 %s126, 1
        %s202 = scalar_lea.sflag [#allocation6], %s201
        %s203 = sand.u32 %s126, 1
        %s204 = smul.addr %s203, 64
        %s205 = scalar_lea.vmem [#allocation7], %s204
        %s206 = smul.u32 8, %s25
        %p208 = scmp.lt.s32.totalorder %s25, 0
        %s209 = ssub.s32 0, %s25
        %s210 = scalar_select %p208, %s209, %s25
        %s211 = sand.u32 %s210, 1
        %s212 = ssub.s32 0, %s211
        %s213 = scalar_select %p208, %s212, %s211
        %p214 = scmp.ne.s32.totalorder %s213, 0
        %p215 = scmp.lt.s32.totalorder %s213, 0
        %p216 = pnand %p215, %p214
        %p217 = pneg %p216
        %s218 = sadd.s32 %s213, 2
        %s219 = scalar_select %p217, %s218, %s213
        %p220 = scmp.eq.s32.totalorder %s25, 0
        // Predicated region
        $region41: #{tpu_custom_call.1} parent=35 // pred_check
          %p221 = pneg %p220
        $region42: #{tpu_custom_call.1} parent=35 // pred_check_branch
          %223 = sbr.rel (%p221) target = $region44
        $region43: #{tpu_custom_call.1} parent=35 // pred_region
          %p224 = scmp.eq.s32.totalorder %s25, 2
          %s225 = smul.u32 %s25, 64
          %s226 = ssub.s32 %s225, 8
          %p227 = scmp.gt.s32.totalorder %s226, 0
          %s228 = scalar_select %p227, %s226, 0
          // Predicated region
          $region45: #{tpu_custom_call.1} parent=43 // pred_check
            %p229 = pneg %p224
          $region46: #{tpu_custom_call.1} parent=43 // pred_check_branch
            %231 = sbr.rel (%p229) target = $region48
          $region47: #{tpu_custom_call.1} parent=43 // pred_region
            %s232 = smul.u32 %s24, 192
            %s233 = sadd.s32 %s228, %s232
            %s234 = smul.addr %s233, 16
            %s235 = scalar_lea.hbm %s0, %s234
            %s236 = smul.u32 %s219, 80
            %s237 = sadd.s32 8, %s236
            %s238 = scalar_lea.vmem [#allocation2], %s237
            %s239 = scalar_lea.sflag [#allocation3], %s219
            // Predicated region
            $region49: #{tpu_custom_call.1} parent=47 // pred_check
              _
            $region50: #{tpu_custom_call.1} parent=47 // pred_check_branch
              %241 = sbr.rel target = $region52
            $region51: #{tpu_custom_call.1} parent=47 // pred_region
              %242 = sst [smem:[#allocation10]] [#allocation9]
              %243 = sst [smem:[#allocation11]] [#allocation8]
            $region52: #{tpu_custom_call.1} parent=47 // pred_fallthru
              _
            %245 = shalt.err (0)
            %s247 = sshll.u32 %s238, 4
            %s248 = int_to_ptr.vmem [resolvable:$true] %s247
            %250 = dma.hbm_to_vmem [thread:$0]  %s235, 1024, %s248, %s239
          $region48: #{tpu_custom_call.1} parent=43 // pred_fallthru
            _
          %p251 = scmp.ne.s32.totalorder %s25, 2
          // Predicated region
          $region53: #{tpu_custom_call.1} parent=43 // pred_check
            %p252 = pneg %p251
          $region54: #{tpu_custom_call.1} parent=43 // pred_check_branch
            %254 = sbr.rel (%p252) target = $region56
          $region55: #{tpu_custom_call.1} parent=43 // pred_region
            %s255 = smul.u32 %s24, 192
            %s256 = sadd.s32 %s228, %s255
            %s257 = smul.addr %s256, 16
            %s258 = scalar_lea.hbm %s0, %s257
            %s259 = smul.u32 %s219, 80
            %s260 = sadd.s32 8, %s259
            %s261 = scalar_lea.vmem [#allocation2], %s260
            %s262 = scalar_lea.sflag [#allocation3], %s219
            // Predicated region
            $region57: #{tpu_custom_call.1} parent=55 // pred_check
              _
            $region58: #{tpu_custom_call.1} parent=55 // pred_check_branch
              %264 = sbr.rel target = $region60
            $region59: #{tpu_custom_call.1} parent=55 // pred_region
              %265 = sst [smem:[#allocation10]] [#allocation13]
              %266 = sst [smem:[#allocation11]] [#allocation12]
            $region60: #{tpu_custom_call.1} parent=55 // pred_fallthru
              _
            %268 = shalt.err (0)
            %s270 = sshll.u32 %s261, 4
            %s271 = int_to_ptr.vmem [resolvable:$true] %s270
            %273 = dma.hbm_to_vmem [thread:$0]  %s258, 1152, %s271, %s262
          $region56: #{tpu_custom_call.1} parent=43 // pred_fallthru
            _
          %p274 = scmp.ne.s32.totalorder %s25, 0
          %p275 = pnand %p274, %p251
          %p276 = pneg %p275
          // Predicated region
          $region61: #{tpu_custom_call.1} parent=43 // pred_check
            _
          $region62: #{tpu_custom_call.1} parent=43 // pred_check_branch
            %278 = sbr.rel (%p275) target = $region64
          $region63: #{tpu_custom_call.1} parent=43 // pred_region
            %s279 = smul.u32 %s24, 192
            %s280 = sadd.s32 %s228, %s279
            %s281 = smul.addr %s280, 16
            %s282 = scalar_lea.hbm %s0, %s281
            %s283 = smul.u32 %s219, 80
            %s284 = sadd.s32 8, %s283
            %s285 = scalar_lea.vmem [#allocation2], %s284
            %s286 = scalar_lea.sflag [#allocation3], %s219
            // Predicated region
            $region65: #{tpu_custom_call.1} parent=63 // pred_check
              _
            $region66: #{tpu_custom_call.1} parent=63 // pred_check_branch
              %288 = sbr.rel target = $region68
            $region67: #{tpu_custom_call.1} parent=63 // pred_region
              %289 = sst [smem:[#allocation10]] [#allocation15]
              %290 = sst [smem:[#allocation11]] [#allocation14]
            $region68: #{tpu_custom_call.1} parent=63 // pred_fallthru
              _
            %292 = shalt.err (0)
            %s294 = sshll.u32 %s285, 4
            %s295 = int_to_ptr.vmem [resolvable:$true] %s294
            %297 = dma.hbm_to_vmem [thread:$0]  %s282, 1280, %s295, %s286
          $region64: #{tpu_custom_call.1} parent=43 // pred_fallthru
            _
        $region44: #{tpu_custom_call.1} parent=35 // pred_fallthru
          _
        %s298 = sadd.s32 %s25, 1
        %p299 = scmp.lt.s32.totalorder %s298, 3
        // Predicated region
        $region69: #{tpu_custom_call.1} parent=35 // pred_check
          %p300 = pneg %p299
        $region70: #{tpu_custom_call.1} parent=35 // pred_check_branch
          %302 = sbr.rel (%p300) target = $region72
        $region71: #{tpu_custom_call.1} parent=35 // pred_region
          %s303 = ssub.s32 1, %s219
          %p304 = scmp.eq.s32.totalorder %s298, 0
          %p305 = scmp.eq.s32.totalorder %s298, 2
          %s306 = smul.u32 %s298, 64
          %s307 = ssub.s32 %s306, 8
          %p308 = scmp.gt.s32.totalorder %s307, 0
          %s309 = scalar_select %p308, %s307, 0
          %s310 = scalar_select %p304, 8, 0
          %p311 = pnand %p304, %p305
          %p312 = pneg %p311
          // Predicated region
          $region73: #{tpu_custom_call.1} parent=71 // pred_check
            _
          $region74: #{tpu_custom_call.1} parent=71 // pred_check_branch
            %314 = sbr.rel (%p311) target = $region76
          $region75: #{tpu_custom_call.1} parent=71 // pred_region
            %s315 = smul.u32 %s24, 192
            %s316 = sadd.s32 %s309, %s315
            %s317 = smul.addr %s316, 16
            %s318 = scalar_lea.hbm %s0, %s317
            %s319 = smul.u32 %s303, 80
            %s320 = sadd.s32 %s310, %s319
            %s321 = scalar_lea.vmem [#allocation2], %s320
            %s322 = scalar_lea.sflag [#allocation3], %s303
            // Predicated region
            $region77: #{tpu_custom_call.1} parent=75 // pred_check
              _
            $region78: #{tpu_custom_call.1} parent=75 // pred_check_branch
              %324 = sbr.rel target = $region80
            $region79: #{tpu_custom_call.1} parent=75 // pred_region
              %325 = sst [smem:[#allocation10]] [#allocation17]
              %326 = sst [smem:[#allocation11]] [#allocation16]
            $region80: #{tpu_custom_call.1} parent=75 // pred_fallthru
              _
            %328 = shalt.err (0)
            %s330 = sshll.u32 %s321, 4
            %s331 = int_to_ptr.vmem [resolvable:$true] %s330
            %333 = dma.hbm_to_vmem [thread:$0]  %s318, 1024, %s331, %s322
          $region76: #{tpu_custom_call.1} parent=71 // pred_fallthru
            _
          %p334 = pneg %p304
          %p335 = pneg %p305
          %p336 = pnand %p304, %p335
          %p337 = pneg %p336
          %p338 = pnand %p334, %p305
          %p339 = pneg %p338
          %p340 = por %p337, %p339
          // Predicated region
          $region81: #{tpu_custom_call.1} parent=71 // pred_check
            %p341 = pneg %p340
          $region82: #{tpu_custom_call.1} parent=71 // pred_check_branch
            %343 = sbr.rel (%p341) target = $region84
          $region83: #{tpu_custom_call.1} parent=71 // pred_region
            %s344 = smul.u32 %s24, 192
            %s345 = sadd.s32 %s309, %s344
            %s346 = smul.addr %s345, 16
            %s347 = scalar_lea.hbm %s0, %s346
            %s348 = smul.u32 %s303, 80
            %s349 = sadd.s32 %s310, %s348
            %s350 = scalar_lea.vmem [#allocation2], %s349
            %s351 = scalar_lea.sflag [#allocation3], %s303
            // Predicated region
            $region85: #{tpu_custom_call.1} parent=83 // pred_check
              _
            $region86: #{tpu_custom_call.1} parent=83 // pred_check_branch
              %353 = sbr.rel target = $region88
            $region87: #{tpu_custom_call.1} parent=83 // pred_region
              %354 = sst [smem:[#allocation10]] [#allocation19]
              %355 = sst [smem:[#allocation11]] [#allocation18]
            $region88: #{tpu_custom_call.1} parent=83 // pred_fallthru
              _
            %357 = shalt.err (0)
            %s359 = sshll.u32 %s350, 4
            %s360 = int_to_ptr.vmem [resolvable:$true] %s359
            %362 = dma.hbm_to_vmem [thread:$0]  %s347, 1152, %s360, %s351
          $region84: #{tpu_custom_call.1} parent=71 // pred_fallthru
            _
          %p363 = scmp.ne.s32.totalorder %s298, 0
          %p364 = scmp.ne.s32.totalorder %s298, 2
          %p365 = pnand %p363, %p364
          %p366 = pneg %p365
          // Predicated region
          $region89: #{tpu_custom_call.1} parent=71 // pred_check
            _
          $region90: #{tpu_custom_call.1} parent=71 // pred_check_branch
            %368 = sbr.rel (%p365) target = $region92
          $region91: #{tpu_custom_call.1} parent=71 // pred_region
            %s369 = smul.u32 %s24, 192
            %s370 = sadd.s32 %s309, %s369
            %s371 = smul.addr %s370, 16
            %s372 = scalar_lea.hbm %s0, %s371
            %s373 = smul.u32 %s303, 80
            %s374 = sadd.s32 %s310, %s373
            %s375 = scalar_lea.vmem [#allocation2], %s374
            %s376 = scalar_lea.sflag [#allocation3], %s303
            // Predicated region
            $region93: #{tpu_custom_call.1} parent=91 // pred_check
              _
            $region94: #{tpu_custom_call.1} parent=91 // pred_check_branch
              %378 = sbr.rel target = $region96
            $region95: #{tpu_custom_call.1} parent=91 // pred_region
              %379 = sst [smem:[#allocation10]] [#allocation21]
              %380 = sst [smem:[#allocation11]] [#allocation20]
            $region96: #{tpu_custom_call.1} parent=91 // pred_fallthru
              _
            %382 = shalt.err (0)
            %s384 = sshll.u32 %s375, 4
            %s385 = int_to_ptr.vmem [resolvable:$true] %s384
            %387 = dma.hbm_to_vmem [thread:$0]  %s372, 1280, %s385, %s376
          $region92: #{tpu_custom_call.1} parent=71 // pred_fallthru
            _
        $region72: #{tpu_custom_call.1} parent=35 // pred_fallthru
          _
        %p388 = scmp.eq.s32.totalorder %s25, 2
        %s389 = smul.u32 %s25, 64
        %s390 = ssub.s32 %s389, 8
        %p391 = scmp.gt.s32.totalorder %s390, 0
        %s392 = scalar_select %p391, %s390, 0
        %s393 = scalar_select %p220, 8, 0
        %p394 = pnand %p220, %p388
        %p395 = pneg %p394
        // Predicated region
        $region97: #{tpu_custom_call.1} parent=35 // pred_check
          _
        $region98: #{tpu_custom_call.1} parent=35 // pred_check_branch
          %397 = sbr.rel (%p394) target = $region100
        $region99: #{tpu_custom_call.1} parent=35 // pred_region
          %s398 = scalar_lea.sflag [#allocation3], %s219
          %s399 = smul.u32 64, 1
          %s400 = sshll.u32 %s399, 4
          %401 = dma.done %s398, %s400
        $region100: #{tpu_custom_call.1} parent=35 // pred_fallthru
          _
        %p402 = pneg %p220
        %p403 = pneg %p388
        %p404 = pnand %p220, %p403
        %p405 = pneg %p404
        %p406 = pnand %p402, %p388
        %p407 = pneg %p406
        %p408 = por %p405, %p407
        // Predicated region
        $region101: #{tpu_custom_call.1} parent=35 // pred_check
          %p409 = pneg %p408
        $region102: #{tpu_custom_call.1} parent=35 // pred_check_branch
          %411 = sbr.rel (%p409) target = $region104
        $region103: #{tpu_custom_call.1} parent=35 // pred_region
          %s412 = scalar_lea.sflag [#allocation3], %s219
          %s413 = smul.u32 72, 1
          %s414 = sshll.u32 %s413, 4
          %415 = dma.done %s412, %s414
        $region104: #{tpu_custom_call.1} parent=35 // pred_fallthru
          _
        %p416 = scmp.ne.s32.totalorder %s25, 0
        %p417 = scmp.ne.s32.totalorder %s25, 2
        %p418 = pnand %p416, %p417
        %p419 = pneg %p418
        // Predicated region
        $region105: #{tpu_custom_call.1} parent=35 // pred_check
          _
        $region106: #{tpu_custom_call.1} parent=35 // pred_check_branch
          %421 = sbr.rel (%p418) target = $region108
        $region107: #{tpu_custom_call.1} parent=35 // pred_region
          %s422 = scalar_lea.sflag [#allocation3], %s219
          %s423 = smul.u32 80, 1
          %s424 = sshll.u32 %s423, 4
          %425 = dma.done %s422, %s424
        $region108: #{tpu_custom_call.1} parent=35 // pred_fallthru
          _
        // Predicated region
        $region109: #{tpu_custom_call.1} parent=35 // pred_check
          %p426 = pneg %p220
        $region110: #{tpu_custom_call.1} parent=35 // pred_check_branch
          %428 = sbr.rel (%p426) target = $region112
        $region111: #{tpu_custom_call.1} parent=35 // pred_region
          %s429 = smul.u32 %s219, 80
          %s430 = scalar_lea.vmem [#allocation2], %s429
          %431 = vst [vmem:[%s430] sm:$0xff] 0.0
        $region112: #{tpu_custom_call.1} parent=35 // pred_fallthru
          _
        // Predicated region
        $region113: #{tpu_custom_call.1} parent=35 // pred_check
          %p432 = pneg %p388
        $region114: #{tpu_custom_call.1} parent=35 // pred_check_branch
          %434 = sbr.rel (%p432) target = $region116
        $region115: #{tpu_custom_call.1} parent=35 // pred_region
          %s435 = smul.u32 %s219, 80
          %s436 = scalar_lea.vmem [#allocation2], %s435
          %437 = vst [vmem:[%s436 + $0x48] sm:$0xff] 0.0
        $region116: #{tpu_custom_call.1} parent=35 // pred_fallthru
          _
        %s438 = smul.u32 %s219, 80
        %s439 = scalar_lea.vmem [#allocation2], %s438
        %v440 = vld [vmem:[%s439] sm:$0xff]
        %v441 = vld [vmem:[%s439 + $0x8] sm:$0xff]
        %v442 = vld [vmem:[%s439 + $0x10] sm:$0xff]
        %v443 = vld [vmem:[%s439 + $0x18] sm:$0xff]
        %v444 = vld [vmem:[%s439 + $0x20] sm:$0xff]
        %v445 = vld [vmem:[%s439 + $0x28] sm:$0xff]
        %v446 = vld [vmem:[%s439 + $0x30] sm:$0xff]
        %v447 = vld [vmem:[%s439 + $0x38] sm:$0xff]
        %v448 = vld [vmem:[%s439 + $0x40] sm:$0xff]
        %v449 = vld [vmem:[%s439 + $0x48] sm:$0xff]
        %v450 = vrot.slane %v440, 4
        %v451 = vrot.slane %v441, 4
        %v452 = vrot.slane %v442, 4
        %v453 = vrot.slane %v443, 4
        %v454 = vrot.slane %v444, 4
        %v455 = vrot.slane %v445, 4
        %v456 = vrot.slane %v446, 4
        %v457 = vrot.slane %v447, 4
        %v458 = vrot.slane %v448, 4
        %v459 = vlaneseq
        %v460 = vshrl.u32 %v459, 7
        %vm461 = vcmp.lt.s32.totalorder %v460, 4
        %v462 = vsel %vm461, %v457, %v458
        %v463 = vsel %vm461, %v456, %v457
        %v464 = vsel %vm461, %v455, %v456
        %v465 = vsel %vm461, %v454, %v455
        %v466 = vsel %vm461, %v453, %v454
        %v467 = vsel %vm461, %v452, %v453
        %v468 = vsel %vm461, %v451, %v452
        %v469 = vsel %vm461, %v450, %v451
        %v470 = vpack.c.bf16 %v468, %v469
        %v471 = vpack.c.bf16 %v466, %v467
        %v472 = vpack.c.bf16 %v464, %v465
        %v473 = vpack.c.bf16 %v462, %v463
        %v474 = vld [vmem:[#allocation4] sm:$0xf]
        %v475 = vld [vmem:[#allocation4 + $0x4] sm:$0xf]
        %v476 = vld [vmem:[#allocation4 + $0x8] sm:$0xf]
        %v477 = vld [vmem:[#allocation4 + $0xc] sm:$0xf]
        %v478 = vld [vmem:[#allocation4 + $0x10] sm:$0xf]
        %v479 = vld [vmem:[#allocation4 + $0x14] sm:$0xf]
        %v480 = vld [vmem:[#allocation4 + $0x18] sm:$0xf]
        %v481 = vld [vmem:[#allocation4 + $0x1c] sm:$0xf]
        %v482 = vld [vmem:[#allocation4 + $0x20] sm:$0xf]
        %v483 = vld [vmem:[#allocation4 + $0x24] sm:$0xf]
        %v484 = vld [vmem:[#allocation4 + $0x28] sm:$0xf]
        %v485 = vld [vmem:[#allocation4 + $0x2c] sm:$0xf]
        %v486 = vld [vmem:[#allocation4 + $0x30] sm:$0xf]
        %v487 = vld [vmem:[#allocation4 + $0x34] sm:$0xf]
        %v488 = vld [vmem:[#allocation4 + $0x38] sm:$0xf]
        %v489 = vld [vmem:[#allocation4 + $0x3c] sm:$0xf]
        %v490 = vrot.slane %v440, 5
        %v491 = vrot.slane %v441, 5
        %v492 = vrot.slane %v442, 5
        %v493 = vrot.slane %v443, 5
        %v494 = vrot.slane %v444, 5
        %v495 = vrot.slane %v445, 5
        %v496 = vrot.slane %v446, 5
        %v497 = vrot.slane %v447, 5
        %v498 = vrot.slane %v448, 5
        %vm499 = vcmp.lt.s32.totalorder %v460, 3
        %v500 = vsel %vm499, %v497, %v498
        %v501 = vsel %vm499, %v496, %v497
        %v502 = vsel %vm499, %v495, %v496
        %v503 = vsel %vm499, %v494, %v495
        %v504 = vsel %vm499, %v493, %v494
        %v505 = vsel %vm499, %v492, %v493
        %v506 = vsel %vm499, %v491, %v492
        %v507 = vsel %vm499, %v490, %v491
        %v508 = vpack.c.bf16 %v506, %v507
        %v509 = vpack.c.bf16 %v504, %v505
        %v510 = vpack.c.bf16 %v502, %v503
        %v511 = vpack.c.bf16 %v500, %v501
        %v512 = vld [vmem:[#allocation4 + $0x40] sm:$0xf]
        %v513 = vld [vmem:[#allocation4 + $0x44] sm:$0xf]
        %v514 = vld [vmem:[#allocation4 + $0x48] sm:$0xf]
        %v515 = vld [vmem:[#allocation4 + $0x4c] sm:$0xf]
        %v516 = vld [vmem:[#allocation4 + $0x50] sm:$0xf]
        %v517 = vld [vmem:[#allocation4 + $0x54] sm:$0xf]
        %v518 = vld [vmem:[#allocation4 + $0x58] sm:$0xf]
        %v519 = vld [vmem:[#allocation4 + $0x5c] sm:$0xf]
        %v520 = vld [vmem:[#allocation4 + $0x60] sm:$0xf]
        %v521 = vld [vmem:[#allocation4 + $0x64] sm:$0xf]
        %v522 = vld [vmem:[#allocation4 + $0x68] sm:$0xf]
        %v523 = vld [vmem:[#allocation4 + $0x6c] sm:$0xf]
        %v524 = vld [vmem:[#allocation4 + $0x70] sm:$0xf]
        %v525 = vld [vmem:[#allocation4 + $0x74] sm:$0xf]
        %v526 = vld [vmem:[#allocation4 + $0x78] sm:$0xf]
        %v527 = vld [vmem:[#allocation4 + $0x7c] sm:$0xf]
        %v544 = vunpack.c.l.b16 %v512
        %v545 = vunpack.c.l.b16 %v513
        %v546 = vunpack.c.l.b16 %v514
        %v547 = vunpack.c.l.b16 %v515
        %v548 = vunpack.c.l.b16 %v516
        %v549 = vunpack.c.l.b16 %v517
        %v550 = vunpack.c.l.b16 %v518
        %v551 = vunpack.c.l.b16 %v519
        %v552 = vunpack.c.l.b16 %v520
        %v553 = vunpack.c.l.b16 %v521
        %v554 = vunpack.c.l.b16 %v522
        %v555 = vunpack.c.l.b16 %v523
        %v556 = vunpack.c.l.b16 %v524
        %v557 = vunpack.c.l.b16 %v525
        %v558 = vunpack.c.l.b16 %v526
        %v559 = vunpack.c.l.b16 %v527
        %v560 = vpack.c.b16 %v545, %v544
        %v561 = vpack.c.b16 %v547, %v546
        %v562 = vpack.c.b16 %v549, %v548
        %v563 = vpack.c.b16 %v551, %v550
        %v564 = vpack.c.b16 %v553, %v552
        %v565 = vpack.c.b16 %v555, %v554
        %v566 = vpack.c.b16 %v557, %v556
        %v567 = vpack.c.b16 %v559, %v558
        %576 = vmatprep.subr.bf16.mxu0 0
        %577 = vmatpush1.bf16.msra.mxu0 %v560
        %578 = vmatprep.subr.bf16.mxu0 0
        %579 = vmatpush1.bf16.msra.mxu0 %v561
        %580 = vmatprep.subr.bf16.mxu0 0
        %581 = vmatpush1.bf16.msra.mxu0 %v562
        %582 = vmatprep.subr.bf16.mxu0 0
        %583 = vmatpush1.bf16.msra.mxu0 %v563
        %584 = vmatprep.subr.bf16.mxu0 0
        %585 = vmatpush1.bf16.msra.mxu0 %v564
        %586 = vmatprep.subr.bf16.mxu0 0
        %587 = vmatpush1.bf16.msra.mxu0 %v565
        %588 = vmatprep.subr.bf16.mxu0 0
        %589 = vmatpush1.bf16.msra.mxu0 %v566
        %590 = vmatprep.subr.bf16.mxu0 0
        %591 = vmatpush1.bf16.msra.mxu0 %v567
        %592 = vmatprep.subr.bf16.mxu0 0
        %593 = vmatpush1.bf16.msra.mxu0 0
        %594 = vmatprep.subr.bf16.mxu0 0
        %595 = vmatpush1.bf16.msra.mxu0 0
        %596 = vmatprep.subr.bf16.mxu0 0
        %597 = vmatpush1.bf16.msra.mxu0 0
        %598 = vmatprep.subr.bf16.mxu0 0
        %599 = vmatpush1.bf16.msra.mxu0 0
        %600 = vmatprep.subr.bf16.mxu0 0
        %601 = vmatpush1.bf16.msra.mxu0 0
        %602 = vmatprep.subr.bf16.mxu0 0
        %603 = vmatpush1.bf16.msra.mxu0 0
        %604 = vmatprep.subr.bf16.mxu0 0
        %605 = vmatpush1.bf16.msra.mxu0 0
        %606 = vmatprep.subr.bf16.mxu0 0
        %607 = vmatpush1.bf16.msra.mxu0 0
        %608 = vmatprep.mubr.bf16.mxu0 0
        %609 = vmatmul.mubr.bf16.gmra.mrb[0].mxu0 %v508
        %v610 = vpop.f32.mrb[0].mxu0
        %v611 = vadd.f32 0.0, %v610
        %v612 = vpop.f32.mrb[0].mxu0
        %v613 = vpop.f32.mrb[0].mxu0
        %v614 = vadd.f32 0.0, %v613
        %v615 = vpop.f32.mrb[0].mxu0
        %616 = vmatprep.mubr.bf16.mxu0 0
        %617 = vmatmul.mubr.bf16.gmra.mrb[0].mxu0 %v509
        %v618 = vpop.f32.mrb[0].mxu0
        %v619 = vadd.f32 0.0, %v618
        %v620 = vpop.f32.mrb[0].mxu0
        %v621 = vpop.f32.mrb[0].mxu0
        %v622 = vadd.f32 0.0, %v621
        %v623 = vpop.f32.mrb[0].mxu0
        %624 = vmatprep.mubr.bf16.mxu0 0
        %625 = vmatmul.mubr.bf16.gmra.mrb[0].mxu0 %v510
        %v626 = vpop.f32.mrb[0].mxu0
        %v627 = vadd.f32 0.0, %v626
        %v628 = vpop.f32.mrb[0].mxu0
        %v629 = vpop.f32.mrb[0].mxu0
        %v630 = vadd.f32 0.0, %v629
        %v631 = vpop.f32.mrb[0].mxu0
        %632 = vmatprep.mubr.bf16.mxu0 0
        %633 = vmatmul.mubr.bf16.gmra.mrb[0].mxu0 %v511
        %v634 = vpop.f32.mrb[0].mxu0
        %v635 = vadd.f32 0.0, %v634
        %v636 = vpop.f32.mrb[0].mxu0
        %v637 = vpop.f32.mrb[0].mxu0
        %v638 = vadd.f32 0.0, %v637
        %v639 = vpop.f32.mrb[0].mxu0
        %640 = vdwg.mxu0
        %v657 = vunpack.c.l.b16 %v474
        %v658 = vunpack.c.l.b16 %v475
        %v659 = vunpack.c.l.b16 %v476
        %v660 = vunpack.c.l.b16 %v477
        %v661 = vunpack.c.l.b16 %v478
        %v662 = vunpack.c.l.b16 %v479
        %v663 = vunpack.c.l.b16 %v480
        %v664 = vunpack.c.l.b16 %v481
        %v665 = vunpack.c.l.b16 %v482
        %v666 = vunpack.c.l.b16 %v483
        %v667 = vunpack.c.l.b16 %v484
        %v668 = vunpack.c.l.b16 %v485
        %v669 = vunpack.c.l.b16 %v486
        %v670 = vunpack.c.l.b16 %v487
        %v671 = vunpack.c.l.b16 %v488
        %v672 = vunpack.c.l.b16 %v489
        %v673 = vpack.c.b16 %v658, %v657
        %v674 = vpack.c.b16 %v660, %v659
        %v675 = vpack.c.b16 %v662, %v661
        %v676 = vpack.c.b16 %v664, %v663
        %v677 = vpack.c.b16 %v666, %v665
        %v678 = vpack.c.b16 %v668, %v667
        %v679 = vpack.c.b16 %v670, %v669
        %v680 = vpack.c.b16 %v672, %v671
        %689 = vmatprep.subr.bf16.mxu0 0
        %690 = vmatpush1.bf16.msra.mxu0 %v673
        %691 = vmatprep.subr.bf16.mxu0 0
        %692 = vmatpush1.bf16.msra.mxu0 %v674
        %693 = vmatprep.subr.bf16.mxu0 0
        %694 = vmatpush1.bf16.msra.mxu0 %v675
        %695 = vmatprep.subr.bf16.mxu0 0
        %696 = vmatpush1.bf16.msra.mxu0 %v676
        %697 = vmatprep.subr.bf16.mxu0 0
        %698 = vmatpush1.bf16.msra.mxu0 %v677
        %699 = vmatprep.subr.bf16.mxu0 0
        %700 = vmatpush1.bf16.msra.mxu0 %v678
        %701 = vmatprep.subr.bf16.mxu0 0
        %702 = vmatpush1.bf16.msra.mxu0 %v679
        %703 = vmatprep.subr.bf16.mxu0 0
        %704 = vmatpush1.bf16.msra.mxu0 %v680
        %705 = vmatprep.subr.bf16.mxu0 0
        %706 = vmatpush1.bf16.msra.mxu0 0
        %707 = vmatprep.subr.bf16.mxu0 0
        %708 = vmatpush1.bf16.msra.mxu0 0
        %709 = vmatprep.subr.bf16.mxu0 0
        %710 = vmatpush1.bf16.msra.mxu0 0
        %711 = vmatprep.subr.bf16.mxu0 0
        %712 = vmatpush1.bf16.msra.mxu0 0
        %713 = vmatprep.subr.bf16.mxu0 0
        %714 = vmatpush1.bf16.msra.mxu0 0
        %715 = vmatprep.subr.bf16.mxu0 0
        %716 = vmatpush1.bf16.msra.mxu0 0
        %717 = vmatprep.subr.bf16.mxu0 0
        %718 = vmatpush1.bf16.msra.mxu0 0
        %719 = vmatprep.subr.bf16.mxu0 0
        %720 = vmatpush1.bf16.msra.mxu0 0
        %721 = vmatprep.mubr.bf16.mxu0 0
        %722 = vmatmul.mubr.bf16.gmra.mrb[0].mxu0 %v470
        %v723 = vpop.f32.mrb[0].mxu0
        %v724 = vadd.f32 %v611, %v723
        %v725 = vpop.f32.mrb[0].mxu0
        %v726 = vpop.f32.mrb[0].mxu0
        %v727 = vadd.f32 %v614, %v726
        %v728 = vpop.f32.mrb[0].mxu0
        %729 = vmatprep.mubr.bf16.mxu0 0
        %730 = vmatmul.mubr.bf16.gmra.mrb[0].mxu0 %v471
        %v731 = vpop.f32.mrb[0].mxu0
        %v732 = vadd.f32 %v619, %v731
        %v733 = vpop.f32.mrb[0].mxu0
        %v734 = vpop.f32.mrb[0].mxu0
        %v735 = vadd.f32 %v622, %v734
        %v736 = vpop.f32.mrb[0].mxu0
        %737 = vmatprep.mubr.bf16.mxu0 0
        %738 = vmatmul.mubr.bf16.gmra.mrb[0].mxu0 %v472
        %v739 = vpop.f32.mrb[0].mxu0
        %v740 = vadd.f32 %v627, %v739
        %v741 = vpop.f32.mrb[0].mxu0
        %v742 = vpop.f32.mrb[0].mxu0
        %v743 = vadd.f32 %v630, %v742
        %v744 = vpop.f32.mrb[0].mxu0
        %745 = vmatprep.mubr.bf16.mxu0 0
        %746 = vmatmul.mubr.bf16.gmra.mrb[0].mxu0 %v473
        %v747 = vpop.f32.mrb[0].mxu0
        %v748 = vadd.f32 %v635, %v747
        %v749 = vpop.f32.mrb[0].mxu0
        %v750 = vpop.f32.mrb[0].mxu0
        %v751 = vadd.f32 %v638, %v750
        %v752 = vpop.f32.mrb[0].mxu0
        %753 = vdwg.mxu0
        %v754 = vrot.slane %v440, 6
        %v755 = vrot.slane %v441, 6
        %v756 = vrot.slane %v442, 6
        %v757 = vrot.slane %v443, 6
        %v758 = vrot.slane %v444, 6
        %v759 = vrot.slane %v445, 6
        %v760 = vrot.slane %v446, 6
        %v761 = vrot.slane %v447, 6
        %v762 = vrot.slane %v448, 6
        %vm763 = vcmp.lt.s32.totalorder %v460, 2
        %v764 = vsel %vm763, %v761, %v762
        %v765 = vsel %vm763, %v760, %v761
        %v766 = vsel %vm763, %v759, %v760
        %v767 = vsel %vm763, %v758, %v759
        %v768 = vsel %vm763, %v757, %v758
        %v769 = vsel %vm763, %v756, %v757
        %v770 = vsel %vm763, %v755, %v756
        %v771 = vsel %vm763, %v754, %v755
        %v772 = vpack.c.bf16 %v770, %v771
        %v773 = vpack.c.bf16 %v768, %v769
        %v774 = vpack.c.bf16 %v766, %v767
        %v775 = vpack.c.bf16 %v764, %v765
        %v776 = vld [vmem:[#allocation4 + $0x80] sm:$0xf]
        %v777 = vld [vmem:[#allocation4 + $0x84] sm:$0xf]
        %v778 = vld [vmem:[#allocation4 + $0x88] sm:$0xf]
        %v779 = vld [vmem:[#allocation4 + $0x8c] sm:$0xf]
        %v780 = vld [vmem:[#allocation4 + $0x90] sm:$0xf]
        %v781 = vld [vmem:[#allocation4 + $0x94] sm:$0xf]
        %v782 = vld [vmem:[#allocation4 + $0x98] sm:$0xf]
        %v783 = vld [vmem:[#allocation4 + $0x9c] sm:$0xf]
        %v784 = vld [vmem:[#allocation4 + $0xa0] sm:$0xf]
        %v785 = vld [vmem:[#allocation4 + $0xa4] sm:$0xf]
        %v786 = vld [vmem:[#allocation4 + $0xa8] sm:$0xf]
        %v787 = vld [vmem:[#allocation4 + $0xac] sm:$0xf]
        %v788 = vld [vmem:[#allocation4 + $0xb0] sm:$0xf]
        %v789 = vld [vmem:[#allocation4 + $0xb4] sm:$0xf]
        %v790 = vld [vmem:[#allocation4 + $0xb8] sm:$0xf]
        %v791 = vld [vmem:[#allocation4 + $0xbc] sm:$0xf]
        %v808 = vunpack.c.l.b16 %v776
        %v809 = vunpack.c.l.b16 %v777
        %v810 = vunpack.c.l.b16 %v778
        %v811 = vunpack.c.l.b16 %v779
        %v812 = vunpack.c.l.b16 %v780
        %v813 = vunpack.c.l.b16 %v781
        %v814 = vunpack.c.l.b16 %v782
        %v815 = vunpack.c.l.b16 %v783
        %v816 = vunpack.c.l.b16 %v784
        %v817 = vunpack.c.l.b16 %v785
        %v818 = vunpack.c.l.b16 %v786
        %v819 = vunpack.c.l.b16 %v787
        %v820 = vunpack.c.l.b16 %v788
        %v821 = vunpack.c.l.b16 %v789
        %v822 = vunpack.c.l.b16 %v790
        %v823 = vunpack.c.l.b16 %v791
        %v824 = vpack.c.b16 %v809, %v808
        %v825 = vpack.c.b16 %v811, %v810
        %v826 = vpack.c.b16 %v813, %v812
        %v827 = vpack.c.b16 %v815, %v814
        %v828 = vpack.c.b16 %v817, %v816
        %v829 = vpack.c.b16 %v819, %v818
        %v830 = vpack.c.b16 %v821, %v820
        %v831 = vpack.c.b16 %v823, %v822
        %840 = vmatprep.subr.bf16.mxu0 0
        %841 = vmatpush1.bf16.msra.mxu0 %v824
        %842 = vmatprep.subr.bf16.mxu0 0
        %843 = vmatpush1.bf16.msra.mxu0 %v825
        %844 = vmatprep.subr.bf16.mxu0 0
        %845 = vmatpush1.bf16.msra.mxu0 %v826
        %846 = vmatprep.subr.bf16.mxu0 0
        %847 = vmatpush1.bf16.msra.mxu0 %v827
        %848 = vmatprep.subr.bf16.mxu0 0
        %849 = vmatpush1.bf16.msra.mxu0 %v828
        %850 = vmatprep.subr.bf16.mxu0 0
        %851 = vmatpush1.bf16.msra.mxu0 %v829
        %852 = vmatprep.subr.bf16.mxu0 0
        %853 = vmatpush1.bf16.msra.mxu0 %v830
        %854 = vmatprep.subr.bf16.mxu0 0
        %855 = vmatpush1.bf16.msra.mxu0 %v831
        %856 = vmatprep.subr.bf16.mxu0 0
        %857 = vmatpush1.bf16.msra.mxu0 0
        %858 = vmatprep.subr.bf16.mxu0 0
        %859 = vmatpush1.bf16.msra.mxu0 0
        %860 = vmatprep.subr.bf16.mxu0 0
        %861 = vmatpush1.bf16.msra.mxu0 0
        %862 = vmatprep.subr.bf16.mxu0 0
        %863 = vmatpush1.bf16.msra.mxu0 0
        %864 = vmatprep.subr.bf16.mxu0 0
        %865 = vmatpush1.bf16.msra.mxu0 0
        %866 = vmatprep.subr.bf16.mxu0 0
        %867 = vmatpush1.bf16.msra.mxu0 0
        %868 = vmatprep.subr.bf16.mxu0 0
        %869 = vmatpush1.bf16.msra.mxu0 0
        %870 = vmatprep.subr.bf16.mxu0 0
        %871 = vmatpush1.bf16.msra.mxu0 0
        %872 = vmatprep.mubr.bf16.mxu0 0
        %873 = vmatmul.mubr.bf16.gmra.mrb[0].mxu0 %v772
        %v874 = vpop.f32.mrb[0].mxu0
        %v875 = vadd.f32 0.0, %v874
        %v876 = vpop.f32.mrb[0].mxu0
        %v877 = vpop.f32.mrb[0].mxu0
        %v878 = vadd.f32 0.0, %v877
        %v879 = vpop.f32.mrb[0].mxu0
        %880 = vmatprep.mubr.bf16.mxu0 0
        %881 = vmatmul.mubr.bf16.gmra.mrb[0].mxu0 %v773
        %v882 = vpop.f32.mrb[0].mxu0
        %v883 = vadd.f32 0.0, %v882
        %v884 = vpop.f32.mrb[0].mxu0
        %v885 = vpop.f32.mrb[0].mxu0
        %v886 = vadd.f32 0.0, %v885
        %v887 = vpop.f32.mrb[0].mxu0
        %888 = vmatprep.mubr.bf16.mxu0 0
        %889 = vmatmul.mubr.bf16.gmra.mrb[0].mxu0 %v774
        %v890 = vpop.f32.mrb[0].mxu0
        %v891 = vadd.f32 0.0, %v890
        %v892 = vpop.f32.mrb[0].mxu0
        %v893 = vpop.f32.mrb[0].mxu0
        %v894 = vadd.f32 0.0, %v893
        %v895 = vpop.f32.mrb[0].mxu0
        %896 = vmatprep.mubr.bf16.mxu0 0
        %897 = vmatmul.mubr.bf16.gmra.mrb[0].mxu0 %v775
        %v898 = vpop.f32.mrb[0].mxu0
        %v899 = vadd.f32 0.0, %v898
        %v900 = vpop.f32.mrb[0].mxu0
        %v901 = vpop.f32.mrb[0].mxu0
        %v902 = vadd.f32 0.0, %v901
        %v903 = vpop.f32.mrb[0].mxu0
        %904 = vdwg.mxu0
        %v905 = vadd.f32 %v724, %v875
        %v906 = vadd.f32 %v727, %v878
        %v907 = vadd.f32 %v732, %v883
        %v908 = vadd.f32 %v735, %v886
        %v909 = vadd.f32 %v740, %v891
        %v910 = vadd.f32 %v743, %v894
        %v911 = vadd.f32 %v748, %v899
        %v912 = vadd.f32 %v751, %v902
        %v913 = vrot.slane %v440, 7
        %v914 = vrot.slane %v441, 7
        %v915 = vrot.slane %v442, 7
        %v916 = vrot.slane %v443, 7
        %v917 = vrot.slane %v444, 7
        %v918 = vrot.slane %v445, 7
        %v919 = vrot.slane %v446, 7
        %v920 = vrot.slane %v447, 7
        %v921 = vrot.slane %v448, 7
        %vm922 = vcmp.lt.s32.totalorder %v460, 1
        %v923 = vsel %vm922, %v920, %v921
        %v924 = vsel %vm922, %v919, %v920
        %v925 = vsel %vm922, %v918, %v919
        %v926 = vsel %vm922, %v917, %v918
        %v927 = vsel %vm922, %v916, %v917
        %v928 = vsel %vm922, %v915, %v916
        %v929 = vsel %vm922, %v914, %v915
        %v930 = vsel %vm922, %v913, %v914
        %v931 = vpack.c.bf16 %v929, %v930
        %v932 = vpack.c.bf16 %v927, %v928
        %v933 = vpack.c.bf16 %v925, %v926
        %v934 = vpack.c.bf16 %v923, %v924
        %v935 = vld [vmem:[#allocation4 + $0xc0] sm:$0xf]
        %v936 = vld [vmem:[#allocation4 + $0xc4] sm:$0xf]
        %v937 = vld [vmem:[#allocation4 + $0xc8] sm:$0xf]
        %v938 = vld [vmem:[#allocation4 + $0xcc] sm:$0xf]
        %v939 = vld [vmem:[#allocation4 + $0xd0] sm:$0xf]
        %v940 = vld [vmem:[#allocation4 + $0xd4] sm:$0xf]
        %v941 = vld [vmem:[#allocation4 + $0xd8] sm:$0xf]
        %v942 = vld [vmem:[#allocation4 + $0xdc] sm:$0xf]
        %v943 = vld [vmem:[#allocation4 + $0xe0] sm:$0xf]
        %v944 = vld [vmem:[#allocation4 + $0xe4] sm:$0xf]
        %v945 = vld [vmem:[#allocation4 + $0xe8] sm:$0xf]
        %v946 = vld [vmem:[#allocation4 + $0xec] sm:$0xf]
        %v947 = vld [vmem:[#allocation4 + $0xf0] sm:$0xf]
        %v948 = vld [vmem:[#allocation4 + $0xf4] sm:$0xf]
        %v949 = vld [vmem:[#allocation4 + $0xf8] sm:$0xf]
        %v950 = vld [vmem:[#allocation4 + $0xfc] sm:$0xf]
        %v967 = vunpack.c.l.b16 %v935
        %v968 = vunpack.c.l.b16 %v936
        %v969 = vunpack.c.l.b16 %v937
        %v970 = vunpack.c.l.b16 %v938
        %v971 = vunpack.c.l.b16 %v939
        %v972 = vunpack.c.l.b16 %v940
        %v973 = vunpack.c.l.b16 %v941
        %v974 = vunpack.c.l.b16 %v942
        %v975 = vunpack.c.l.b16 %v943
        %v976 = vunpack.c.l.b16 %v944
        %v977 = vunpack.c.l.b16 %v945
        %v978 = vunpack.c.l.b16 %v946
        %v979 = vunpack.c.l.b16 %v947
        %v980 = vunpack.c.l.b16 %v948
        %v981 = vunpack.c.l.b16 %v949
        %v982 = vunpack.c.l.b16 %v950
        %v983 = vpack.c.b16 %v968, %v967
        %v984 = vpack.c.b16 %v970, %v969
        %v985 = vpack.c.b16 %v972, %v971
        %v986 = vpack.c.b16 %v974, %v973
        %v987 = vpack.c.b16 %v976, %v975
        %v988 = vpack.c.b16 %v978, %v977
        %v989 = vpack.c.b16 %v980, %v979
        %v990 = vpack.c.b16 %v982, %v981
        %999 = vmatprep.subr.bf16.mxu0 0
        %1000 = vmatpush1.bf16.msra.mxu0 %v983
        %1001 = vmatprep.subr.bf16.mxu0 0
        %1002 = vmatpush1.bf16.msra.mxu0 %v984
        %1003 = vmatprep.subr.bf16.mxu0 0
        %1004 = vmatpush1.bf16.msra.mxu0 %v985
        %1005 = vmatprep.subr.bf16.mxu0 0
        %1006 = vmatpush1.bf16.msra.mxu0 %v986
        %1007 = vmatprep.subr.bf16.mxu0 0
        %1008 = vmatpush1.bf16.msra.mxu0 %v987
        %1009 = vmatprep.subr.bf16.mxu0 0
        %1010 = vmatpush1.bf16.msra.mxu0 %v988
        %1011 = vmatprep.subr.bf16.mxu0 0
        %1012 = vmatpush1.bf16.msra.mxu0 %v989
        %1013 = vmatprep.subr.bf16.mxu0 0
        %1014 = vmatpush1.bf16.msra.mxu0 %v990
        %1015 = vmatprep.subr.bf16.mxu0 0
        %1016 = vmatpush1.bf16.msra.mxu0 0
        %1017 = vmatprep.subr.bf16.mxu0 0
        %1018 = vmatpush1.bf16.msra.mxu0 0
        %1019 = vmatprep.subr.bf16.mxu0 0
        %1020 = vmatpush1.bf16.msra.mxu0 0
        %1021 = vmatprep.subr.bf16.mxu0 0
        %1022 = vmatpush1.bf16.msra.mxu0 0
        %1023 = vmatprep.subr.bf16.mxu0 0
        %1024 = vmatpush1.bf16.msra.mxu0 0
        %1025 = vmatprep.subr.bf16.mxu0 0
        %1026 = vmatpush1.bf16.msra.mxu0 0
        %1027 = vmatprep.subr.bf16.mxu0 0
        %1028 = vmatpush1.bf16.msra.mxu0 0
        %1029 = vmatprep.subr.bf16.mxu0 0
        %1030 = vmatpush1.bf16.msra.mxu0 0
        %1031 = vmatprep.mubr.bf16.mxu0 0
        %1032 = vmatmul.mubr.bf16.gmra.mrb[0].mxu0 %v931
        %v1033 = vpop.f32.mrb[0].mxu0
        %v1034 = vadd.f32 0.0, %v1033
        %v1035 = vpop.f32.mrb[0].mxu0
        %v1036 = vpop.f32.mrb[0].mxu0
        %v1037 = vadd.f32 0.0, %v1036
        %v1038 = vpop.f32.mrb[0].mxu0
        %1039 = vmatprep.mubr.bf16.mxu0 0
        %1040 = vmatmul.mubr.bf16.gmra.mrb[0].mxu0 %v932
        %v1041 = vpop.f32.mrb[0].mxu0
        %v1042 = vadd.f32 0.0, %v1041
        %v1043 = vpop.f32.mrb[0].mxu0
        %v1044 = vpop.f32.mrb[0].mxu0
        %v1045 = vadd.f32 0.0, %v1044
        %v1046 = vpop.f32.mrb[0].mxu0
        %1047 = vmatprep.mubr.bf16.mxu0 0
        %1048 = vmatmul.mubr.bf16.gmra.mrb[0].mxu0 %v933
        %v1049 = vpop.f32.mrb[0].mxu0
        %v1050 = vadd.f32 0.0, %v1049
        %v1051 = vpop.f32.mrb[0].mxu0
        %v1052 = vpop.f32.mrb[0].mxu0
        %v1053 = vadd.f32 0.0, %v1052
        %v1054 = vpop.f32.mrb[0].mxu0
        %1055 = vmatprep.mubr.bf16.mxu0 0
        %1056 = vmatmul.mubr.bf16.gmra.mrb[0].mxu0 %v934
        %v1057 = vpop.f32.mrb[0].mxu0
        %v1058 = vadd.f32 0.0, %v1057
        %v1059 = vpop.f32.mrb[0].mxu0
        %v1060 = vpop.f32.mrb[0].mxu0
        %v1061 = vadd.f32 0.0, %v1060
        %v1062 = vpop.f32.mrb[0].mxu0
        %1063 = vdwg.mxu0
        %v1064 = vadd.f32 %v905, %v1034
        %v1065 = vadd.f32 %v906, %v1037
        %v1066 = vadd.f32 %v907, %v1042
        %v1067 = vadd.f32 %v908, %v1045
        %v1068 = vadd.f32 %v909, %v1050
        %v1069 = vadd.f32 %v910, %v1053
        %v1070 = vadd.f32 %v911, %v1058
        %v1071 = vadd.f32 %v912, %v1061
        %v1072 = vpack.c.bf16 %v442, %v441
        %v1073 = vpack.c.bf16 %v444, %v443
        %v1074 = vpack.c.bf16 %v446, %v445
        %v1075 = vpack.c.bf16 %v448, %v447
        %v1076 = vld [vmem:[#allocation4 + $0x100] sm:$0xf]
        %v1077 = vld [vmem:[#allocation4 + $0x104] sm:$0xf]
        %v1078 = vld [vmem:[#allocation4 + $0x108] sm:$0xf]
        %v1079 = vld [vmem:[#allocation4 + $0x10c] sm:$0xf]
        %v1080 = vld [vmem:[#allocation4 + $0x110] sm:$0xf]
        %v1081 = vld [vmem:[#allocation4 + $0x114] sm:$0xf]
        %v1082 = vld [vmem:[#allocation4 + $0x118] sm:$0xf]
        %v1083 = vld [vmem:[#allocation4 + $0x11c] sm:$0xf]
        %v1084 = vld [vmem:[#allocation4 + $0x120] sm:$0xf]
        %v1085 = vld [vmem:[#allocation4 + $0x124] sm:$0xf]
        %v1086 = vld [vmem:[#allocation4 + $0x128] sm:$0xf]
        %v1087 = vld [vmem:[#allocation4 + $0x12c] sm:$0xf]
        %v1088 = vld [vmem:[#allocation4 + $0x130] sm:$0xf]
        %v1089 = vld [vmem:[#allocation4 + $0x134] sm:$0xf]
        %v1090 = vld [vmem:[#allocation4 + $0x138] sm:$0xf]
        %v1091 = vld [vmem:[#allocation4 + $0x13c] sm:$0xf]
        %v1108 = vunpack.c.l.b16 %v1076
        %v1109 = vunpack.c.l.b16 %v1077
        %v1110 = vunpack.c.l.b16 %v1078
        %v1111 = vunpack.c.l.b16 %v1079
        %v1112 = vunpack.c.l.b16 %v1080
        %v1113 = vunpack.c.l.b16 %v1081
        %v1114 = vunpack.c.l.b16 %v1082
        %v1115 = vunpack.c.l.b16 %v1083
        %v1116 = vunpack.c.l.b16 %v1084
        %v1117 = vunpack.c.l.b16 %v1085
        %v1118 = vunpack.c.l.b16 %v1086
        %v1119 = vunpack.c.l.b16 %v1087
        %v1120 = vunpack.c.l.b16 %v1088
        %v1121 = vunpack.c.l.b16 %v1089
        %v1122 = vunpack.c.l.b16 %v1090
        %v1123 = vunpack.c.l.b16 %v1091
        %v1124 = vpack.c.b16 %v1109, %v1108
        %v1125 = vpack.c.b16 %v1111, %v1110
        %v1126 = vpack.c.b16 %v1113, %v1112
        %v1127 = vpack.c.b16 %v1115, %v1114
        %v1128 = vpack.c.b16 %v1117, %v1116
        %v1129 = vpack.c.b16 %v1119, %v1118
        %v1130 = vpack.c.b16 %v1121, %v1120
        %v1131 = vpack.c.b16 %v1123, %v1122
        %1140 = vmatprep.subr.bf16.mxu0 0
        %1141 = vmatpush1.bf16.msra.mxu0 %v1124
        %1142 = vmatprep.subr.bf16.mxu0 0
        %1143 = vmatpush1.bf16.msra.mxu0 %v1125
        %1144 = vmatprep.subr.bf16.mxu0 0
        %1145 = vmatpush1.bf16.msra.mxu0 %v1126
        %1146 = vmatprep.subr.bf16.mxu0 0
        %1147 = vmatpush1.bf16.msra.mxu0 %v1127
        %1148 = vmatprep.subr.bf16.mxu0 0
        %1149 = vmatpush1.bf16.msra.mxu0 %v1128
        %1150 = vmatprep.subr.bf16.mxu0 0
        %1151 = vmatpush1.bf16.msra.mxu0 %v1129
        %1152 = vmatprep.subr.bf16.mxu0 0
        %1153 = vmatpush1.bf16.msra.mxu0 %v1130
        %1154 = vmatprep.subr.bf16.mxu0 0
        %1155 = vmatpush1.bf16.msra.mxu0 %v1131
        %1156 = vmatprep.subr.bf16.mxu0 0
        %1157 = vmatpush1.bf16.msra.mxu0 0
        %1158 = vmatprep.subr.bf16.mxu0 0
        %1159 = vmatpush1.bf16.msra.mxu0 0
        %1160 = vmatprep.subr.bf16.mxu0 0
        %1161 = vmatpush1.bf16.msra.mxu0 0
        %1162 = vmatprep.subr.bf16.mxu0 0
        %1163 = vmatpush1.bf16.msra.mxu0 0
        %1164 = vmatprep.subr.bf16.mxu0 0
        %1165 = vmatpush1.bf16.msra.mxu0 0
        %1166 = vmatprep.subr.bf16.mxu0 0
        %1167 = vmatpush1.bf16.msra.mxu0 0
        %1168 = vmatprep.subr.bf16.mxu0 0
        %1169 = vmatpush1.bf16.msra.mxu0 0
        %1170 = vmatprep.subr.bf16.mxu0 0
        %1171 = vmatpush1.bf16.msra.mxu0 0
        %1172 = vmatprep.mubr.bf16.mxu0 0
        %1173 = vmatmul.mubr.bf16.gmra.mrb[0].mxu0 %v1072
        %v1174 = vpop.f32.mrb[0].mxu0
        %v1175 = vadd.f32 0.0, %v1174
        %v1176 = vpop.f32.mrb[0].mxu0
        %v1177 = vpop.f32.mrb[0].mxu0
        %v1178 = vadd.f32 0.0, %v1177
        %v1179 = vpop.f32.mrb[0].mxu0
        %1180 = vmatprep.mubr.bf16.mxu0 0
        %1181 = vmatmul.mubr.bf16.gmra.mrb[0].mxu0 %v1073
        %v1182 = vpop.f32.mrb[0].mxu0
        %v1183 = vadd.f32 0.0, %v1182
        %v1184 = vpop.f32.mrb[0].mxu0
        %v1185 = vpop.f32.mrb[0].mxu0
        %v1186 = vadd.f32 0.0, %v1185
        %v1187 = vpop.f32.mrb[0].mxu0
        %1188 = vmatprep.mubr.bf16.mxu0 0
        %1189 = vmatmul.mubr.bf16.gmra.mrb[0].mxu0 %v1074
        %v1190 = vpop.f32.mrb[0].mxu0
        %v1191 = vadd.f32 0.0, %v1190
        %v1192 = vpop.f32.mrb[0].mxu0
        %v1193 = vpop.f32.mrb[0].mxu0
        %v1194 = vadd.f32 0.0, %v1193
        %v1195 = vpop.f32.mrb[0].mxu0
        %1196 = vmatprep.mubr.bf16.mxu0 0
        %1197 = vmatmul.mubr.bf16.gmra.mrb[0].mxu0 %v1075
        %v1198 = vpop.f32.mrb[0].mxu0
        %v1199 = vadd.f32 0.0, %v1198
        %v1200 = vpop.f32.mrb[0].mxu0
        %v1201 = vpop.f32.mrb[0].mxu0
        %v1202 = vadd.f32 0.0, %v1201
        %v1203 = vpop.f32.mrb[0].mxu0
        %1204 = vdwg.mxu0
        %v1205 = vadd.f32 %v1064, %v1175
        %v1206 = vadd.f32 %v1065, %v1178
        %v1207 = vadd.f32 %v1066, %v1183
        %v1208 = vadd.f32 %v1067, %v1186
        %v1209 = vadd.f32 %v1068, %v1191
        %v1210 = vadd.f32 %v1069, %v1194
        %v1211 = vadd.f32 %v1070, %v1199
        %v1212 = vadd.f32 %v1071, %v1202
        %v1213 = vrot.slane %v441, 1
        %v1214 = vrot.slane %v442, 1
        %v1215 = vrot.slane %v443, 1
        %v1216 = vrot.slane %v444, 1
        %v1217 = vrot.slane %v445, 1
        %v1218 = vrot.slane %v446, 1
        %v1219 = vrot.slane %v447, 1
        %v1220 = vrot.slane %v448, 1
        %v1221 = vrot.slane %v449, 1
        %vm1222 = vcmp.lt.s32.totalorder %v460, 7
        %v1223 = vsel %vm1222, %v1220, %v1221
        %v1224 = vsel %vm1222, %v1219, %v1220
        %v1225 = vsel %vm1222, %v1218, %v1219
        %v1226 = vsel %vm1222, %v1217, %v1218
        %v1227 = vsel %vm1222, %v1216, %v1217
        %v1228 = vsel %vm1222, %v1215, %v1216
        %v1229 = vsel %vm1222, %v1214, %v1215
        %v1230 = vsel %vm1222, %v1213, %v1214
        %v1231 = vpack.c.bf16 %v1229, %v1230
        %v1232 = vpack.c.bf16 %v1227, %v1228
        %v1233 = vpack.c.bf16 %v1225, %v1226
        %v1234 = vpack.c.bf16 %v1223, %v1224
        %v1235 = vld [vmem:[#allocation4 + $0x140] sm:$0xf]
        %v1236 = vld [vmem:[#allocation4 + $0x144] sm:$0xf]
        %v1237 = vld [vmem:[#allocation4 + $0x148] sm:$0xf]
        %v1238 = vld [vmem:[#allocation4 + $0x14c] sm:$0xf]
        %v1239 = vld [vmem:[#allocation4 + $0x150] sm:$0xf]
        %v1240 = vld [vmem:[#allocation4 + $0x154] sm:$0xf]
        %v1241 = vld [vmem:[#allocation4 + $0x158] sm:$0xf]
        %v1242 = vld [vmem:[#allocation4 + $0x15c] sm:$0xf]
        %v1243 = vld [vmem:[#allocation4 + $0x160] sm:$0xf]
        %v1244 = vld [vmem:[#allocation4 + $0x164] sm:$0xf]
        %v1245 = vld [vmem:[#allocation4 + $0x168] sm:$0xf]
        %v1246 = vld [vmem:[#allocation4 + $0x16c] sm:$0xf]
        %v1247 = vld [vmem:[#allocation4 + $0x170] sm:$0xf]
        %v1248 = vld [vmem:[#allocation4 + $0x174] sm:$0xf]
        %v1249 = vld [vmem:[#allocation4 + $0x178] sm:$0xf]
        %v1250 = vld [vmem:[#allocation4 + $0x17c] sm:$0xf]
        %v1267 = vunpack.c.l.b16 %v1235
        %v1268 = vunpack.c.l.b16 %v1236
        %v1269 = vunpack.c.l.b16 %v1237
        %v1270 = vunpack.c.l.b16 %v1238
        %v1271 = vunpack.c.l.b16 %v1239
        %v1272 = vunpack.c.l.b16 %v1240
        %v1273 = vunpack.c.l.b16 %v1241
        %v1274 = vunpack.c.l.b16 %v1242
        %v1275 = vunpack.c.l.b16 %v1243
        %v1276 = vunpack.c.l.b16 %v1244
        %v1277 = vunpack.c.l.b16 %v1245
        %v1278 = vunpack.c.l.b16 %v1246
        %v1279 = vunpack.c.l.b16 %v1247
        %v1280 = vunpack.c.l.b16 %v1248
        %v1281 = vunpack.c.l.b16 %v1249
        %v1282 = vunpack.c.l.b16 %v1250
        %v1283 = vpack.c.b16 %v1268, %v1267
        %v1284 = vpack.c.b16 %v1270, %v1269
        %v1285 = vpack.c.b16 %v1272, %v1271
        %v1286 = vpack.c.b16 %v1274, %v1273
        %v1287 = vpack.c.b16 %v1276, %v1275
        %v1288 = vpack.c.b16 %v1278, %v1277
        %v1289 = vpack.c.b16 %v1280, %v1279
        %v1290 = vpack.c.b16 %v1282, %v1281
        %1299 = vmatprep.subr.bf16.mxu0 0
        %1300 = vmatpush1.bf16.msra.mxu0 %v1283
        %1301 = vmatprep.subr.bf16.mxu0 0
        %1302 = vmatpush1.bf16.msra.mxu0 %v1284
        %1303 = vmatprep.subr.bf16.mxu0 0
        %1304 = vmatpush1.bf16.msra.mxu0 %v1285
        %1305 = vmatprep.subr.bf16.mxu0 0
        %1306 = vmatpush1.bf16.msra.mxu0 %v1286
        %1307 = vmatprep.subr.bf16.mxu0 0
        %1308 = vmatpush1.bf16.msra.mxu0 %v1287
        %1309 = vmatprep.subr.bf16.mxu0 0
        %1310 = vmatpush1.bf16.msra.mxu0 %v1288
        %1311 = vmatprep.subr.bf16.mxu0 0
        %1312 = vmatpush1.bf16.msra.mxu0 %v1289
        %1313 = vmatprep.subr.bf16.mxu0 0
        %1314 = vmatpush1.bf16.msra.mxu0 %v1290
        %1315 = vmatprep.subr.bf16.mxu0 0
        %1316 = vmatpush1.bf16.msra.mxu0 0
        %1317 = vmatprep.subr.bf16.mxu0 0
        %1318 = vmatpush1.bf16.msra.mxu0 0
        %1319 = vmatprep.subr.bf16.mxu0 0
        %1320 = vmatpush1.bf16.msra.mxu0 0
        %1321 = vmatprep.subr.bf16.mxu0 0
        %1322 = vmatpush1.bf16.msra.mxu0 0
        %1323 = vmatprep.subr.bf16.mxu0 0
        %1324 = vmatpush1.bf16.msra.mxu0 0
        %1325 = vmatprep.subr.bf16.mxu0 0
        %1326 = vmatpush1.bf16.msra.mxu0 0
        %1327 = vmatprep.subr.bf16.mxu0 0
        %1328 = vmatpush1.bf16.msra.mxu0 0
        %1329 = vmatprep.subr.bf16.mxu0 0
        %1330 = vmatpush1.bf16.msra.mxu0 0
        %1331 = vmatprep.mubr.bf16.mxu0 0
        %1332 = vmatmul.mubr.bf16.gmra.mrb[0].mxu0 %v1231
        %v1333 = vpop.f32.mrb[0].mxu0
        %v1334 = vadd.f32 0.0, %v1333
        %v1335 = vpop.f32.mrb[0].mxu0
        %v1336 = vpop.f32.mrb[0].mxu0
        %v1337 = vadd.f32 0.0, %v1336
        %v1338 = vpop.f32.mrb[0].mxu0
        %1339 = vmatprep.mubr.bf16.mxu0 0
        %1340 = vmatmul.mubr.bf16.gmra.mrb[0].mxu0 %v1232
        %v1341 = vpop.f32.mrb[0].mxu0
        %v1342 = vadd.f32 0.0, %v1341
        %v1343 = vpop.f32.mrb[0].mxu0
        %v1344 = vpop.f32.mrb[0].mxu0
        %v1345 = vadd.f32 0.0, %v1344
        %v1346 = vpop.f32.mrb[0].mxu0
        %1347 = vmatprep.mubr.bf16.mxu0 0
        %1348 = vmatmul.mubr.bf16.gmra.mrb[0].mxu0 %v1233
        %v1349 = vpop.f32.mrb[0].mxu0
        %v1350 = vadd.f32 0.0, %v1349
        %v1351 = vpop.f32.mrb[0].mxu0
        %v1352 = vpop.f32.mrb[0].mxu0
        %v1353 = vadd.f32 0.0, %v1352
        %v1354 = vpop.f32.mrb[0].mxu0
        %1355 = vmatprep.mubr.bf16.mxu0 0
        %1356 = vmatmul.mubr.bf16.gmra.mrb[0].mxu0 %v1234
        %v1357 = vpop.f32.mrb[0].mxu0
        %v1358 = vadd.f32 0.0, %v1357
        %v1359 = vpop.f32.mrb[0].mxu0
        %v1360 = vpop.f32.mrb[0].mxu0
        %v1361 = vadd.f32 0.0, %v1360
        %v1362 = vpop.f32.mrb[0].mxu0
        %1363 = vdwg.mxu0
        %v1364 = vadd.f32 %v1205, %v1334
        %v1365 = vadd.f32 %v1206, %v1337
        %v1366 = vadd.f32 %v1207, %v1342
        %v1367 = vadd.f32 %v1208, %v1345
        %v1368 = vadd.f32 %v1209, %v1350
        %v1369 = vadd.f32 %v1210, %v1353
        %v1370 = vadd.f32 %v1211, %v1358
        %v1371 = vadd.f32 %v1212, %v1361
        %v1372 = vrot.slane %v441, 2
        %v1373 = vrot.slane %v442, 2
        %v1374 = vrot.slane %v443, 2
        %v1375 = vrot.slane %v444, 2
        %v1376 = vrot.slane %v445, 2
        %v1377 = vrot.slane %v446, 2
        %v1378 = vrot.slane %v447, 2
        %v1379 = vrot.slane %v448, 2
        %v1380 = vrot.slane %v449, 2
        %vm1381 = vcmp.lt.s32.totalorder %v460, 6
        %v1382 = vsel %vm1381, %v1379, %v1380
        %v1383 = vsel %vm1381, %v1378, %v1379
        %v1384 = vsel %vm1381, %v1377, %v1378
        %v1385 = vsel %vm1381, %v1376, %v1377
        %v1386 = vsel %vm1381, %v1375, %v1376
        %v1387 = vsel %vm1381, %v1374, %v1375
        %v1388 = vsel %vm1381, %v1373, %v1374
        %v1389 = vsel %vm1381, %v1372, %v1373
        %v1390 = vpack.c.bf16 %v1388, %v1389
        %v1391 = vpack.c.bf16 %v1386, %v1387
        %v1392 = vpack.c.bf16 %v1384, %v1385
        %v1393 = vpack.c.bf16 %v1382, %v1383
        %v1394 = vld [vmem:[#allocation4 + $0x180] sm:$0xf]
        %v1395 = vld [vmem:[#allocation4 + $0x184] sm:$0xf]
        %v1396 = vld [vmem:[#allocation4 + $0x188] sm:$0xf]
        %v1397 = vld [vmem:[#allocation4 + $0x18c] sm:$0xf]
        %v1398 = vld [vmem:[#allocation4 + $0x190] sm:$0xf]
        %v1399 = vld [vmem:[#allocation4 + $0x194] sm:$0xf]
        %v1400 = vld [vmem:[#allocation4 + $0x198] sm:$0xf]
        %v1401 = vld [vmem:[#allocation4 + $0x19c] sm:$0xf]
        %v1402 = vld [vmem:[#allocation4 + $0x1a0] sm:$0xf]
        %v1403 = vld [vmem:[#allocation4 + $0x1a4] sm:$0xf]
        %v1404 = vld [vmem:[#allocation4 + $0x1a8] sm:$0xf]
        %v1405 = vld [vmem:[#allocation4 + $0x1ac] sm:$0xf]
        %v1406 = vld [vmem:[#allocation4 + $0x1b0] sm:$0xf]
        %v1407 = vld [vmem:[#allocation4 + $0x1b4] sm:$0xf]
        %v1408 = vld [vmem:[#allocation4 + $0x1b8] sm:$0xf]
        %v1409 = vld [vmem:[#allocation4 + $0x1bc] sm:$0xf]
        %v1426 = vunpack.c.l.b16 %v1394
        %v1427 = vunpack.c.l.b16 %v1395
        %v1428 = vunpack.c.l.b16 %v1396
        %v1429 = vunpack.c.l.b16 %v1397
        %v1430 = vunpack.c.l.b16 %v1398
        %v1431 = vunpack.c.l.b16 %v1399
        %v1432 = vunpack.c.l.b16 %v1400
        %v1433 = vunpack.c.l.b16 %v1401
        %v1434 = vunpack.c.l.b16 %v1402
        %v1435 = vunpack.c.l.b16 %v1403
        %v1436 = vunpack.c.l.b16 %v1404
        %v1437 = vunpack.c.l.b16 %v1405
        %v1438 = vunpack.c.l.b16 %v1406
        %v1439 = vunpack.c.l.b16 %v1407
        %v1440 = vunpack.c.l.b16 %v1408
        %v1441 = vunpack.c.l.b16 %v1409
        %v1442 = vpack.c.b16 %v1427, %v1426
        %v1443 = vpack.c.b16 %v1429, %v1428
        %v1444 = vpack.c.b16 %v1431, %v1430
        %v1445 = vpack.c.b16 %v1433, %v1432
        %v1446 = vpack.c.b16 %v1435, %v1434
        %v1447 = vpack.c.b16 %v1437, %v1436
        %v1448 = vpack.c.b16 %v1439, %v1438
        %v1449 = vpack.c.b16 %v1441, %v1440
        %1458 = vmatprep.subr.bf16.mxu0 0
        %1459 = vmatpush1.bf16.msra.mxu0 %v1442
        %1460 = vmatprep.subr.bf16.mxu0 0
        %1461 = vmatpush1.bf16.msra.mxu0 %v1443
        %1462 = vmatprep.subr.bf16.mxu0 0
        %1463 = vmatpush1.bf16.msra.mxu0 %v1444
        %1464 = vmatprep.subr.bf16.mxu0 0
        %1465 = vmatpush1.bf16.msra.mxu0 %v1445
        %1466 = vmatprep.subr.bf16.mxu0 0
        %1467 = vmatpush1.bf16.msra.mxu0 %v1446
        %1468 = vmatprep.subr.bf16.mxu0 0
        %1469 = vmatpush1.bf16.msra.mxu0 %v1447
        %1470 = vmatprep.subr.bf16.mxu0 0
        %1471 = vmatpush1.bf16.msra.mxu0 %v1448
        %1472 = vmatprep.subr.bf16.mxu0 0
        %1473 = vmatpush1.bf16.msra.mxu0 %v1449
        %1474 = vmatprep.subr.bf16.mxu0 0
        %1475 = vmatpush1.bf16.msra.mxu0 0
        %1476 = vmatprep.subr.bf16.mxu0 0
        %1477 = vmatpush1.bf16.msra.mxu0 0
        %1478 = vmatprep.subr.bf16.mxu0 0
        %1479 = vmatpush1.bf16.msra.mxu0 0
        %1480 = vmatprep.subr.bf16.mxu0 0
        %1481 = vmatpush1.bf16.msra.mxu0 0
        %1482 = vmatprep.subr.bf16.mxu0 0
        %1483 = vmatpush1.bf16.msra.mxu0 0
        %1484 = vmatprep.subr.bf16.mxu0 0
        %1485 = vmatpush1.bf16.msra.mxu0 0
        %1486 = vmatprep.subr.bf16.mxu0 0
        %1487 = vmatpush1.bf16.msra.mxu0 0
        %1488 = vmatprep.subr.bf16.mxu0 0
        %1489 = vmatpush1.bf16.msra.mxu0 0
        %1490 = vmatprep.mubr.bf16.mxu0 0
        %1491 = vmatmul.mubr.bf16.gmra.mrb[0].mxu0 %v1390
        %v1492 = vpop.f32.mrb[0].mxu0
        %v1493 = vadd.f32 0.0, %v1492
        %v1494 = vpop.f32.mrb[0].mxu0
        %v1495 = vpop.f32.mrb[0].mxu0
        %v1496 = vadd.f32 0.0, %v1495
        %v1497 = vpop.f32.mrb[0].mxu0
        %1498 = vmatprep.mubr.bf16.mxu0 0
        %1499 = vmatmul.mubr.bf16.gmra.mrb[0].mxu0 %v1391
        %v1500 = vpop.f32.mrb[0].mxu0
        %v1501 = vadd.f32 0.0, %v1500
        %v1502 = vpop.f32.mrb[0].mxu0
        %v1503 = vpop.f32.mrb[0].mxu0
        %v1504 = vadd.f32 0.0, %v1503
        %v1505 = vpop.f32.mrb[0].mxu0
        %1506 = vmatprep.mubr.bf16.mxu0 0
        %1507 = vmatmul.mubr.bf16.gmra.mrb[0].mxu0 %v1392
        %v1508 = vpop.f32.mrb[0].mxu0
        %v1509 = vadd.f32 0.0, %v1508
        %v1510 = vpop.f32.mrb[0].mxu0
        %v1511 = vpop.f32.mrb[0].mxu0
        %v1512 = vadd.f32 0.0, %v1511
        %v1513 = vpop.f32.mrb[0].mxu0
        %1514 = vmatprep.mubr.bf16.mxu0 0
        %1515 = vmatmul.mubr.bf16.gmra.mrb[0].mxu0 %v1393
        %v1516 = vpop.f32.mrb[0].mxu0
        %v1517 = vadd.f32 0.0, %v1516
        %v1518 = vpop.f32.mrb[0].mxu0
        %v1519 = vpop.f32.mrb[0].mxu0
        %v1520 = vadd.f32 0.0, %v1519
        %v1521 = vpop.f32.mrb[0].mxu0
        %1522 = vdwg.mxu0
        %v1523 = vadd.f32 %v1364, %v1493
        %v1524 = vadd.f32 %v1365, %v1496
        %v1525 = vadd.f32 %v1366, %v1501
        %v1526 = vadd.f32 %v1367, %v1504
        %v1527 = vadd.f32 %v1368, %v1509
        %v1528 = vadd.f32 %v1369, %v1512
        %v1529 = vadd.f32 %v1370, %v1517
        %v1530 = vadd.f32 %v1371, %v1520
        %v1531 = vrot.slane %v441, 3
        %v1532 = vrot.slane %v442, 3
        %v1533 = vrot.slane %v443, 3
        %v1534 = vrot.slane %v444, 3
        %v1535 = vrot.slane %v445, 3
        %v1536 = vrot.slane %v446, 3
        %v1537 = vrot.slane %v447, 3
        %v1538 = vrot.slane %v448, 3
        %v1539 = vrot.slane %v449, 3
        %vm1540 = vcmp.lt.s32.totalorder %v460, 5
        %v1541 = vsel %vm1540, %v1538, %v1539
        %v1542 = vsel %vm1540, %v1537, %v1538
        %v1543 = vsel %vm1540, %v1536, %v1537
        %v1544 = vsel %vm1540, %v1535, %v1536
        %v1545 = vsel %vm1540, %v1534, %v1535
        %v1546 = vsel %vm1540, %v1533, %v1534
        %v1547 = vsel %vm1540, %v1532, %v1533
        %v1548 = vsel %vm1540, %v1531, %v1532
        %v1549 = vpack.c.bf16 %v1547, %v1548
        %v1550 = vpack.c.bf16 %v1545, %v1546
        %v1551 = vpack.c.bf16 %v1543, %v1544
        %v1552 = vpack.c.bf16 %v1541, %v1542
        %v1553 = vld [vmem:[#allocation4 + $0x1c0] sm:$0xf]
        %v1554 = vld [vmem:[#allocation4 + $0x1c4] sm:$0xf]
        %v1555 = vld [vmem:[#allocation4 + $0x1c8] sm:$0xf]
        %v1556 = vld [vmem:[#allocation4 + $0x1cc] sm:$0xf]
        %v1557 = vld [vmem:[#allocation4 + $0x1d0] sm:$0xf]
        %v1558 = vld [vmem:[#allocation4 + $0x1d4] sm:$0xf]
        %v1559 = vld [vmem:[#allocation4 + $0x1d8] sm:$0xf]
        %v1560 = vld [vmem:[#allocation4 + $0x1dc] sm:$0xf]
        %v1561 = vld [vmem:[#allocation4 + $0x1e0] sm:$0xf]
        %v1562 = vld [vmem:[#allocation4 + $0x1e4] sm:$0xf]
        %v1563 = vld [vmem:[#allocation4 + $0x1e8] sm:$0xf]
        %v1564 = vld [vmem:[#allocation4 + $0x1ec] sm:$0xf]
        %v1565 = vld [vmem:[#allocation4 + $0x1f0] sm:$0xf]
        %v1566 = vld [vmem:[#allocation4 + $0x1f4] sm:$0xf]
        %v1567 = vld [vmem:[#allocation4 + $0x1f8] sm:$0xf]
        %v1568 = vld [vmem:[#allocation4 + $0x1fc] sm:$0xf]
        %v1585 = vunpack.c.l.b16 %v1553
        %v1586 = vunpack.c.l.b16 %v1554
        %v1587 = vunpack.c.l.b16 %v1555
        %v1588 = vunpack.c.l.b16 %v1556
        %v1589 = vunpack.c.l.b16 %v1557
        %v1590 = vunpack.c.l.b16 %v1558
        %v1591 = vunpack.c.l.b16 %v1559
        %v1592 = vunpack.c.l.b16 %v1560
        %v1593 = vunpack.c.l.b16 %v1561
        %v1594 = vunpack.c.l.b16 %v1562
        %v1595 = vunpack.c.l.b16 %v1563
        %v1596 = vunpack.c.l.b16 %v1564
        %v1597 = vunpack.c.l.b16 %v1565
        %v1598 = vunpack.c.l.b16 %v1566
        %v1599 = vunpack.c.l.b16 %v1567
        %v1600 = vunpack.c.l.b16 %v1568
        %v1601 = vpack.c.b16 %v1586, %v1585
        %v1602 = vpack.c.b16 %v1588, %v1587
        %v1603 = vpack.c.b16 %v1590, %v1589
        %v1604 = vpack.c.b16 %v1592, %v1591
        %v1605 = vpack.c.b16 %v1594, %v1593
        %v1606 = vpack.c.b16 %v1596, %v1595
        %v1607 = vpack.c.b16 %v1598, %v1597
        %v1608 = vpack.c.b16 %v1600, %v1599
        %1617 = vmatprep.subr.bf16.mxu0 0
        %1618 = vmatpush1.bf16.msra.mxu0 %v1601
        %1619 = vmatprep.subr.bf16.mxu0 0
        %1620 = vmatpush1.bf16.msra.mxu0 %v1602
        %1621 = vmatprep.subr.bf16.mxu0 0
        %1622 = vmatpush1.bf16.msra.mxu0 %v1603
        %1623 = vmatprep.subr.bf16.mxu0 0
        %1624 = vmatpush1.bf16.msra.mxu0 %v1604
        %1625 = vmatprep.subr.bf16.mxu0 0
        %1626 = vmatpush1.bf16.msra.mxu0 %v1605
        %1627 = vmatprep.subr.bf16.mxu0 0
        %1628 = vmatpush1.bf16.msra.mxu0 %v1606
        %1629 = vmatprep.subr.bf16.mxu0 0
        %1630 = vmatpush1.bf16.msra.mxu0 %v1607
        %1631 = vmatprep.subr.bf16.mxu0 0
        %1632 = vmatpush1.bf16.msra.mxu0 %v1608
        %1633 = vmatprep.subr.bf16.mxu0 0
        %1634 = vmatpush1.bf16.msra.mxu0 0
        %1635 = vmatprep.subr.bf16.mxu0 0
        %1636 = vmatpush1.bf16.msra.mxu0 0
        %1637 = vmatprep.subr.bf16.mxu0 0
        %1638 = vmatpush1.bf16.msra.mxu0 0
        %1639 = vmatprep.subr.bf16.mxu0 0
        %1640 = vmatpush1.bf16.msra.mxu0 0
        %1641 = vmatprep.subr.bf16.mxu0 0
        %1642 = vmatpush1.bf16.msra.mxu0 0
        %1643 = vmatprep.subr.bf16.mxu0 0
        %1644 = vmatpush1.bf16.msra.mxu0 0
        %1645 = vmatprep.subr.bf16.mxu0 0
        %1646 = vmatpush1.bf16.msra.mxu0 0
        %1647 = vmatprep.subr.bf16.mxu0 0
        %1648 = vmatpush1.bf16.msra.mxu0 0
        %1649 = vmatprep.mubr.bf16.mxu0 0
        %1650 = vmatmul.mubr.bf16.gmra.mrb[0].mxu0 %v1549
        %v1651 = vpop.f32.mrb[0].mxu0
        %v1652 = vadd.f32 0.0, %v1651
        %v1653 = vpop.f32.mrb[0].mxu0
        %v1654 = vpop.f32.mrb[0].mxu0
        %v1655 = vadd.f32 0.0, %v1654
        %v1656 = vpop.f32.mrb[0].mxu0
        %1657 = vmatprep.mubr.bf16.mxu0 0
        %1658 = vmatmul.mubr.bf16.gmra.mrb[0].mxu0 %v1550
        %v1659 = vpop.f32.mrb[0].mxu0
        %v1660 = vadd.f32 0.0, %v1659
        %v1661 = vpop.f32.mrb[0].mxu0
        %v1662 = vpop.f32.mrb[0].mxu0
        %v1663 = vadd.f32 0.0, %v1662
        %v1664 = vpop.f32.mrb[0].mxu0
        %1665 = vmatprep.mubr.bf16.mxu0 0
        %1666 = vmatmul.mubr.bf16.gmra.mrb[0].mxu0 %v1551
        %v1667 = vpop.f32.mrb[0].mxu0
        %v1668 = vadd.f32 0.0, %v1667
        %v1669 = vpop.f32.mrb[0].mxu0
        %v1670 = vpop.f32.mrb[0].mxu0
        %v1671 = vadd.f32 0.0, %v1670
        %v1672 = vpop.f32.mrb[0].mxu0
        %1673 = vmatprep.mubr.bf16.mxu0 0
        %1674 = vmatmul.mubr.bf16.gmra.mrb[0].mxu0 %v1552
        %v1675 = vpop.f32.mrb[0].mxu0
        %v1676 = vadd.f32 0.0, %v1675
        %v1677 = vpop.f32.mrb[0].mxu0
        %v1678 = vpop.f32.mrb[0].mxu0
        %v1679 = vadd.f32 0.0, %v1678
        %v1680 = vpop.f32.mrb[0].mxu0
        %1681 = vdwg.mxu0
        %v1682 = vadd.f32 %v1523, %v1652
        %v1683 = vadd.f32 %v1524, %v1655
        %v1684 = vadd.f32 %v1525, %v1660
        %v1685 = vadd.f32 %v1526, %v1663
        %v1686 = vadd.f32 %v1527, %v1668
        %v1687 = vadd.f32 %v1528, %v1671
        %v1688 = vadd.f32 %v1529, %v1676
        %v1689 = vadd.f32 %v1530, %v1679
        %v1690 = vld [vmem:[%s2] sm:$0x1]
        %v1692 = vlaneseq
        %v1693 = vshrl.u32 %v1692, 7
        %v1694 = vsub.s32 0, %v1693
        %v1695 = vrot.slane %v1690, %v1694
        %v1697 = vadd.f32 %v1682, %v1695
        %v1698 = vadd.f32 %v1683, %v1695
        %v1699 = vadd.f32 %v1684, %v1695
        %v1700 = vadd.f32 %v1685, %v1695
        %v1701 = vadd.f32 %v1686, %v1695
        %v1702 = vadd.f32 %v1687, %v1695
        %v1703 = vadd.f32 %v1688, %v1695
        %v1704 = vadd.f32 %v1689, %v1695
        %v1705 = vmul.f32 %v1697, 0.5
        %v1706 = vmul.f32 %v1698, 0.5
        %v1707 = vmul.f32 %v1699, 0.5
        %v1708 = vmul.f32 %v1700, 0.5
        %v1709 = vmul.f32 %v1701, 0.5
        %v1710 = vmul.f32 %v1702, 0.5
        %v1711 = vmul.f32 %v1703, 0.5
        %v1712 = vmul.f32 %v1704, 0.5
        %v1713 = vmul.f32 %v1697, 0.70710677
        %v1714 = vmul.f32 %v1698, 0.70710677
        %v1715 = vmul.f32 %v1699, 0.70710677
        %v1716 = vmul.f32 %v1700, 0.70710677
        %v1717 = vmul.f32 %v1701, 0.70710677
        %v1718 = vmul.f32 %v1702, 0.70710677
        %v1719 = vmul.f32 %v1703, 0.70710677
        %v1720 = vmul.f32 %v1704, 0.70710677
        %vm1721 = vcmp.ge.f32.partialorder %v1713, 0.0
        %vm1722 = vcmp.ge.f32.partialorder %v1714, 0.0
        %vm1723 = vcmp.ge.f32.partialorder %v1715, 0.0
        %vm1724 = vcmp.ge.f32.partialorder %v1716, 0.0
        %vm1725 = vcmp.ge.f32.partialorder %v1717, 0.0
        %vm1726 = vcmp.ge.f32.partialorder %v1718, 0.0
        %vm1727 = vcmp.ge.f32.partialorder %v1719, 0.0
        %vm1728 = vcmp.ge.f32.partialorder %v1720, 0.0
        %v1729 = vsel %vm1721, 1.0, -1.0
        %v1730 = vsel %vm1722, 1.0, -1.0
        %v1731 = vsel %vm1723, 1.0, -1.0
        %v1732 = vsel %vm1724, 1.0, -1.0
        %v1733 = vsel %vm1725, 1.0, -1.0
        %v1734 = vsel %vm1726, 1.0, -1.0
        %v1735 = vsel %vm1727, 1.0, -1.0
        %v1736 = vsel %vm1728, 1.0, -1.0
        %v1737 = vand.u32 2147483647, %v1713
        %v1738 = vand.u32 2147483647, %v1714
        %v1739 = vand.u32 2147483647, %v1715
        %v1740 = vand.u32 2147483647, %v1716
        %v1741 = vand.u32 2147483647, %v1717
        %v1742 = vand.u32 2147483647, %v1718
        %v1743 = vand.u32 2147483647, %v1719
        %v1744 = vand.u32 2147483647, %v1720
        %v1745 = vmul.f32 %v1737, 0.3275911
        %v1746 = vmul.f32 %v1738, 0.3275911
        %v1747 = vmul.f32 %v1739, 0.3275911
        %v1748 = vmul.f32 %v1740, 0.3275911
        %v1749 = vmul.f32 %v1741, 0.3275911
        %v1750 = vmul.f32 %v1742, 0.3275911
        %v1751 = vmul.f32 %v1743, 0.3275911
        %v1752 = vmul.f32 %v1744, 0.3275911
        %v1753 = vadd.f32 %v1745, 1.0
        %v1754 = vadd.f32 %v1746, 1.0
        %v1755 = vadd.f32 %v1747, 1.0
        %v1756 = vadd.f32 %v1748, 1.0
        %v1757 = vadd.f32 %v1749, 1.0
        %v1758 = vadd.f32 %v1750, 1.0
        %v1759 = vadd.f32 %v1751, 1.0
        %v1760 = vadd.f32 %v1752, 1.0
        %v1761 = vrcp.pop %v1753
        %v1762 = vmul.f32 1.0, %v1761
        %v1763 = vrcp.pop %v1754
        %v1764 = vmul.f32 1.0, %v1763
        %v1765 = vrcp.pop %v1755
        %v1766 = vmul.f32 1.0, %v1765
        %v1767 = vrcp.pop %v1756
        %v1768 = vmul.f32 1.0, %v1767
        %v1769 = vrcp.pop %v1757
        %v1770 = vmul.f32 1.0, %v1769
        %v1771 = vrcp.pop %v1758
        %v1772 = vmul.f32 1.0, %v1771
        %v1773 = vrcp.pop %v1759
        %v1774 = vmul.f32 1.0, %v1773
        %v1775 = vrcp.pop %v1760
        %v1776 = vmul.f32 1.0, %v1775
        %v1777 = vmul.f32 %v1762, 1.0614054
        %v1778 = vmul.f32 %v1764, 1.0614054
        %v1779 = vmul.f32 %v1766, 1.0614054
        %v1780 = vmul.f32 %v1768, 1.0614054
        %v1781 = vmul.f32 %v1770, 1.0614054
        %v1782 = vmul.f32 %v1772, 1.0614054
        %v1783 = vmul.f32 %v1774, 1.0614054
        %v1784 = vmul.f32 %v1776, 1.0614054
        %v1785 = vadd.f32 %v1777, -1.4531521
        %v1786 = vadd.f32 %v1778, -1.4531521
        %v1787 = vadd.f32 %v1779, -1.4531521
        %v1788 = vadd.f32 %v1780, -1.4531521
        %v1789 = vadd.f32 %v1781, -1.4531521
        %v1790 = vadd.f32 %v1782, -1.4531521
        %v1791 = vadd.f32 %v1783, -1.4531521
        %v1792 = vadd.f32 %v1784, -1.4531521
        %v1793 = vmul.f32 %v1785, %v1762
        %v1794 = vmul.f32 %v1786, %v1764
        %v1795 = vmul.f32 %v1787, %v1766
        %v1796 = vmul.f32 %v1788, %v1768
        %v1797 = vmul.f32 %v1789, %v1770
        %v1798 = vmul.f32 %v1790, %v1772
        %v1799 = vmul.f32 %v1791, %v1774
        %v1800 = vmul.f32 %v1792, %v1776
        %v1801 = vadd.f32 %v1793, 1.4214138
        %v1802 = vadd.f32 %v1794, 1.4214138
        %v1803 = vadd.f32 %v1795, 1.4214138
        %v1804 = vadd.f32 %v1796, 1.4214138
        %v1805 = vadd.f32 %v1797, 1.4214138
        %v1806 = vadd.f32 %v1798, 1.4214138
        %v1807 = vadd.f32 %v1799, 1.4214138
        %v1808 = vadd.f32 %v1800, 1.4214138
        %v1809 = vmul.f32 %v1801, %v1762
        %v1810 = vmul.f32 %v1802, %v1764
        %v1811 = vmul.f32 %v1803, %v1766
        %v1812 = vmul.f32 %v1804, %v1768
        %v1813 = vmul.f32 %v1805, %v1770
        %v1814 = vmul.f32 %v1806, %v1772
        %v1815 = vmul.f32 %v1807, %v1774
        %v1816 = vmul.f32 %v1808, %v1776
        %v1817 = vadd.f32 %v1809, -0.28449672
        %v1818 = vadd.f32 %v1810, -0.28449672
        %v1819 = vadd.f32 %v1811, -0.28449672
        %v1820 = vadd.f32 %v1812, -0.28449672
        %v1821 = vadd.f32 %v1813, -0.28449672
        %v1822 = vadd.f32 %v1814, -0.28449672
        %v1823 = vadd.f32 %v1815, -0.28449672
        %v1824 = vadd.f32 %v1816, -0.28449672
        %v1825 = vmul.f32 %v1817, %v1762
        %v1826 = vmul.f32 %v1818, %v1764
        %v1827 = vmul.f32 %v1819, %v1766
        %v1828 = vmul.f32 %v1820, %v1768
        %v1829 = vmul.f32 %v1821, %v1770
        %v1830 = vmul.f32 %v1822, %v1772
        %v1831 = vmul.f32 %v1823, %v1774
        %v1832 = vmul.f32 %v1824, %v1776
        %v1833 = vadd.f32 %v1825, 0.2548296
        %v1834 = vadd.f32 %v1826, 0.2548296
        %v1835 = vadd.f32 %v1827, 0.2548296
        %v1836 = vadd.f32 %v1828, 0.2548296
        %v1837 = vadd.f32 %v1829, 0.2548296
        %v1838 = vadd.f32 %v1830, 0.2548296
        %v1839 = vadd.f32 %v1831, 0.2548296
        %v1840 = vadd.f32 %v1832, 0.2548296
        %v1841 = vmul.f32 %v1833, %v1762
        %v1842 = vmul.f32 %v1834, %v1764
        %v1843 = vmul.f32 %v1835, %v1766
        %v1844 = vmul.f32 %v1836, %v1768
        %v1845 = vmul.f32 %v1837, %v1770
        %v1846 = vmul.f32 %v1838, %v1772
        %v1847 = vmul.f32 %v1839, %v1774
        %v1848 = vmul.f32 %v1840, %v1776
        %v1849 = vmul.f32 %v1737, %v1737
        %v1850 = vmul.f32 %v1738, %v1738
        %v1851 = vmul.f32 %v1739, %v1739
        %v1852 = vmul.f32 %v1740, %v1740
        %v1853 = vmul.f32 %v1741, %v1741
        %v1854 = vmul.f32 %v1742, %v1742
        %v1855 = vmul.f32 %v1743, %v1743
        %v1856 = vmul.f32 %v1744, %v1744
        %v1857 = vsub.f32 0.0, %v1849
        %v1858 = vsub.f32 0.0, %v1850
        %v1859 = vsub.f32 0.0, %v1851
        %v1860 = vsub.f32 0.0, %v1852
        %v1861 = vsub.f32 0.0, %v1853
        %v1862 = vsub.f32 0.0, %v1854
        %v1863 = vsub.f32 0.0, %v1855
        %v1864 = vsub.f32 0.0, %v1856
        %v1865 = vmul.f32 %v1857, 1.442695
        %v1866 = vpow.pop %v1865
        %v1867 = vmul.f32 %v1858, 1.442695
        %v1868 = vpow.pop %v1867
        %v1869 = vmul.f32 %v1859, 1.442695
        %v1870 = vpow.pop %v1869
        %v1871 = vmul.f32 %v1860, 1.442695
        %v1872 = vpow.pop %v1871
        %v1873 = vmul.f32 %v1861, 1.442695
        %v1874 = vpow.pop %v1873
        %v1875 = vmul.f32 %v1862, 1.442695
        %v1876 = vpow.pop %v1875
        %v1877 = vmul.f32 %v1863, 1.442695
        %v1878 = vpow.pop %v1877
        %v1879 = vmul.f32 %v1864, 1.442695
        %v1880 = vpow.pop %v1879
        %v1881 = vmul.f32 %v1841, %v1866
        %v1882 = vmul.f32 %v1842, %v1868
        %v1883 = vmul.f32 %v1843, %v1870
        %v1884 = vmul.f32 %v1844, %v1872
        %v1885 = vmul.f32 %v1845, %v1874
        %v1886 = vmul.f32 %v1846, %v1876
        %v1887 = vmul.f32 %v1847, %v1878
        %v1888 = vmul.f32 %v1848, %v1880
        %v1889 = vsub.f32 1.0, %v1881
        %v1890 = vsub.f32 1.0, %v1882
        %v1891 = vsub.f32 1.0, %v1883
        %v1892 = vsub.f32 1.0, %v1884
        %v1893 = vsub.f32 1.0, %v1885
        %v1894 = vsub.f32 1.0, %v1886
        %v1895 = vsub.f32 1.0, %v1887
        %v1896 = vsub.f32 1.0, %v1888
        %v1897 = vmul.f32 %v1729, %v1889
        %v1898 = vmul.f32 %v1730, %v1890
        %v1899 = vmul.f32 %v1731, %v1891
        %v1900 = vmul.f32 %v1732, %v1892
        %v1901 = vmul.f32 %v1733, %v1893
        %v1902 = vmul.f32 %v1734, %v1894
        %v1903 = vmul.f32 %v1735, %v1895
        %v1904 = vmul.f32 %v1736, %v1896
        %v1905 = vadd.f32 %v1897, 1.0
        %v1906 = vadd.f32 %v1898, 1.0
        %v1907 = vadd.f32 %v1899, 1.0
        %v1908 = vadd.f32 %v1900, 1.0
        %v1909 = vadd.f32 %v1901, 1.0
        %v1910 = vadd.f32 %v1902, 1.0
        %v1911 = vadd.f32 %v1903, 1.0
        %v1912 = vadd.f32 %v1904, 1.0
        %v1913 = vmul.f32 %v1705, %v1905
        %v1914 = vmul.f32 %v1706, %v1906
        %v1915 = vmul.f32 %v1707, %v1907
        %v1916 = vmul.f32 %v1708, %v1908
        %v1917 = vmul.f32 %v1709, %v1909
        %v1918 = vmul.f32 %v1710, %v1910
        %v1919 = vmul.f32 %v1711, %v1911
        %v1920 = vmul.f32 %v1712, %v1912
        %v1921 = vadd.f32 %v1913, %v441
        %v1922 = vadd.f32 %v1914, %v442
        %v1923 = vadd.f32 %v1915, %v443
        %v1924 = vadd.f32 %v1916, %v444
        %v1925 = vadd.f32 %v1917, %v445
        %v1926 = vadd.f32 %v1918, %v446
        %v1927 = vadd.f32 %v1919, %v447
        %v1928 = vadd.f32 %v1920, %v448
        %1929 = vadd.xlane.f32.xlu0 %v1921
        %v1930 = vpop.xlane.xlu0 %1929
        %1931 = vadd.xlane.f32.xlu0 %v1922
        %v1932 = vpop.xlane.xlu0 %1931
        %1933 = vadd.xlane.f32.xlu0 %v1923
        %v1934 = vpop.xlane.xlu0 %1933
        %1935 = vadd.xlane.f32.xlu0 %v1924
        %v1936 = vpop.xlane.xlu0 %1935
        %1937 = vadd.xlane.f32.xlu0 %v1925
        %v1938 = vpop.xlane.xlu0 %1937
        %1939 = vadd.xlane.f32.xlu0 %v1926
        %v1940 = vpop.xlane.xlu0 %1939
        %1941 = vadd.xlane.f32.xlu0 %v1927
        %v1942 = vpop.xlane.xlu0 %1941
        %1943 = vadd.xlane.f32.xlu0 %v1928
        %v1944 = vpop.xlane.xlu0 %1943
        %v1945 = vrcp.pop 128.0
        %v1946 = vmul.f32 %v1930, %v1945
        %v1947 = vmul.f32 %v1932, %v1945
        %v1948 = vmul.f32 %v1934, %v1945
        %v1949 = vmul.f32 %v1936, %v1945
        %v1950 = vmul.f32 %v1938, %v1945
        %v1951 = vmul.f32 %v1940, %v1945
        %v1952 = vmul.f32 %v1942, %v1945
        %v1953 = vmul.f32 %v1944, %v1945
        %v1954 = vsub.f32 %v1921, %v1946
        %v1955 = vsub.f32 %v1922, %v1947
        %v1956 = vsub.f32 %v1923, %v1948
        %v1957 = vsub.f32 %v1924, %v1949
        %v1958 = vsub.f32 %v1925, %v1950
        %v1959 = vsub.f32 %v1926, %v1951
        %v1960 = vsub.f32 %v1927, %v1952
        %v1961 = vsub.f32 %v1928, %v1953
        %v1962 = vmul.f32 %v1954, %v1954
        %v1963 = vmul.f32 %v1955, %v1955
        %v1964 = vmul.f32 %v1956, %v1956
        %v1965 = vmul.f32 %v1957, %v1957
        %v1966 = vmul.f32 %v1958, %v1958
        %v1967 = vmul.f32 %v1959, %v1959
        %v1968 = vmul.f32 %v1960, %v1960
        %v1969 = vmul.f32 %v1961, %v1961
        %1970 = vadd.xlane.f32.xlu0 %v1962
        %v1971 = vpop.xlane.xlu0 %1970
        %1972 = vadd.xlane.f32.xlu0 %v1963
        %v1973 = vpop.xlane.xlu0 %1972
        %1974 = vadd.xlane.f32.xlu0 %v1964
        %v1975 = vpop.xlane.xlu0 %1974
        %1976 = vadd.xlane.f32.xlu0 %v1965
        %v1977 = vpop.xlane.xlu0 %1976
        %1978 = vadd.xlane.f32.xlu0 %v1966
        %v1979 = vpop.xlane.xlu0 %1978
        %1980 = vadd.xlane.f32.xlu0 %v1967
        %v1981 = vpop.xlane.xlu0 %1980
        %1982 = vadd.xlane.f32.xlu0 %v1968
        %v1983 = vpop.xlane.xlu0 %1982
        %1984 = vadd.xlane.f32.xlu0 %v1969
        %v1985 = vpop.xlane.xlu0 %1984
        %v1986 = vmul.f32 %v1971, %v1945
        %v1987 = vmul.f32 %v1973, %v1945
        %v1988 = vmul.f32 %v1975, %v1945
        %v1989 = vmul.f32 %v1977, %v1945
        %v1990 = vmul.f32 %v1979, %v1945
        %v1991 = vmul.f32 %v1981, %v1945
        %v1992 = vmul.f32 %v1983, %v1945
        %v1993 = vmul.f32 %v1985, %v1945
        %v1994 = vadd.f32 %v1986, 1e-05
        %v1995 = vadd.f32 %v1987, 1e-05
        %v1996 = vadd.f32 %v1988, 1e-05
        %v1997 = vadd.f32 %v1989, 1e-05
        %v1998 = vadd.f32 %v1990, 1e-05
        %v1999 = vadd.f32 %v1991, 1e-05
        %v2000 = vadd.f32 %v1992, 1e-05
        %v2001 = vadd.f32 %v1993, 1e-05
        %v2002 = vrsqrt.pop %v1994
        %v2003 = vrsqrt.pop %v1995
        %v2004 = vrsqrt.pop %v1996
        %v2005 = vrsqrt.pop %v1997
        %v2006 = vrsqrt.pop %v1998
        %v2007 = vrsqrt.pop %v1999
        %v2008 = vrsqrt.pop %v2000
        %v2009 = vrsqrt.pop %v2001
        %v2010 = vmul.f32 %v1954, %v2002
        %v2011 = vmul.f32 %v1955, %v2003
        %v2012 = vmul.f32 %v1956, %v2004
        %v2013 = vmul.f32 %v1957, %v2005
        %v2014 = vmul.f32 %v1958, %v2006
        %v2015 = vmul.f32 %v1959, %v2007
        %v2016 = vmul.f32 %v1960, %v2008
        %v2017 = vmul.f32 %v1961, %v2009
        %v2018 = vld [vmem:[%s3] sm:$0x1]
        %v2020 = vlaneseq
        %v2021 = vshrl.u32 %v2020, 7
        %v2022 = vsub.s32 0, %v2021
        %v2023 = vrot.slane %v2018, %v2022
        %v2025 = vmul.f32 %v2010, %v2023
        %v2026 = vmul.f32 %v2011, %v2023
        %v2027 = vmul.f32 %v2012, %v2023
        %v2028 = vmul.f32 %v2013, %v2023
        %v2029 = vmul.f32 %v2014, %v2023
        %v2030 = vmul.f32 %v2015, %v2023
        %v2031 = vmul.f32 %v2016, %v2023
        %v2032 = vmul.f32 %v2017, %v2023
        %v2033 = vld [vmem:[%s4] sm:$0x1]
        %v2035 = vlaneseq
        %v2036 = vshrl.u32 %v2035, 7
        %v2037 = vsub.s32 0, %v2036
        %v2038 = vrot.slane %v2033, %v2037
        %v2040 = vadd.f32 %v2025, %v2038
        %v2041 = vadd.f32 %v2026, %v2038
        %v2042 = vadd.f32 %v2027, %v2038
        %v2043 = vadd.f32 %v2028, %v2038
        %v2044 = vadd.f32 %v2029, %v2038
        %v2045 = vadd.f32 %v2030, %v2038
        %v2046 = vadd.f32 %v2031, %v2038
        %v2047 = vadd.f32 %v2032, %v2038
        %2048 = vst [vmem:[%s205] sm:$0xff] %v2040
        %2049 = vst [vmem:[%s205 + $0x8] sm:$0xff] %v2041
        %2050 = vst [vmem:[%s205 + $0x10] sm:$0xff] %v2042
        %2051 = vst [vmem:[%s205 + $0x18] sm:$0xff] %v2043
        %2052 = vst [vmem:[%s205 + $0x20] sm:$0xff] %v2044
        %2053 = vst [vmem:[%s205 + $0x28] sm:$0xff] %v2045
        %2054 = vst [vmem:[%s205 + $0x30] sm:$0xff] %v2046
        %2055 = vst [vmem:[%s205 + $0x38] sm:$0xff] %v2047
        %s2056 = sand.u32 %s126, 1
        %s2057 = scalar_lea.sflag [#allocation6], %s2056
        %s2058 = sand.u32 %s126, 1
        %s2059 = smul.addr %s2058, 64
        %s2060 = scalar_lea.vmem [#allocation7], %s2059
        // Predicated region
        $region117: #{tpu_custom_call.1} parent=35 // pred_check
          %p2061 = pneg %p136
        $region118: #{tpu_custom_call.1} parent=35 // pred_check_branch
          %2063 = sbr.rel (%p2061) target = $region120
        $region119: #{tpu_custom_call.1} parent=35 // pred_region
          %s2064 = smul.u32 8, %s25
          %s2066 = ssub.s32 1024, 1024
          %2067 = vsyncadd %s2057, %s2066
          %s2068 = smul.addr %s24, 24
          %s2069 = sadd.s32 %s2064, %s2068
          %s2070 = smul.addr %s2069, 128
          %s2071 = scalar_lea.hbm %s5, %s2070
          %s2072 = sshll.u32 %s2060, 4
          %s2073 = int_to_ptr.vmem [resolvable:$true] %s2072
          %2078 = dma.vmem_to_hbm [thread:$0]  %s2073, 1024, %s2071, %s2057, 128, 128, 8
        $region120: #{tpu_custom_call.1} parent=35 // pred_fallthru
          _
      $region36: #{tpu_custom_call.1} parent=5 // pred_fallthru
        _
      %p2079 = scmp.le.s32.totalorder 2, %s15
      // Predicated region
      $region121: #{tpu_custom_call.1} parent=5 // pred_check
        %p2080 = pneg %p2079
      $region122: #{tpu_custom_call.1} parent=5 // pred_check_branch
        %2082 = sbr.rel (%p2080) target = $region124
      $region123: #{tpu_custom_call.1} parent=5 // pred_region
        %s2083 = ssub.s32 %s15, 2
        // Predicated region
        $region125: #{tpu_custom_call.1} parent=123 // pred_check
          %p2084 = pneg %p142
        $region126: #{tpu_custom_call.1} parent=123 // pred_check_branch
          %2086 = sbr.rel (%p2084) target = $region128
        $region127: #{tpu_custom_call.1} parent=123 // pred_region
          %s2087 = sand.u32 %s127, 1
          %s2088 = scalar_lea.sflag [#allocation6], %s2087
          %s2089 = sand.u32 %s127, 1
          %s2090 = smul.addr %s2089, 64
          %s2091 = scalar_lea.vmem [#allocation7], %s2090
          %2092 = dma.done %s2088, 1024
        $region128: #{tpu_custom_call.1} parent=123 // pred_fallthru
          _
      $region124: #{tpu_custom_call.1} parent=5 // pred_fallthru
        _
    $region6: #{tpu_custom_call.1} parent=1 // loop_footer
      %s19 = sadd.s32 1, %s15
    $region7: #{tpu_custom_call.1} parent=1 // loop_footer_branch
      %14 = sbr.rel target = $region3
    $region8: #{tpu_custom_call.1} parent=1 // loop_exit
      _
    %2093 = vsyncpa [#allocation5], 1
    %s2094 = scalar_lea.sflag [#allocation5], 1
    %2095 = vsyncpa %s2094, 1
    %2096 = vsyncpa [#allocation6], 1
    %s2097 = scalar_lea.sflag [#allocation6], 1
    %2098 = vsyncpa %s2097, 1
  %2099 = vsyncmov [#allocation3]
  %s2100 = vpop.sfrf %2099
  %p2101 = scmp.eq.s32.totalorder %s2100, 0
  %p2102 = pneg %p2101
  %2104 = shalt.err (%p2102)
  %s2105 = scalar_lea.sflag [#allocation3], 1
  %2106 = vsyncmov %s2105
  %s2107 = vpop.sfrf %2106
  %p2108 = scmp.eq.s32.totalorder %s2107, 0
  %p2109 = pneg %p2108
  %2111 = shalt.err (%p2109)

</llo_original>
